<compile_context>
chip_gen: v7x
topology: tpu7x:2x2x1
jax: 0.10.0
libtpu: 0.0.40
codegen_flags: <defaults>
</compile_context>

<pallas_src>
import jax
import jax.numpy as jnp
from jax import lax
from jax.experimental import pallas as pl
from jax.experimental.pallas import tpu as pltpu

# ---------------------------------------------------------------------------
# Model dimensions (small shapes consistent with the module).
# ---------------------------------------------------------------------------
N = 2            # batch
CIN = 4          # input channels
C1 = 8           # conv1 output channels
C2 = 8           # conv2 output channels
H = W = 16       # spatial size
HW = H * W       # 256  -> flattened spatial, lives on the lane axis
HID = 32         # classifier hidden width
NCLS = 10        # classes
PAD = 128        # zero halo (in lanes) on each side of the flattened image
PBUF = HW + 2 * PAD   # 512 lanes per padded activation row


# ---------------------------------------------------------------------------
# In-kernel helpers
# ---------------------------------------------------------------------------
def _conv3x3_acc(buf_ref, w_ref, b_ref, mask_ref, cout):
    """3x3 'same' conv + bias + ReLU on a zero-halo'd flattened image.

    buf_ref : VMEM [cin, PBUF]; halos [:, :PAD] / [:, PAD+HW:] are zero and
              [:, PAD:PAD+HW] holds the image in (C, H*W) layout
    w_ref   : [9, cout, cin]   tap-major weights, tap k = kh*3 + kw
    b_ref   : [cout, 1]
    mask_ref: [3, HW]          x-boundary validity mask per kw
    returns : [cout, HW] f32
    """
    # Accumulator starts at the broadcast bias (saves a trailing VALU add).
    acc = jnp.broadcast_to(b_ref[...], (cout, HW)).astype(jnp.float32)
    for kh in range(3):
        for kw in range(3):
            k = kh * 3 + kw
            off = (kh - 1) * W + (kw - 1)          # flat-index shift of this tap
            start = PAD + off                      # static, in [111, 145]
            win = buf_ref[:, start:start + HW]     # [cin, HW] shifted window
            if kw != 1:                            # zero columns that wrapped in x
                win = win * mask_ref[kw:kw + 1, :]
            acc = acc + jnp.dot(w_ref[k], win,
                                preferred_element_type=jnp.float32)
    return jnp.maximum(acc, 0.0)


def _bottomnet_kernel(x_ref, w1_ref, b1_ref, w2_ref, b2_ref,
                      wc1_ref, bc1_ref, wc2_ref, bc2_ref, mask_ref,
                      out_ref, buf1, buf2):
    # ---- features: conv1 + ReLU ------------------------------------------
    # Re-zero only the halos (aligned 128-lane stores); the center is always
    # overwritten with the current image.
    zpad1 = jnp.zeros((CIN, PAD), jnp.float32)
    buf1[:, 0:PAD] = zpad1
    buf1[:, PAD + HW:PBUF] = zpad1
    buf1[:, PAD:PAD + HW] = x_ref[0]                       # aligned store
    h1 = _conv3x3_acc(buf1, w1_ref, b1_ref, mask_ref, C1)  # [C1, HW]

    # ---- features: conv2 + ReLU ------------------------------------------
    zpad2 = jnp.zeros((C1, PAD), jnp.float32)
    buf2[:, 0:PAD] = zpad2
    buf2[:, PAD + HW:PBUF] = zpad2
    buf2[:, PAD:PAD + HW] = h1
    h2 = _conv3x3_acc(buf2, w2_ref, b2_ref, mask_ref, C2)  # [C2, HW]

    # ---- classifier: Linear -> ReLU -> Linear ------------------------------
    # h2 is laid out (C, H*W) == PyTorch view(N, -1) flatten order: the fc1
    # weight is pre-reshaped to [C2, HW, HID], so the flatten costs nothing.
    acc = jnp.broadcast_to(bc1_ref[...], (1, HID)).astype(jnp.float32)
    for c in range(C2):
        acc = acc + jnp.dot(h2[c:c + 1, :], wc1_ref[c],
                            preferred_element_type=jnp.float32)
    z = jnp.maximum(acc, 0.0)                                      # [1, HID]
    logits = jnp.dot(z, wc2_ref[...],
                     preferred_element_type=jnp.float32) + bc2_ref[...]
    out_ref[0] = logits                                            # [1, NCLS]


# ---------------------------------------------------------------------------
# Wrapper: one fused pallas_call, grid over batch.
# ---------------------------------------------------------------------------
@jax.jit
def bottomnet_forward(kparams, x_nchw):
    n = x_nchw.shape[0]
    x_flat = x_nchw.reshape(n, CIN, HW)        # free view: (C, H*W) per image

    out = pl.pallas_call(
        _bottomnet_kernel,
        out_shape=jax.ShapeDtypeStruct((n, 1, NCLS), jnp.float32),
        grid=(n,),
        in_specs=[
            pl.BlockSpec((1, CIN, HW), lambda b: (b, 0, 0)),    # x (per image)
            pl.BlockSpec((9, C1, CIN), lambda b: (0, 0, 0)),    # conv1 weight
            pl.BlockSpec((C1, 1), lambda b: (0, 0)),            # conv1 bias
            pl.BlockSpec((9, C2, C1), lambda b: (0, 0, 0)),     # conv2 weight
            pl.BlockSpec((C2, 1), lambda b: (0, 0)),            # conv2 bias
            pl.BlockSpec((C2, HW, HID), lambda b: (0, 0, 0)),   # fc1 weight
            pl.BlockSpec((1, HID), lambda b: (0, 0)),           # fc1 bias
            pl.BlockSpec((HID, NCLS), lambda b: (0, 0)),        # fc2 weight
            pl.BlockSpec((1, NCLS), lambda b: (0, 0)),          # fc2 bias
            pl.BlockSpec((3, HW), lambda b: (0, 0)),            # x-boundary masks
        ],
        out_specs=pl.BlockSpec((1, 1, NCLS), lambda b: (b, 0, 0)),
        scratch_shapes=[
            pltpu.VMEM((CIN, PBUF), jnp.float32),   # padded conv1 input
            pltpu.VMEM((C1, PBUF), jnp.float32),    # padded conv2 input
        ],
        compiler_params=pltpu.CompilerParams(
            dimension_semantics=("parallel",)),     # v7x: one image per core
    )(x_flat, kparams["w1"], kparams["b1"], kparams["w2"], kparams["b2"],
      kparams["wc1"], kparams["bc1"], kparams["wc2"], kparams["bc2"],
      kparams["xmask"])
    return out[:, 0, :]


# ---------------------------------------------------------------------------
# Parameter construction (PyTorch-layout init) + one-time kernel-layout prep.
# ---------------------------------------------------------------------------
def init_torch_params(key):
    ks = jax.random.split(key, 8)

    def u(k, shape, fan_in):
        bound = 1.0 / (float(fan_in) ** 0.5)
        return jax.random.uniform(k, shape, jnp.float32, -bound, bound)

    return dict(
        conv1_w=u(ks[0], (C1, CIN, 3, 3), 9 * CIN), conv1_b=u(ks[1], (C1,), 9 * CIN),
        conv2_w=u(ks[2], (C2, C1, 3, 3), 9 * C1),   conv2_b=u(ks[3], (C2,), 9 * C1),
        fc1_w=u(ks[4], (HID, C2 * HW), C2 * HW),    fc1_b=u(ks[5], (HID,), C2 * HW),
        fc2_w=u(ks[6], (NCLS, HID), HID),           fc2_b=u(ks[7], (NCLS,), HID),
    )


def prep_kernel_params(p):
    # conv weights [Cout, Cin, kh, kw] -> tap-major [9, Cout, Cin]
    w1 = jnp.transpose(p["conv1_w"], (2, 3, 0, 1)).reshape(9, C1, CIN)
    w2 = jnp.transpose(p["conv2_w"], (2, 3, 0, 1)).reshape(9, C2, C1)
    # fc1 weight [HID, C2*HW] -> [C2, HW, HID] matching the (C, H*W) flatten
    wc1 = p["fc1_w"].T.reshape(C2, HW, HID)
    # x-boundary validity masks per kw (y-boundary is handled by the zero halo)
    xs = jnp.arange(HW, dtype=jnp.int32) % W
    xmask = jnp.stack(
        [((xs + kw - 1 >= 0) & (xs + kw - 1 < W)).astype(jnp.float32)
         for kw in range(3)], axis=0)
    return dict(
        w1=w1, b1=p["conv1_b"].reshape(C1, 1),
        w2=w2, b2=p["conv2_b"].reshape(C2, 1),
        wc1=wc1, bc1=p["fc1_b"].reshape(1, HID),
        wc2=p["fc2_w"].T, bc2=p["fc2_b"].reshape(1, NCLS),
        xmask=xmask,
    )


# ---------------------------------------------------------------------------
# Pure-JAX reference (PyTorch semantics) for a correctness check.
# ---------------------------------------------------------------------------
def bottomnet_reference(p, x):
    hp = lax.Precision.HIGHEST
    y = lax.conv_general_dilated(
        x, p["conv1_w"], (1, 1), "SAME",
        dimension_numbers=("NCHW", "OIHW", "NCHW"), precision=hp)
    y = jnp.maximum(y + p["conv1_b"][None, :, None, None], 0.0)
    y = lax.conv_general_dilated(
        y, p["conv2_w"], (1, 1), "SAME",
        dimension_numbers=("NCHW", "OIHW", "NCHW"), precision=hp)
    y = jnp.maximum(y + p["conv2_b"][None, :, None, None], 0.0)
    feat = y.reshape(y.shape[0], -1)                       # (C, H, W) flatten
    z = jnp.maximum(jnp.dot(feat, p["fc1_w"].T, precision=hp) + p["fc1_b"], 0.0)
    return jnp.dot(z, p["fc2_w"].T, precision=hp) + p["fc2_b"]


if __name__ == "__main__":
    key = jax.random.PRNGKey(0)
    pkey, xkey = jax.random.split(key)
    torch_params = init_torch_params(pkey)
    kernel_params = prep_kernel_params(torch_params)

    x = jax.random.normal(xkey, (N, CIN, H, W), jnp.float32)   # NCHW, like PyTorch

    out = bottomnet_forward(kernel_params, x)
    out = jax.block_until_ready(out)

    assert out.shape == (N, NCLS), out.shape
    assert bool(jnp.all(jnp.isfinite(out)))

    ref = bottomnet_reference(torch_params, x)
    assert bool(jnp.allclose(out, ref, atol=3e-2, rtol=3e-2)), (
        "max abs diff", float(jnp.max(jnp.abs(out - ref))))

    print("KERNEL_OK")
</pallas_src>

<mosaic_0001>
module attributes {stable_mosaic.version = 11 : i64} {
  func.func @_bottomnet_kernel(%arg0: i32, %arg1: memref<1x4x256xf32, #tpu.memory_space<vmem>>, %arg2: memref<9x8x4xf32, #tpu.memory_space<vmem>>, %arg3: memref<8x1xf32, #tpu.memory_space<vmem>>, %arg4: memref<9x8x8xf32, #tpu.memory_space<vmem>>, %arg5: memref<8x1xf32, #tpu.memory_space<vmem>>, %arg6: memref<8x256x32xf32, #tpu.memory_space<vmem>>, %arg7: memref<1x32xf32, #tpu.memory_space<vmem>>, %arg8: memref<32x10xf32, #tpu.memory_space<vmem>>, %arg9: memref<1x10xf32, #tpu.memory_space<vmem>>, %arg10: memref<3x256xf32, #tpu.memory_space<vmem>>, %arg11: memref<1x1x10xf32, #tpu.memory_space<vmem>>, %arg12: memref<4x512xf32, #tpu.memory_space<vmem>>, %arg13: memref<8x512xf32, #tpu.memory_space<vmem>>) attributes {dimension_semantics = [#tpu.dimension_semantics<parallel>], iteration_bounds = array<i64: 2>, scalar_prefetch = 0 : i64, scratch_operands = 2 : i64, tpu.core_type = #tpu.core_type<tc>, window_params = [{transform_indices = @transform_0, window_bounds = array<i64: 1, 4, 256>}, {pipeline_mode = #tpu.pipeline_mode<synchronous>, transform_indices = @transform_1, window_bounds = array<i64: 9, 8, 4>}, {pipeline_mode = #tpu.pipeline_mode<synchronous>, transform_indices = @transform_2, window_bounds = array<i64: 8, 1>}, {pipeline_mode = #tpu.pipeline_mode<synchronous>, transform_indices = @transform_3, window_bounds = array<i64: 9, 8, 8>}, {pipeline_mode = #tpu.pipeline_mode<synchronous>, transform_indices = @transform_4, window_bounds = array<i64: 8, 1>}, {pipeline_mode = #tpu.pipeline_mode<synchronous>, transform_indices = @transform_5, window_bounds = array<i64: 8, 256, 32>}, {pipeline_mode = #tpu.pipeline_mode<synchronous>, transform_indices = @transform_6, window_bounds = array<i64: 1, 32>}, {pipeline_mode = #tpu.pipeline_mode<synchronous>, transform_indices = @transform_7, window_bounds = array<i64: 32, 10>}, {pipeline_mode = #tpu.pipeline_mode<synchronous>, transform_indices = @transform_8, window_bounds = array<i64: 1, 10>}, {pipeline_mode = #tpu.pipeline_mode<synchronous>, transform_indices = @transform_9, window_bounds = array<i64: 3, 256>}, {transform_indices = @transform_10, window_bounds = array<i64: 1, 1, 10>}]} {
    %cst = arith.constant 0.000000e+00 : f32
    %0 = vector.broadcast %cst : f32 to vector<4x128xf32>
    %c0 = arith.constant 0 : index
    %c0_0 = arith.constant 0 : index
    %1 = vector.load %arg12[%c0, %c0_0] : memref<4x512xf32, #tpu.memory_space<vmem>>, vector<4x128xf32>
    tpu.vector_store %arg12[%c0, %c0_0], %0 {strides = array<i32>} : memref<4x512xf32, #tpu.memory_space<vmem>>, vector<4x128xf32>,
    %c0_1 = arith.constant 0 : index
    %c384 = arith.constant 384 : index
    %2 = vector.load %arg12[%c0_1, %c384] : memref<4x512xf32, #tpu.memory_space<vmem>>, vector<4x128xf32>
    tpu.vector_store %arg12[%c0_1, %c384], %0 {strides = array<i32>} : memref<4x512xf32, #tpu.memory_space<vmem>>, vector<4x128xf32>,
    %c0_2 = arith.constant 0 : index
    %c0_3 = arith.constant 0 : index
    %c0_4 = arith.constant 0 : index
    %3 = vector.load %arg1[%c0_2, %c0_3, %c0_4] : memref<1x4x256xf32, #tpu.memory_space<vmem>>, vector<1x4x256xf32>
    %4 = vector.shape_cast %3 : vector<1x4x256xf32> to vector<4x256xf32>
    %c0_5 = arith.constant 0 : index
    %c128 = arith.constant 128 : index
    %5 = vector.load %arg12[%c0_5, %c128] : memref<4x512xf32, #tpu.memory_space<vmem>>, vector<4x256xf32>
    tpu.vector_store %arg12[%c0_5, %c128], %4 {strides = array<i32>} : memref<4x512xf32, #tpu.memory_space<vmem>>, vector<4x256xf32>,
    %c0_6 = arith.constant 0 : index
    %c0_7 = arith.constant 0 : index
    %6 = vector.load %arg3[%c0_6, %c0_7] : memref<8x1xf32, #tpu.memory_space<vmem>>, vector<8x1xf32>
    %7 = vector.shape_cast %6 : vector<8x1xf32> to vector<8x1xf32>
    %8 = vector.broadcast %7 : vector<8x1xf32> to vector<8x256xf32>
    %c0_8 = arith.constant 0 : index
    %c111 = arith.constant 111 : index
    %9 = vector.load %arg12[%c0_8, %c111] : memref<4x512xf32, #tpu.memory_space<vmem>>, vector<4x256xf32>
    %c0_9 = arith.constant 0 : index
    %c0_10 = arith.constant 0 : index
    %10 = vector.load %arg10[%c0_9, %c0_10] : memref<3x256xf32, #tpu.memory_space<vmem>>, vector<1x256xf32>
    %11 = vector.broadcast %10 : vector<1x256xf32> to vector<4x256xf32>
    %12 = arith.mulf %9, %11 : vector<4x256xf32>
    %c0_11 = arith.constant 0 : index
    %c0_12 = arith.constant 0 : index
    %c0_13 = arith.constant 0 : index
    %13 = vector.load %arg2[%c0_11, %c0_12, %c0_13] : memref<9x8x4xf32, #tpu.memory_space<vmem>>, vector<1x8x4xf32>
    %14 = vector.shape_cast %13 : vector<1x8x4xf32> to vector<8x4xf32>
    %cst_14 = arith.constant dense<0.000000e+00> : vector<8x256xf32>
    %15 = tpu.matmul %14, %12, %cst_14 {dimension_numbers = #tpu.dot_dimension_numbers<[1], [0], [0], [1], [0, 0, 1, 1], [], []>} : vector<8x4xf32>, vector<4x256xf32>, vector<8x256xf32> -> vector<8x256xf32>
    %16 = arith.addf %8, %15 : vector<8x256xf32>
    %c0_15 = arith.constant 0 : index
    %c112 = arith.constant 112 : index
    %17 = vector.load %arg12[%c0_15, %c112] : memref<4x512xf32, #tpu.memory_space<vmem>>, vector<4x256xf32>
    %c1 = arith.constant 1 : index
    %c0_16 = arith.constant 0 : index
    %c0_17 = arith.constant 0 : index
    %18 = vector.load %arg2[%c1, %c0_16, %c0_17] : memref<9x8x4xf32, #tpu.memory_space<vmem>>, vector<1x8x4xf32>
    %19 = vector.shape_cast %18 : vector<1x8x4xf32> to vector<8x4xf32>
    %cst_18 = arith.constant dense<0.000000e+00> : vector<8x256xf32>
    %20 = tpu.matmul %19, %17, %cst_18 {dimension_numbers = #tpu.dot_dimension_numbers<[1], [0], [0], [1], [0, 0, 1, 1], [], []>} : vector<8x4xf32>, vector<4x256xf32>, vector<8x256xf32> -> vector<8x256xf32>
    %21 = arith.addf %16, %20 : vector<8x256xf32>
    %c0_19 = arith.constant 0 : index
    %c113 = arith.constant 113 : index
    %22 = vector.load %arg12[%c0_19, %c113] : memref<4x512xf32, #tpu.memory_space<vmem>>, vector<4x256xf32>
    %c2 = arith.constant 2 : index
    %c0_20 = arith.constant 0 : index
    %23 = vector.load %arg10[%c2, %c0_20] : memref<3x256xf32, #tpu.memory_space<vmem>>, vector<1x256xf32>
    %24 = vector.broadcast %23 : vector<1x256xf32> to vector<4x256xf32>
    %25 = arith.mulf %22, %24 : vector<4x256xf32>
    %c2_21 = arith.constant 2 : index
    %c0_22 = arith.constant 0 : index
    %c0_23 = arith.constant 0 : index
    %26 = vector.load %arg2[%c2_21, %c0_22, %c0_23] : memref<9x8x4xf32, #tpu.memory_space<vmem>>, vector<1x8x4xf32>
    %27 = vector.shape_cast %26 : vector<1x8x4xf32> to vector<8x4xf32>
    %cst_24 = arith.constant dense<0.000000e+00> : vector<8x256xf32>
    %28 = tpu.matmul %27, %25, %cst_24 {dimension_numbers = #tpu.dot_dimension_numbers<[1], [0], [0], [1], [0, 0, 1, 1], [], []>} : vector<8x4xf32>, vector<4x256xf32>, vector<8x256xf32> -> vector<8x256xf32>
    %29 = arith.addf %21, %28 : vector<8x256xf32>
    %c0_25 = arith.constant 0 : index
    %c127 = arith.constant 127 : index
    %30 = vector.load %arg12[%c0_25, %c127] : memref<4x512xf32, #tpu.memory_space<vmem>>, vector<4x256xf32>
    %c0_26 = arith.constant 0 : index
    %c0_27 = arith.constant 0 : index
    %31 = vector.load %arg10[%c0_26, %c0_27] : memref<3x256xf32, #tpu.memory_space<vmem>>, vector<1x256xf32>
    %32 = vector.broadcast %31 : vector<1x256xf32> to vector<4x256xf32>
    %33 = arith.mulf %30, %32 : vector<4x256xf32>
    %c3 = arith.constant 3 : index
    %c0_28 = arith.constant 0 : index
    %c0_29 = arith.constant 0 : index
    %34 = vector.load %arg2[%c3, %c0_28, %c0_29] : memref<9x8x4xf32, #tpu.memory_space<vmem>>, vector<1x8x4xf32>
    %35 = vector.shape_cast %34 : vector<1x8x4xf32> to vector<8x4xf32>
    %cst_30 = arith.constant dense<0.000000e+00> : vector<8x256xf32>
    %36 = tpu.matmul %35, %33, %cst_30 {dimension_numbers = #tpu.dot_dimension_numbers<[1], [0], [0], [1], [0, 0, 1, 1], [], []>} : vector<8x4xf32>, vector<4x256xf32>, vector<8x256xf32> -> vector<8x256xf32>
    %37 = arith.addf %29, %36 : vector<8x256xf32>
    %c0_31 = arith.constant 0 : index
    %c128_32 = arith.constant 128 : index
    %38 = vector.load %arg12[%c0_31, %c128_32] : memref<4x512xf32, #tpu.memory_space<vmem>>, vector<4x256xf32>
    %c4 = arith.constant 4 : index
    %c0_33 = arith.constant 0 : index
    %c0_34 = arith.constant 0 : index
    %39 = vector.load %arg2[%c4, %c0_33, %c0_34] : memref<9x8x4xf32, #tpu.memory_space<vmem>>, vector<1x8x4xf32>
    %40 = vector.shape_cast %39 : vector<1x8x4xf32> to vector<8x4xf32>
    %cst_35 = arith.constant dense<0.000000e+00> : vector<8x256xf32>
    %41 = tpu.matmul %40, %38, %cst_35 {dimension_numbers = #tpu.dot_dimension_numbers<[1], [0], [0], [1], [0, 0, 1, 1], [], []>} : vector<8x4xf32>, vector<4x256xf32>, vector<8x256xf32> -> vector<8x256xf32>
    %42 = arith.addf %37, %41 : vector<8x256xf32>
    %c0_36 = arith.constant 0 : index
    %c129 = arith.constant 129 : index
    %43 = vector.load %arg12[%c0_36, %c129] : memref<4x512xf32, #tpu.memory_space<vmem>>, vector<4x256xf32>
    %c2_37 = arith.constant 2 : index
    %c0_38 = arith.constant 0 : index
    %44 = vector.load %arg10[%c2_37, %c0_38] : memref<3x256xf32, #tpu.memory_space<vmem>>, vector<1x256xf32>
    %45 = vector.broadcast %44 : vector<1x256xf32> to vector<4x256xf32>
    %46 = arith.mulf %43, %45 : vector<4x256xf32>
    %c5 = arith.constant 5 : index
    %c0_39 = arith.constant 0 : index
    %c0_40 = arith.constant 0 : index
    %47 = vector.load %arg2[%c5, %c0_39, %c0_40] : memref<9x8x4xf32, #tpu.memory_space<vmem>>, vector<1x8x4xf32>
    %48 = vector.shape_cast %47 : vector<1x8x4xf32> to vector<8x4xf32>
    %cst_41 = arith.constant dense<0.000000e+00> : vector<8x256xf32>
    %49 = tpu.matmul %48, %46, %cst_41 {dimension_numbers = #tpu.dot_dimension_numbers<[1], [0], [0], [1], [0, 0, 1, 1], [], []>} : vector<8x4xf32>, vector<4x256xf32>, vector<8x256xf32> -> vector<8x256xf32>
    %50 = arith.addf %42, %49 : vector<8x256xf32>
    %c0_42 = arith.constant 0 : index
    %c143 = arith.constant 143 : index
    %51 = vector.load %arg12[%c0_42, %c143] : memref<4x512xf32, #tpu.memory_space<vmem>>, vector<4x256xf32>
    %c0_43 = arith.constant 0 : index
    %c0_44 = arith.constant 0 : index
    %52 = vector.load %arg10[%c0_43, %c0_44] : memref<3x256xf32, #tpu.memory_space<vmem>>, vector<1x256xf32>
    %53 = vector.broadcast %52 : vector<1x256xf32> to vector<4x256xf32>
    %54 = arith.mulf %51, %53 : vector<4x256xf32>
    %c6 = arith.constant 6 : index
    %c0_45 = arith.constant 0 : index
    %c0_46 = arith.constant 0 : index
    %55 = vector.load %arg2[%c6, %c0_45, %c0_46] : memref<9x8x4xf32, #tpu.memory_space<vmem>>, vector<1x8x4xf32>
    %56 = vector.shape_cast %55 : vector<1x8x4xf32> to vector<8x4xf32>
    %cst_47 = arith.constant dense<0.000000e+00> : vector<8x256xf32>
    %57 = tpu.matmul %56, %54, %cst_47 {dimension_numbers = #tpu.dot_dimension_numbers<[1], [0], [0], [1], [0, 0, 1, 1], [], []>} : vector<8x4xf32>, vector<4x256xf32>, vector<8x256xf32> -> vector<8x256xf32>
    %58 = arith.addf %50, %57 : vector<8x256xf32>
    %c0_48 = arith.constant 0 : index
    %c144 = arith.constant 144 : index
    %59 = vector.load %arg12[%c0_48, %c144] : memref<4x512xf32, #tpu.memory_space<vmem>>, vector<4x256xf32>
    %c7 = arith.constant 7 : index
    %c0_49 = arith.constant 0 : index
    %c0_50 = arith.constant 0 : index
    %60 = vector.load %arg2[%c7, %c0_49, %c0_50] : memref<9x8x4xf32, #tpu.memory_space<vmem>>, vector<1x8x4xf32>
    %61 = vector.shape_cast %60 : vector<1x8x4xf32> to vector<8x4xf32>
    %cst_51 = arith.constant dense<0.000000e+00> : vector<8x256xf32>
    %62 = tpu.matmul %61, %59, %cst_51 {dimension_numbers = #tpu.dot_dimension_numbers<[1], [0], [0], [1], [0, 0, 1, 1], [], []>} : vector<8x4xf32>, vector<4x256xf32>, vector<8x256xf32> -> vector<8x256xf32>
    %63 = arith.addf %58, %62 : vector<8x256xf32>
    %c0_52 = arith.constant 0 : index
    %c145 = arith.constant 145 : index
    %64 = vector.load %arg12[%c0_52, %c145] : memref<4x512xf32, #tpu.memory_space<vmem>>, vector<4x256xf32>
    %c2_53 = arith.constant 2 : index
    %c0_54 = arith.constant 0 : index
    %65 = vector.load %arg10[%c2_53, %c0_54] : memref<3x256xf32, #tpu.memory_space<vmem>>, vector<1x256xf32>
    %66 = vector.broadcast %65 : vector<1x256xf32> to vector<4x256xf32>
    %67 = arith.mulf %64, %66 : vector<4x256xf32>
    %c8 = arith.constant 8 : index
    %c0_55 = arith.constant 0 : index
    %c0_56 = arith.constant 0 : index
    %68 = vector.load %arg2[%c8, %c0_55, %c0_56] : memref<9x8x4xf32, #tpu.memory_space<vmem>>, vector<1x8x4xf32>
    %69 = vector.shape_cast %68 : vector<1x8x4xf32> to vector<8x4xf32>
    %cst_57 = arith.constant dense<0.000000e+00> : vector<8x256xf32>
    %70 = tpu.matmul %69, %67, %cst_57 {dimension_numbers = #tpu.dot_dimension_numbers<[1], [0], [0], [1], [0, 0, 1, 1], [], []>} : vector<8x4xf32>, vector<4x256xf32>, vector<8x256xf32> -> vector<8x256xf32>
    %71 = arith.addf %63, %70 : vector<8x256xf32>
    %cst_58 = arith.constant 0.000000e+00 : f32
    %72 = vector.broadcast %cst_58 : f32 to vector<8x256xf32>
    %73 = arith.maximumf %71, %72 : vector<8x256xf32>
    %cst_59 = arith.constant 0.000000e+00 : f32
    %74 = vector.broadcast %cst_59 : f32 to vector<8x128xf32>
    %c0_60 = arith.constant 0 : index
    %c0_61 = arith.constant 0 : index
    %75 = vector.load %arg13[%c0_60, %c0_61] : memref<8x512xf32, #tpu.memory_space<vmem>>, vector<8x128xf32>
    tpu.vector_store %arg13[%c0_60, %c0_61], %74 {strides = array<i32>} : memref<8x512xf32, #tpu.memory_space<vmem>>, vector<8x128xf32>,
    %c0_62 = arith.constant 0 : index
    %c384_63 = arith.constant 384 : index
    %76 = vector.load %arg13[%c0_62, %c384_63] : memref<8x512xf32, #tpu.memory_space<vmem>>, vector<8x128xf32>
    tpu.vector_store %arg13[%c0_62, %c384_63], %74 {strides = array<i32>} : memref<8x512xf32, #tpu.memory_space<vmem>>, vector<8x128xf32>,
    %c0_64 = arith.constant 0 : index
    %c128_65 = arith.constant 128 : index
    %77 = vector.load %arg13[%c0_64, %c128_65] : memref<8x512xf32, #tpu.memory_space<vmem>>, vector<8x256xf32>
    tpu.vector_store %arg13[%c0_64, %c128_65], %73 {strides = array<i32>} : memref<8x512xf32, #tpu.memory_space<vmem>>, vector<8x256xf32>,
    %c0_66 = arith.constant 0 : index
    %c0_67 = arith.constant 0 : index
    %78 = vector.load %arg5[%c0_66, %c0_67] : memref<8x1xf32, #tpu.memory_space<vmem>>, vector<8x1xf32>
    %79 = vector.shape_cast %78 : vector<8x1xf32> to vector<8x1xf32>
    %80 = vector.broadcast %79 : vector<8x1xf32> to vector<8x256xf32>
    %c0_68 = arith.constant 0 : index
    %c111_69 = arith.constant 111 : index
    %81 = vector.load %arg13[%c0_68, %c111_69] : memref<8x512xf32, #tpu.memory_space<vmem>>, vector<8x256xf32>
    %c0_70 = arith.constant 0 : index
    %c0_71 = arith.constant 0 : index
    %82 = vector.load %arg10[%c0_70, %c0_71] : memref<3x256xf32, #tpu.memory_space<vmem>>, vector<1x256xf32>
    %83 = vector.broadcast %82 : vector<1x256xf32> to vector<8x256xf32>
    %84 = arith.mulf %81, %83 : vector<8x256xf32>
    %c0_72 = arith.constant 0 : index
    %c0_73 = arith.constant 0 : index
    %c0_74 = arith.constant 0 : index
    %85 = vector.load %arg4[%c0_72, %c0_73, %c0_74] : memref<9x8x8xf32, #tpu.memory_space<vmem>>, vector<1x8x8xf32>
    %86 = vector.shape_cast %85 : vector<1x8x8xf32> to vector<8x8xf32>
    %cst_75 = arith.constant dense<0.000000e+00> : vector<8x256xf32>
    %87 = tpu.matmul %86, %84, %cst_75 {dimension_numbers = #tpu.dot_dimension_numbers<[1], [0], [0], [1], [0, 0, 1, 1], [], []>} : vector<8x8xf32>, vector<8x256xf32>, vector<8x256xf32> -> vector<8x256xf32>
    %88 = arith.addf %80, %87 : vector<8x256xf32>
    %c0_76 = arith.constant 0 : index
    %c112_77 = arith.constant 112 : index
    %89 = vector.load %arg13[%c0_76, %c112_77] : memref<8x512xf32, #tpu.memory_space<vmem>>, vector<8x256xf32>
    %c1_78 = arith.constant 1 : index
    %c0_79 = arith.constant 0 : index
    %c0_80 = arith.constant 0 : index
    %90 = vector.load %arg4[%c1_78, %c0_79, %c0_80] : memref<9x8x8xf32, #tpu.memory_space<vmem>>, vector<1x8x8xf32>
    %91 = vector.shape_cast %90 : vector<1x8x8xf32> to vector<8x8xf32>
    %cst_81 = arith.constant dense<0.000000e+00> : vector<8x256xf32>
    %92 = tpu.matmul %91, %89, %cst_81 {dimension_numbers = #tpu.dot_dimension_numbers<[1], [0], [0], [1], [0, 0, 1, 1], [], []>} : vector<8x8xf32>, vector<8x256xf32>, vector<8x256xf32> -> vector<8x256xf32>
    %93 = arith.addf %88, %92 : vector<8x256xf32>
    %c0_82 = arith.constant 0 : index
    %c113_83 = arith.constant 113 : index
    %94 = vector.load %arg13[%c0_82, %c113_83] : memref<8x512xf32, #tpu.memory_space<vmem>>, vector<8x256xf32>
    %c2_84 = arith.constant 2 : index
    %c0_85 = arith.constant 0 : index
    %95 = vector.load %arg10[%c2_84, %c0_85] : memref<3x256xf32, #tpu.memory_space<vmem>>, vector<1x256xf32>
    %96 = vector.broadcast %95 : vector<1x256xf32> to vector<8x256xf32>
    %97 = arith.mulf %94, %96 : vector<8x256xf32>
    %c2_86 = arith.constant 2 : index
    %c0_87 = arith.constant 0 : index
    %c0_88 = arith.constant 0 : index
    %98 = vector.load %arg4[%c2_86, %c0_87, %c0_88] : memref<9x8x8xf32, #tpu.memory_space<vmem>>, vector<1x8x8xf32>
    %99 = vector.shape_cast %98 : vector<1x8x8xf32> to vector<8x8xf32>
    %cst_89 = arith.constant dense<0.000000e+00> : vector<8x256xf32>
    %100 = tpu.matmul %99, %97, %cst_89 {dimension_numbers = #tpu.dot_dimension_numbers<[1], [0], [0], [1], [0, 0, 1, 1], [], []>} : vector<8x8xf32>, vector<8x256xf32>, vector<8x256xf32> -> vector<8x256xf32>
    %101 = arith.addf %93, %100 : vector<8x256xf32>
    %c0_90 = arith.constant 0 : index
    %c127_91 = arith.constant 127 : index
    %102 = vector.load %arg13[%c0_90, %c127_91] : memref<8x512xf32, #tpu.memory_space<vmem>>, vector<8x256xf32>
    %c0_92 = arith.constant 0 : index
    %c0_93 = arith.constant 0 : index
    %103 = vector.load %arg10[%c0_92, %c0_93] : memref<3x256xf32, #tpu.memory_space<vmem>>, vector<1x256xf32>
    %104 = vector.broadcast %103 : vector<1x256xf32> to vector<8x256xf32>
    %105 = arith.mulf %102, %104 : vector<8x256xf32>
    %c3_94 = arith.constant 3 : index
    %c0_95 = arith.constant 0 : index
    %c0_96 = arith.constant 0 : index
    %106 = vector.load %arg4[%c3_94, %c0_95, %c0_96] : memref<9x8x8xf32, #tpu.memory_space<vmem>>, vector<1x8x8xf32>
    %107 = vector.shape_cast %106 : vector<1x8x8xf32> to vector<8x8xf32>
    %cst_97 = arith.constant dense<0.000000e+00> : vector<8x256xf32>
    %108 = tpu.matmul %107, %105, %cst_97 {dimension_numbers = #tpu.dot_dimension_numbers<[1], [0], [0], [1], [0, 0, 1, 1], [], []>} : vector<8x8xf32>, vector<8x256xf32>, vector<8x256xf32> -> vector<8x256xf32>
    %109 = arith.addf %101, %108 : vector<8x256xf32>
    %c0_98 = arith.constant 0 : index
    %c128_99 = arith.constant 128 : index
    %110 = vector.load %arg13[%c0_98, %c128_99] : memref<8x512xf32, #tpu.memory_space<vmem>>, vector<8x256xf32>
    %c4_100 = arith.constant 4 : index
    %c0_101 = arith.constant 0 : index
    %c0_102 = arith.constant 0 : index
    %111 = vector.load %arg4[%c4_100, %c0_101, %c0_102] : memref<9x8x8xf32, #tpu.memory_space<vmem>>, vector<1x8x8xf32>
    %112 = vector.shape_cast %111 : vector<1x8x8xf32> to vector<8x8xf32>
    %cst_103 = arith.constant dense<0.000000e+00> : vector<8x256xf32>
    %113 = tpu.matmul %112, %110, %cst_103 {dimension_numbers = #tpu.dot_dimension_numbers<[1], [0], [0], [1], [0, 0, 1, 1], [], []>} : vector<8x8xf32>, vector<8x256xf32>, vector<8x256xf32> -> vector<8x256xf32>
    %114 = arith.addf %109, %113 : vector<8x256xf32>
    %c0_104 = arith.constant 0 : index
    %c129_105 = arith.constant 129 : index
    %115 = vector.load %arg13[%c0_104, %c129_105] : memref<8x512xf32, #tpu.memory_space<vmem>>, vector<8x256xf32>
    %c2_106 = arith.constant 2 : index
    %c0_107 = arith.constant 0 : index
    %116 = vector.load %arg10[%c2_106, %c0_107] : memref<3x256xf32, #tpu.memory_space<vmem>>, vector<1x256xf32>
    %117 = vector.broadcast %116 : vector<1x256xf32> to vector<8x256xf32>
    %118 = arith.mulf %115, %117 : vector<8x256xf32>
    %c5_108 = arith.constant 5 : index
    %c0_109 = arith.constant 0 : index
    %c0_110 = arith.constant 0 : index
    %119 = vector.load %arg4[%c5_108, %c0_109, %c0_110] : memref<9x8x8xf32, #tpu.memory_space<vmem>>, vector<1x8x8xf32>
    %120 = vector.shape_cast %119 : vector<1x8x8xf32> to vector<8x8xf32>
    %cst_111 = arith.constant dense<0.000000e+00> : vector<8x256xf32>
    %121 = tpu.matmul %120, %118, %cst_111 {dimension_numbers = #tpu.dot_dimension_numbers<[1], [0], [0], [1], [0, 0, 1, 1], [], []>} : vector<8x8xf32>, vector<8x256xf32>, vector<8x256xf32> -> vector<8x256xf32>
    %122 = arith.addf %114, %121 : vector<8x256xf32>
    %c0_112 = arith.constant 0 : index
    %c143_113 = arith.constant 143 : index
    %123 = vector.load %arg13[%c0_112, %c143_113] : memref<8x512xf32, #tpu.memory_space<vmem>>, vector<8x256xf32>
    %c0_114 = arith.constant 0 : index
    %c0_115 = arith.constant 0 : index
    %124 = vector.load %arg10[%c0_114, %c0_115] : memref<3x256xf32, #tpu.memory_space<vmem>>, vector<1x256xf32>
    %125 = vector.broadcast %124 : vector<1x256xf32> to vector<8x256xf32>
    %126 = arith.mulf %123, %125 : vector<8x256xf32>
    %c6_116 = arith.constant 6 : index
    %c0_117 = arith.constant 0 : index
    %c0_118 = arith.constant 0 : index
    %127 = vector.load %arg4[%c6_116, %c0_117, %c0_118] : memref<9x8x8xf32, #tpu.memory_space<vmem>>, vector<1x8x8xf32>
    %128 = vector.shape_cast %127 : vector<1x8x8xf32> to vector<8x8xf32>
    %cst_119 = arith.constant dense<0.000000e+00> : vector<8x256xf32>
    %129 = tpu.matmul %128, %126, %cst_119 {dimension_numbers = #tpu.dot_dimension_numbers<[1], [0], [0], [1], [0, 0, 1, 1], [], []>} : vector<8x8xf32>, vector<8x256xf32>, vector<8x256xf32> -> vector<8x256xf32>
    %130 = arith.addf %122, %129 : vector<8x256xf32>
    %c0_120 = arith.constant 0 : index
    %c144_121 = arith.constant 144 : index
    %131 = vector.load %arg13[%c0_120, %c144_121] : memref<8x512xf32, #tpu.memory_space<vmem>>, vector<8x256xf32>
    %c7_122 = arith.constant 7 : index
    %c0_123 = arith.constant 0 : index
    %c0_124 = arith.constant 0 : index
    %132 = vector.load %arg4[%c7_122, %c0_123, %c0_124] : memref<9x8x8xf32, #tpu.memory_space<vmem>>, vector<1x8x8xf32>
    %133 = vector.shape_cast %132 : vector<1x8x8xf32> to vector<8x8xf32>
    %cst_125 = arith.constant dense<0.000000e+00> : vector<8x256xf32>
    %134 = tpu.matmul %133, %131, %cst_125 {dimension_numbers = #tpu.dot_dimension_numbers<[1], [0], [0], [1], [0, 0, 1, 1], [], []>} : vector<8x8xf32>, vector<8x256xf32>, vector<8x256xf32> -> vector<8x256xf32>
    %135 = arith.addf %130, %134 : vector<8x256xf32>
    %c0_126 = arith.constant 0 : index
    %c145_127 = arith.constant 145 : index
    %136 = vector.load %arg13[%c0_126, %c145_127] : memref<8x512xf32, #tpu.memory_space<vmem>>, vector<8x256xf32>
    %c2_128 = arith.constant 2 : index
    %c0_129 = arith.constant 0 : index
    %137 = vector.load %arg10[%c2_128, %c0_129] : memref<3x256xf32, #tpu.memory_space<vmem>>, vector<1x256xf32>
    %138 = vector.broadcast %137 : vector<1x256xf32> to vector<8x256xf32>
    %139 = arith.mulf %136, %138 : vector<8x256xf32>
    %c8_130 = arith.constant 8 : index
    %c0_131 = arith.constant 0 : index
    %c0_132 = arith.constant 0 : index
    %140 = vector.load %arg4[%c8_130, %c0_131, %c0_132] : memref<9x8x8xf32, #tpu.memory_space<vmem>>, vector<1x8x8xf32>
    %141 = vector.shape_cast %140 : vector<1x8x8xf32> to vector<8x8xf32>
    %cst_133 = arith.constant dense<0.000000e+00> : vector<8x256xf32>
    %142 = tpu.matmul %141, %139, %cst_133 {dimension_numbers = #tpu.dot_dimension_numbers<[1], [0], [0], [1], [0, 0, 1, 1], [], []>} : vector<8x8xf32>, vector<8x256xf32>, vector<8x256xf32> -> vector<8x256xf32>
    %143 = arith.addf %135, %142 : vector<8x256xf32>
    %cst_134 = arith.constant 0.000000e+00 : f32
    %144 = vector.broadcast %cst_134 : f32 to vector<8x256xf32>
    %145 = arith.maximumf %143, %144 : vector<8x256xf32>
    %c0_135 = arith.constant 0 : index
    %c0_136 = arith.constant 0 : index
    %146 = vector.load %arg7[%c0_135, %c0_136] : memref<1x32xf32, #tpu.memory_space<vmem>>, vector<1x32xf32>
    %147 = vector.extract_strided_slice %145 {offsets = [0, 0], sizes = [1, 256], strides = [1, 1]} : vector<8x256xf32> to vector<1x256xf32>
    %c0_137 = arith.constant 0 : index
    %c0_138 = arith.constant 0 : index
    %c0_139 = arith.constant 0 : index
    %148 = vector.load %arg6[%c0_137, %c0_138, %c0_139] : memref<8x256x32xf32, #tpu.memory_space<vmem>>, vector<1x256x32xf32>
    %149 = vector.shape_cast %148 : vector<1x256x32xf32> to vector<256x32xf32>
    %cst_140 = arith.constant dense<0.000000e+00> : vector<1x32xf32>
    %150 = tpu.matmul %147, %149, %cst_140 {dimension_numbers = #tpu.dot_dimension_numbers<[1], [0], [0], [1], [0, 0, 1, 1], [], []>} : vector<1x256xf32>, vector<256x32xf32>, vector<1x32xf32> -> vector<1x32xf32>
    %151 = arith.addf %146, %150 : vector<1x32xf32>
    %152 = vector.extract_strided_slice %145 {offsets = [1, 0], sizes = [1, 256], strides = [1, 1]} : vector<8x256xf32> to vector<1x256xf32>
    %c1_141 = arith.constant 1 : index
    %c0_142 = arith.constant 0 : index
    %c0_143 = arith.constant 0 : index
    %153 = vector.load %arg6[%c1_141, %c0_142, %c0_143] : memref<8x256x32xf32, #tpu.memory_space<vmem>>, vector<1x256x32xf32>
    %154 = vector.shape_cast %153 : vector<1x256x32xf32> to vector<256x32xf32>
    %cst_144 = arith.constant dense<0.000000e+00> : vector<1x32xf32>
    %155 = tpu.matmul %152, %154, %cst_144 {dimension_numbers = #tpu.dot_dimension_numbers<[1], [0], [0], [1], [0, 0, 1, 1], [], []>} : vector<1x256xf32>, vector<256x32xf32>, vector<1x32xf32> -> vector<1x32xf32>
    %156 = arith.addf %151, %155 : vector<1x32xf32>
    %157 = vector.extract_strided_slice %145 {offsets = [2, 0], sizes = [1, 256], strides = [1, 1]} : vector<8x256xf32> to vector<1x256xf32>
    %c2_145 = arith.constant 2 : index
    %c0_146 = arith.constant 0 : index
    %c0_147 = arith.constant 0 : index
    %158 = vector.load %arg6[%c2_145, %c0_146, %c0_147] : memref<8x256x32xf32, #tpu.memory_space<vmem>>, vector<1x256x32xf32>
    %159 = vector.shape_cast %158 : vector<1x256x32xf32> to vector<256x32xf32>
    %cst_148 = arith.constant dense<0.000000e+00> : vector<1x32xf32>
    %160 = tpu.matmul %157, %159, %cst_148 {dimension_numbers = #tpu.dot_dimension_numbers<[1], [0], [0], [1], [0, 0, 1, 1], [], []>} : vector<1x256xf32>, vector<256x32xf32>, vector<1x32xf32> -> vector<1x32xf32>
    %161 = arith.addf %156, %160 : vector<1x32xf32>
    %162 = vector.extract_strided_slice %145 {offsets = [3, 0], sizes = [1, 256], strides = [1, 1]} : vector<8x256xf32> to vector<1x256xf32>
    %c3_149 = arith.constant 3 : index
    %c0_150 = arith.constant 0 : index
    %c0_151 = arith.constant 0 : index
    %163 = vector.load %arg6[%c3_149, %c0_150, %c0_151] : memref<8x256x32xf32, #tpu.memory_space<vmem>>, vector<1x256x32xf32>
    %164 = vector.shape_cast %163 : vector<1x256x32xf32> to vector<256x32xf32>
    %cst_152 = arith.constant dense<0.000000e+00> : vector<1x32xf32>
    %165 = tpu.matmul %162, %164, %cst_152 {dimension_numbers = #tpu.dot_dimension_numbers<[1], [0], [0], [1], [0, 0, 1, 1], [], []>} : vector<1x256xf32>, vector<256x32xf32>, vector<1x32xf32> -> vector<1x32xf32>
    %166 = arith.addf %161, %165 : vector<1x32xf32>
    %167 = vector.extract_strided_slice %145 {offsets = [4, 0], sizes = [1, 256], strides = [1, 1]} : vector<8x256xf32> to vector<1x256xf32>
    %c4_153 = arith.constant 4 : index
    %c0_154 = arith.constant 0 : index
    %c0_155 = arith.constant 0 : index
    %168 = vector.load %arg6[%c4_153, %c0_154, %c0_155] : memref<8x256x32xf32, #tpu.memory_space<vmem>>, vector<1x256x32xf32>
    %169 = vector.shape_cast %168 : vector<1x256x32xf32> to vector<256x32xf32>
    %cst_156 = arith.constant dense<0.000000e+00> : vector<1x32xf32>
    %170 = tpu.matmul %167, %169, %cst_156 {dimension_numbers = #tpu.dot_dimension_numbers<[1], [0], [0], [1], [0, 0, 1, 1], [], []>} : vector<1x256xf32>, vector<256x32xf32>, vector<1x32xf32> -> vector<1x32xf32>
    %171 = arith.addf %166, %170 : vector<1x32xf32>
    %172 = vector.extract_strided_slice %145 {offsets = [5, 0], sizes = [1, 256], strides = [1, 1]} : vector<8x256xf32> to vector<1x256xf32>
    %c5_157 = arith.constant 5 : index
    %c0_158 = arith.constant 0 : index
    %c0_159 = arith.constant 0 : index
    %173 = vector.load %arg6[%c5_157, %c0_158, %c0_159] : memref<8x256x32xf32, #tpu.memory_space<vmem>>, vector<1x256x32xf32>
    %174 = vector.shape_cast %173 : vector<1x256x32xf32> to vector<256x32xf32>
    %cst_160 = arith.constant dense<0.000000e+00> : vector<1x32xf32>
    %175 = tpu.matmul %172, %174, %cst_160 {dimension_numbers = #tpu.dot_dimension_numbers<[1], [0], [0], [1], [0, 0, 1, 1], [], []>} : vector<1x256xf32>, vector<256x32xf32>, vector<1x32xf32> -> vector<1x32xf32>
    %176 = arith.addf %171, %175 : vector<1x32xf32>
    %177 = vector.extract_strided_slice %145 {offsets = [6, 0], sizes = [1, 256], strides = [1, 1]} : vector<8x256xf32> to vector<1x256xf32>
    %c6_161 = arith.constant 6 : index
    %c0_162 = arith.constant 0 : index
    %c0_163 = arith.constant 0 : index
    %178 = vector.load %arg6[%c6_161, %c0_162, %c0_163] : memref<8x256x32xf32, #tpu.memory_space<vmem>>, vector<1x256x32xf32>
    %179 = vector.shape_cast %178 : vector<1x256x32xf32> to vector<256x32xf32>
    %cst_164 = arith.constant dense<0.000000e+00> : vector<1x32xf32>
    %180 = tpu.matmul %177, %179, %cst_164 {dimension_numbers = #tpu.dot_dimension_numbers<[1], [0], [0], [1], [0, 0, 1, 1], [], []>} : vector<1x256xf32>, vector<256x32xf32>, vector<1x32xf32> -> vector<1x32xf32>
    %181 = arith.addf %176, %180 : vector<1x32xf32>
    %182 = vector.extract_strided_slice %145 {offsets = [7, 0], sizes = [1, 256], strides = [1, 1]} : vector<8x256xf32> to vector<1x256xf32>
    %c7_165 = arith.constant 7 : index
    %c0_166 = arith.constant 0 : index
    %c0_167 = arith.constant 0 : index
    %183 = vector.load %arg6[%c7_165, %c0_166, %c0_167] : memref<8x256x32xf32, #tpu.memory_space<vmem>>, vector<1x256x32xf32>
    %184 = vector.shape_cast %183 : vector<1x256x32xf32> to vector<256x32xf32>
    %cst_168 = arith.constant dense<0.000000e+00> : vector<1x32xf32>
    %185 = tpu.matmul %182, %184, %cst_168 {dimension_numbers = #tpu.dot_dimension_numbers<[1], [0], [0], [1], [0, 0, 1, 1], [], []>} : vector<1x256xf32>, vector<256x32xf32>, vector<1x32xf32> -> vector<1x32xf32>
    %186 = arith.addf %181, %185 : vector<1x32xf32>
    %cst_169 = arith.constant 0.000000e+00 : f32
    %187 = vector.broadcast %cst_169 : f32 to vector<1x32xf32>
    %188 = arith.maximumf %186, %187 : vector<1x32xf32>
    %c0_170 = arith.constant 0 : index
    %c0_171 = arith.constant 0 : index
    %189 = vector.load %arg8[%c0_170, %c0_171] : memref<32x10xf32, #tpu.memory_space<vmem>>, vector<32x10xf32>
    %cst_172 = arith.constant dense<0.000000e+00> : vector<1x10xf32>
    %190 = tpu.matmul %188, %189, %cst_172 {dimension_numbers = #tpu.dot_dimension_numbers<[1], [0], [0], [1], [0, 0, 1, 1], [], []>} : vector<1x32xf32>, vector<32x10xf32>, vector<1x10xf32> -> vector<1x10xf32>
    %c0_173 = arith.constant 0 : index
    %c0_174 = arith.constant 0 : index
    %191 = vector.load %arg9[%c0_173, %c0_174] : memref<1x10xf32, #tpu.memory_space<vmem>>, vector<1x10xf32>
    %192 = arith.addf %190, %191 : vector<1x10xf32>
    %c0_175 = arith.constant 0 : index
    %c0_176 = arith.constant 0 : index
    %c0_177 = arith.constant 0 : index
    %193 = vector.load %arg11[%c0_175, %c0_176, %c0_177] : memref<1x1x10xf32, #tpu.memory_space<vmem>>, vector<1x1x10xf32>
    %194 = vector.shape_cast %193 : vector<1x1x10xf32> to vector<1x10xf32>
    %195 = vector.shape_cast %192 : vector<1x10xf32> to vector<1x1x10xf32>
    tpu.vector_store %arg11[%c0_175, %c0_176, %c0_177], %195 {strides = array<i32>} : memref<1x1x10xf32, #tpu.memory_space<vmem>>, vector<1x1x10xf32>,
    return
  }
  func.func @transform_0(%arg0: i32) -> (i32, i32, i32) {
    %c0_i32 = arith.constant 0 : i32
    %c0_i32_0 = arith.constant 0 : i32
    %c0_i32_1 = arith.constant 0 : i32
    return %arg0, %c0_i32, %c0_i32_0 : i32, i32, i32
  }
  func.func @transform_1(%arg0: i32) -> (i32, i32, i32) {
    %c0_i32 = arith.constant 0 : i32
    %c0_i32_0 = arith.constant 0 : i32
    %c0_i32_1 = arith.constant 0 : i32
    %c0_i32_2 = arith.constant 0 : i32
    return %c0_i32, %c0_i32_0, %c0_i32_1 : i32, i32, i32
  }
  func.func @transform_2(%arg0: i32) -> (i32, i32) {
    %c0_i32 = arith.constant 0 : i32
    %c0_i32_0 = arith.constant 0 : i32
    %c0_i32_1 = arith.constant 0 : i32
    return %c0_i32, %c0_i32_0 : i32, i32
  }
  func.func @transform_3(%arg0: i32) -> (i32, i32, i32) {
    %c0_i32 = arith.constant 0 : i32
    %c0_i32_0 = arith.constant 0 : i32
    %c0_i32_1 = arith.constant 0 : i32
    %c0_i32_2 = arith.constant 0 : i32
    return %c0_i32, %c0_i32_0, %c0_i32_1 : i32, i32, i32
  }
  func.func @transform_4(%arg0: i32) -> (i32, i32) {
    %c0_i32 = arith.constant 0 : i32
    %c0_i32_0 = arith.constant 0 : i32
    %c0_i32_1 = arith.constant 0 : i32
    return %c0_i32, %c0_i32_0 : i32, i32
  }
  func.func @transform_5(%arg0: i32) -> (i32, i32, i32) {
    %c0_i32 = arith.constant 0 : i32
    %c0_i32_0 = arith.constant 0 : i32
    %c0_i32_1 = arith.constant 0 : i32
    %c0_i32_2 = arith.constant 0 : i32
    return %c0_i32, %c0_i32_0, %c0_i32_1 : i32, i32, i32
  }
  func.func @transform_6(%arg0: i32) -> (i32, i32) {
    %c0_i32 = arith.constant 0 : i32
    %c0_i32_0 = arith.constant 0 : i32
    %c0_i32_1 = arith.constant 0 : i32
    return %c0_i32, %c0_i32_0 : i32, i32
  }
  func.func @transform_7(%arg0: i32) -> (i32, i32) {
    %c0_i32 = arith.constant 0 : i32
    %c0_i32_0 = arith.constant 0 : i32
    %c0_i32_1 = arith.constant 0 : i32
    return %c0_i32, %c0_i32_0 : i32, i32
  }
  func.func @transform_8(%arg0: i32) -> (i32, i32) {
    %c0_i32 = arith.constant 0 : i32
    %c0_i32_0 = arith.constant 0 : i32
    %c0_i32_1 = arith.constant 0 : i32
    return %c0_i32, %c0_i32_0 : i32, i32
  }
  func.func @transform_9(%arg0: i32) -> (i32, i32) {
    %c0_i32 = arith.constant 0 : i32
    %c0_i32_0 = arith.constant 0 : i32
    %c0_i32_1 = arith.constant 0 : i32
    return %c0_i32, %c0_i32_0 : i32, i32
  }
  func.func @transform_10(%arg0: i32) -> (i32, i32, i32) {
    %c0_i32 = arith.constant 0 : i32
    %c0_i32_0 = arith.constant 0 : i32
    %c0_i32_1 = arith.constant 0 : i32
    return %arg0, %c0_i32, %c0_i32_0 : i32, i32, i32
  }
}

</mosaic_0001>

<llo_original>
// kernel: bottomnet_forward.1
$region0: #{bottomnet_forward.1}
  #allocation0 [shape = 'u32[]', space=smem, size = 0x4, offset = 0x4, fixed_abs, tag = 'smem constant byte address 0x4 - core index']
  #allocation1 [shape = 'u32[144,128]{1,0:T(1,128)}', space=vmem, size = 0x12000, scoped, tag = 'internal scratch']
  #allocation2 [shape = 'f32[4,512]{1,0:T(4,128)}', space=vmem, size = 0x2000, scoped, tag = 'scratch operand']
  #allocation3 [shape = 'f32[8,512]{1,0:T(8,128)}', space=vmem, size = 0x4000, scoped, tag = 'scratch operand']
  %s0 = inlined_call_operand.vmem [shape: f32[2,4,256], index: 0, kind: input, shape index: {}]
  %s1 = inlined_call_operand.vmem [shape: f32[9,8,4], index: 1, kind: input, shape index: {}]
  %s2 = inlined_call_operand.vmem [shape: f32[8,1], index: 2, kind: input, shape index: {}]
  %s3 = inlined_call_operand.vmem [shape: f32[9,8,8], index: 3, kind: input, shape index: {}]
  %s4 = inlined_call_operand.vmem [shape: f32[8,1], index: 4, kind: input, shape index: {}]
  %s5 = inlined_call_operand.vmem [shape: f32[8,256,32], index: 5, kind: input, shape index: {}]
  %s6 = inlined_call_operand.vmem [shape: f32[1,32], index: 6, kind: input, shape index: {}]
  %s7 = inlined_call_operand.vmem [shape: f32[32,10], index: 7, kind: input, shape index: {}]
  %s8 = inlined_call_operand.vmem [shape: f32[1,10], index: 8, kind: input, shape index: {}]
  %s9 = inlined_call_operand.vmem [shape: f32[3,256], index: 9, kind: input, shape index: {}]
  %s10 = inlined_call_operand.hbm [shape: f32[2,1,10], index: 10, kind: output, shape index: {}]
  %s11 = sld [smem:[#allocation0]]
  $region73: #{bottomnet_forward.1} parent=0
    _
  %s13 = ssub.s32 1, %s11
  %s14 = scalar_select 0, %s13, %s11
  $region1: #{bottomnet_forward.1} parent=0
    #allocation4 [shape = 'u8[1024]{0}', space=vmem, size = 0x400, scoped, tag = 'output window, operand 0']
    #allocation5 [shape = 's32[2]{0}', space=sflag, size = 0x8, scoped, tag = 'scoped memory for bottomnet_forward.1']
    %15 = vsyncpa [#allocation5], 0
    %s16 = scalar_lea.sflag [#allocation5], 1
    %17 = vsyncpa %s16, 0
    loop: start=0, step=1, limit=4
    $region2: #{bottomnet_forward.1} parent=1 // loop_pre_header
      _
    $region3: #{bottomnet_forward.1} parent=1 // loop_header
      %s19 = sphi 0, %s23
      %p20 = scmp.ge.s32.totalorder %s19, 4
      %s29 = sphi 0, %s31
      %s32 = sphi 0, %s29
      %s33 = sphi 0, %s32
      %s49 = sphi 0, %s33
      %s53 = sphi 0, %s53
      %s55 = sphi 0, %s53
      %s56 = sphi 0, %s55
      %s70 = sphi 0, %s56
      %s74 = sphi 0, %s74
      %s76 = sphi 0, %s74
      %s77 = sphi 0, %s76
      %s91 = sphi 0, %s77
      %s95 = sphi 0, %s95
      %s97 = sphi 0, %s95
      %s98 = sphi 0, %s97
      %s112 = sphi 0, %s98
      %s116 = sphi 0, %s116
      %s118 = sphi 0, %s116
      %s119 = sphi 0, %s118
      %s133 = sphi 0, %s119
      %s137 = sphi 0, %s137
      %s139 = sphi 0, %s137
      %s140 = sphi 0, %s139
      %s154 = sphi 0, %s140
      %s158 = sphi 0, %s158
      %s160 = sphi 0, %s158
      %s161 = sphi 0, %s160
      %s175 = sphi 0, %s161
      %s179 = sphi 0, %s179
      %s181 = sphi 0, %s179
      %s182 = sphi 0, %s181
      %s196 = sphi 0, %s182
      %s200 = sphi 0, %s200
      %s202 = sphi 0, %s200
      %s203 = sphi 0, %s202
      %s217 = sphi 0, %s203
      %s221 = sphi 0, %s221
      %s223 = sphi 0, %s221
      %s224 = sphi 0, %s223
      %s238 = sphi 0, %s224
      %s244 = sphi 0, %s246
      %s247 = sphi 0, %s244
      %s248 = sphi 0, %s247
      %s264 = sphi 0, %s248
    $region4: #{bottomnet_forward.1} parent=1 // loop_header_branch
      %22 = sbr.rel (%p20) target = $region8
    $region5: #{bottomnet_forward.1} parent=1 // loop_body
      %s24 = ssub.s32 %s19, 1
      %s25 = ssub.s32 %s19, 2
      %s26 = sadd.s32 %s19, 1
      %s27 = ssub.s32 %s19, %s26
      %p28 = scmp.eq.s32.totalorder %s27, 0
      %s30 = sadd.s32 %s29, 1
      %s31 = scalar_select %p28, %s29, %s30
      %p34 = pneg %p28
      %p35 = scmp.eq.s32.totalorder %s19, 1
      %p36 = por %p34, %p35
      %p37 = scmp.ne.s32.totalorder %s29, %s32
      %p38 = scmp.eq.s32.totalorder %s19, 0
      %p39 = por %p37, %p38
      %p40 = scmp.ne.s32.totalorder %s29, %s32
      %p41 = scmp.eq.s32.totalorder %s24, 1
      %p42 = por %p40, %p41
      %p43 = scmp.ne.s32.totalorder %s32, %s33
      %p44 = scmp.eq.s32.totalorder %s24, 0
      %p45 = por %p43, %p44
      %p46 = scmp.ne.s32.totalorder %s32, %s33
      %p47 = scmp.eq.s32.totalorder %s25, 1
      %p48 = por %p46, %p47
      %p50 = scmp.ne.s32.totalorder %s33, %s49
      %p51 = scmp.eq.s32.totalorder %s25, 0
      %p52 = por %p50, %p51
      %s54 = sadd.s32 %s53, 1
      %p57 = scmp.eq.s32.totalorder %s19, 1
      %p58 = scmp.ne.s32.totalorder %s53, %s55
      %p59 = scmp.eq.s32.totalorder %s19, 0
      %p60 = por %p58, %p59
      %p61 = scmp.ne.s32.totalorder %s53, %s55
      %p62 = scmp.eq.s32.totalorder %s24, 1
      %p63 = por %p61, %p62
      %p64 = scmp.ne.s32.totalorder %s55, %s56
      %p65 = scmp.eq.s32.totalorder %s24, 0
      %p66 = por %p64, %p65
      %p67 = scmp.ne.s32.totalorder %s55, %s56
      %p68 = scmp.eq.s32.totalorder %s25, 1
      %p69 = por %p67, %p68
      %p71 = scmp.ne.s32.totalorder %s56, %s70
      %p72 = scmp.eq.s32.totalorder %s25, 0
      %p73 = por %p71, %p72
      %s75 = sadd.s32 %s74, 1
      %p78 = scmp.eq.s32.totalorder %s19, 1
      %p79 = scmp.ne.s32.totalorder %s74, %s76
      %p80 = scmp.eq.s32.totalorder %s19, 0
      %p81 = por %p79, %p80
      %p82 = scmp.ne.s32.totalorder %s74, %s76
      %p83 = scmp.eq.s32.totalorder %s24, 1
      %p84 = por %p82, %p83
      %p85 = scmp.ne.s32.totalorder %s76, %s77
      %p86 = scmp.eq.s32.totalorder %s24, 0
      %p87 = por %p85, %p86
      %p88 = scmp.ne.s32.totalorder %s76, %s77
      %p89 = scmp.eq.s32.totalorder %s25, 1
      %p90 = por %p88, %p89
      %p92 = scmp.ne.s32.totalorder %s77, %s91
      %p93 = scmp.eq.s32.totalorder %s25, 0
      %p94 = por %p92, %p93
      %s96 = sadd.s32 %s95, 1
      %p99 = scmp.eq.s32.totalorder %s19, 1
      %p100 = scmp.ne.s32.totalorder %s95, %s97
      %p101 = scmp.eq.s32.totalorder %s19, 0
      %p102 = por %p100, %p101
      %p103 = scmp.ne.s32.totalorder %s95, %s97
      %p104 = scmp.eq.s32.totalorder %s24, 1
      %p105 = por %p103, %p104
      %p106 = scmp.ne.s32.totalorder %s97, %s98
      %p107 = scmp.eq.s32.totalorder %s24, 0
      %p108 = por %p106, %p107
      %p109 = scmp.ne.s32.totalorder %s97, %s98
      %p110 = scmp.eq.s32.totalorder %s25, 1
      %p111 = por %p109, %p110
      %p113 = scmp.ne.s32.totalorder %s98, %s112
      %p114 = scmp.eq.s32.totalorder %s25, 0
      %p115 = por %p113, %p114
      %s117 = sadd.s32 %s116, 1
      %p120 = scmp.eq.s32.totalorder %s19, 1
      %p121 = scmp.ne.s32.totalorder %s116, %s118
      %p122 = scmp.eq.s32.totalorder %s19, 0
      %p123 = por %p121, %p122
      %p124 = scmp.ne.s32.totalorder %s116, %s118
      %p125 = scmp.eq.s32.totalorder %s24, 1
      %p126 = por %p124, %p125
      %p127 = scmp.ne.s32.totalorder %s118, %s119
      %p128 = scmp.eq.s32.totalorder %s24, 0
      %p129 = por %p127, %p128
      %p130 = scmp.ne.s32.totalorder %s118, %s119
      %p131 = scmp.eq.s32.totalorder %s25, 1
      %p132 = por %p130, %p131
      %p134 = scmp.ne.s32.totalorder %s119, %s133
      %p135 = scmp.eq.s32.totalorder %s25, 0
      %p136 = por %p134, %p135
      %s138 = sadd.s32 %s137, 1
      %p141 = scmp.eq.s32.totalorder %s19, 1
      %p142 = scmp.ne.s32.totalorder %s137, %s139
      %p143 = scmp.eq.s32.totalorder %s19, 0
      %p144 = por %p142, %p143
      %p145 = scmp.ne.s32.totalorder %s137, %s139
      %p146 = scmp.eq.s32.totalorder %s24, 1
      %p147 = por %p145, %p146
      %p148 = scmp.ne.s32.totalorder %s139, %s140
      %p149 = scmp.eq.s32.totalorder %s24, 0
      %p150 = por %p148, %p149
      %p151 = scmp.ne.s32.totalorder %s139, %s140
      %p152 = scmp.eq.s32.totalorder %s25, 1
      %p153 = por %p151, %p152
      %p155 = scmp.ne.s32.totalorder %s140, %s154
      %p156 = scmp.eq.s32.totalorder %s25, 0
      %p157 = por %p155, %p156
      %s159 = sadd.s32 %s158, 1
      %p162 = scmp.eq.s32.totalorder %s19, 1
      %p163 = scmp.ne.s32.totalorder %s158, %s160
      %p164 = scmp.eq.s32.totalorder %s19, 0
      %p165 = por %p163, %p164
      %p166 = scmp.ne.s32.totalorder %s158, %s160
      %p167 = scmp.eq.s32.totalorder %s24, 1
      %p168 = por %p166, %p167
      %p169 = scmp.ne.s32.totalorder %s160, %s161
      %p170 = scmp.eq.s32.totalorder %s24, 0
      %p171 = por %p169, %p170
      %p172 = scmp.ne.s32.totalorder %s160, %s161
      %p173 = scmp.eq.s32.totalorder %s25, 1
      %p174 = por %p172, %p173
      %p176 = scmp.ne.s32.totalorder %s161, %s175
      %p177 = scmp.eq.s32.totalorder %s25, 0
      %p178 = por %p176, %p177
      %s180 = sadd.s32 %s179, 1
      %p183 = scmp.eq.s32.totalorder %s19, 1
      %p184 = scmp.ne.s32.totalorder %s179, %s181
      %p185 = scmp.eq.s32.totalorder %s19, 0
      %p186 = por %p184, %p185
      %p187 = scmp.ne.s32.totalorder %s179, %s181
      %p188 = scmp.eq.s32.totalorder %s24, 1
      %p189 = por %p187, %p188
      %p190 = scmp.ne.s32.totalorder %s181, %s182
      %p191 = scmp.eq.s32.totalorder %s24, 0
      %p192 = por %p190, %p191
      %p193 = scmp.ne.s32.totalorder %s181, %s182
      %p194 = scmp.eq.s32.totalorder %s25, 1
      %p195 = por %p193, %p194
      %p197 = scmp.ne.s32.totalorder %s182, %s196
      %p198 = scmp.eq.s32.totalorder %s25, 0
      %p199 = por %p197, %p198
      %s201 = sadd.s32 %s200, 1
      %p204 = scmp.eq.s32.totalorder %s19, 1
      %p205 = scmp.ne.s32.totalorder %s200, %s202
      %p206 = scmp.eq.s32.totalorder %s19, 0
      %p207 = por %p205, %p206
      %p208 = scmp.ne.s32.totalorder %s200, %s202
      %p209 = scmp.eq.s32.totalorder %s24, 1
      %p210 = por %p208, %p209
      %p211 = scmp.ne.s32.totalorder %s202, %s203
      %p212 = scmp.eq.s32.totalorder %s24, 0
      %p213 = por %p211, %p212
      %p214 = scmp.ne.s32.totalorder %s202, %s203
      %p215 = scmp.eq.s32.totalorder %s25, 1
      %p216 = por %p214, %p215
      %p218 = scmp.ne.s32.totalorder %s203, %s217
      %p219 = scmp.eq.s32.totalorder %s25, 0
      %p220 = por %p218, %p219
      %s222 = sadd.s32 %s221, 1
      %p225 = scmp.eq.s32.totalorder %s19, 1
      %p226 = scmp.ne.s32.totalorder %s221, %s223
      %p227 = scmp.eq.s32.totalorder %s19, 0
      %p228 = por %p226, %p227
      %p229 = scmp.ne.s32.totalorder %s221, %s223
      %p230 = scmp.eq.s32.totalorder %s24, 1
      %p231 = por %p229, %p230
      %p232 = scmp.ne.s32.totalorder %s223, %s224
      %p233 = scmp.eq.s32.totalorder %s24, 0
      %p234 = por %p232, %p233
      %p235 = scmp.ne.s32.totalorder %s223, %s224
      %p236 = scmp.eq.s32.totalorder %s25, 1
      %p237 = por %p235, %p236
      %p239 = scmp.ne.s32.totalorder %s224, %s238
      %p240 = scmp.eq.s32.totalorder %s25, 0
      %p241 = por %p239, %p240
      %s242 = ssub.s32 %s19, %s26
      %p243 = scmp.eq.s32.totalorder %s242, 0
      %s245 = sadd.s32 %s244, 1
      %s246 = scalar_select %p243, %s244, %s245
      %p249 = pneg %p243
      %p250 = scmp.eq.s32.totalorder %s19, 1
      %p251 = por %p249, %p250
      %p252 = scmp.ne.s32.totalorder %s244, %s247
      %p253 = scmp.eq.s32.totalorder %s19, 0
      %p254 = por %p252, %p253
      %p255 = scmp.ne.s32.totalorder %s244, %s247
      %p256 = scmp.eq.s32.totalorder %s24, 1
      %p257 = por %p255, %p256
      %p258 = scmp.ne.s32.totalorder %s247, %s248
      %p259 = scmp.eq.s32.totalorder %s24, 0
      %p260 = por %p258, %p259
      %p261 = scmp.ne.s32.totalorder %s247, %s248
      %p262 = scmp.eq.s32.totalorder %s25, 1
      %p263 = por %p261, %p262
      %p265 = scmp.ne.s32.totalorder %s248, %s264
      %p266 = scmp.eq.s32.totalorder %s25, 0
      %p267 = por %p265, %p266
      %p268 = scmp.le.s32.totalorder 1, %s19
      %p269 = scmp.lt.s32.totalorder %s19, 3
      %p270 = pnand %p268, %p269
      %p271 = pneg %p270
      // Predicated region
      $region9: #{bottomnet_forward.1} parent=5 // pred_check
        _
      $region10: #{bottomnet_forward.1} parent=5 // pred_check_branch
        %273 = sbr.rel (%p270) target = $region12
      $region11: #{bottomnet_forward.1} parent=5 // pred_region
        %s274 = ssub.s32 %s19, 1
        // Predicated region
        $region13: #{bottomnet_forward.1} parent=11 // pred_check
          %p275 = pneg %p66
        $region14: #{bottomnet_forward.1} parent=11 // pred_check_branch
          %277 = sbr.rel (%p275) target = $region16
        $region15: #{bottomnet_forward.1} parent=11 // pred_region
          _
        $region16: #{bottomnet_forward.1} parent=11 // pred_fallthru
          _
        // Predicated region
        $region17: #{bottomnet_forward.1} parent=11 // pred_check
          %p278 = pneg %p87
        $region18: #{bottomnet_forward.1} parent=11 // pred_check_branch
          %280 = sbr.rel (%p278) target = $region20
        $region19: #{bottomnet_forward.1} parent=11 // pred_region
          _
        $region20: #{bottomnet_forward.1} parent=11 // pred_fallthru
          _
        // Predicated region
        $region21: #{bottomnet_forward.1} parent=11 // pred_check
          %p281 = pneg %p108
        $region22: #{bottomnet_forward.1} parent=11 // pred_check_branch
          %283 = sbr.rel (%p281) target = $region24
        $region23: #{bottomnet_forward.1} parent=11 // pred_region
          _
        $region24: #{bottomnet_forward.1} parent=11 // pred_fallthru
          _
        // Predicated region
        $region25: #{bottomnet_forward.1} parent=11 // pred_check
          %p284 = pneg %p129
        $region26: #{bottomnet_forward.1} parent=11 // pred_check_branch
          %286 = sbr.rel (%p284) target = $region28
        $region27: #{bottomnet_forward.1} parent=11 // pred_region
          _
        $region28: #{bottomnet_forward.1} parent=11 // pred_fallthru
          _
        // Predicated region
        $region29: #{bottomnet_forward.1} parent=11 // pred_check
          %p287 = pneg %p150
        $region30: #{bottomnet_forward.1} parent=11 // pred_check_branch
          %289 = sbr.rel (%p287) target = $region32
        $region31: #{bottomnet_forward.1} parent=11 // pred_region
          _
        $region32: #{bottomnet_forward.1} parent=11 // pred_fallthru
          _
        // Predicated region
        $region33: #{bottomnet_forward.1} parent=11 // pred_check
          %p290 = pneg %p171
        $region34: #{bottomnet_forward.1} parent=11 // pred_check_branch
          %292 = sbr.rel (%p290) target = $region36
        $region35: #{bottomnet_forward.1} parent=11 // pred_region
          _
        $region36: #{bottomnet_forward.1} parent=11 // pred_fallthru
          _
        // Predicated region
        $region37: #{bottomnet_forward.1} parent=11 // pred_check
          %p293 = pneg %p192
        $region38: #{bottomnet_forward.1} parent=11 // pred_check_branch
          %295 = sbr.rel (%p293) target = $region40
        $region39: #{bottomnet_forward.1} parent=11 // pred_region
          _
        $region40: #{bottomnet_forward.1} parent=11 // pred_fallthru
          _
        // Predicated region
        $region41: #{bottomnet_forward.1} parent=11 // pred_check
          %p296 = pneg %p213
        $region42: #{bottomnet_forward.1} parent=11 // pred_check_branch
          %298 = sbr.rel (%p296) target = $region44
        $region43: #{bottomnet_forward.1} parent=11 // pred_region
          _
        $region44: #{bottomnet_forward.1} parent=11 // pred_fallthru
          _
        // Predicated region
        $region45: #{bottomnet_forward.1} parent=11 // pred_check
          %p299 = pneg %p234
        $region46: #{bottomnet_forward.1} parent=11 // pred_check_branch
          %301 = sbr.rel (%p299) target = $region48
        $region47: #{bottomnet_forward.1} parent=11 // pred_region
          _
        $region48: #{bottomnet_forward.1} parent=11 // pred_fallthru
          _
      $region12: #{bottomnet_forward.1} parent=5 // pred_fallthru
        _
      %p302 = scmp.lt.s32.totalorder %s19, 2
      // Predicated region
      $region49: #{bottomnet_forward.1} parent=5 // pred_check
        %p303 = pneg %p302
      $region50: #{bottomnet_forward.1} parent=5 // pred_check_branch
        %305 = sbr.rel (%p303) target = $region52
      $region51: #{bottomnet_forward.1} parent=5 // pred_region
        // Predicated region
        $region53: #{bottomnet_forward.1} parent=51 // pred_check
          %p306 = pneg %p39
        $region54: #{bottomnet_forward.1} parent=51 // pred_check_branch
          %308 = sbr.rel (%p306) target = $region56
        $region55: #{bottomnet_forward.1} parent=51 // pred_region
          %p309 = scmp.lt.s32.totalorder %s19, 1
          %s310 = scalar_select %p309, %s19, 1
          %s311 = smul.addr %s310, 2
          %s312 = smul.addr %s311, 4
          %s313 = scalar_lea.vmem %s0, %s312
        $region56: #{bottomnet_forward.1} parent=51 // pred_fallthru
          _
      $region52: #{bottomnet_forward.1} parent=5 // pred_fallthru
        _
      %p314 = scmp.le.s32.totalorder 1, %s19
      %p315 = scmp.lt.s32.totalorder %s19, 3
      %p316 = pnand %p314, %p315
      %p317 = pneg %p316
      // Predicated region
      $region57: #{bottomnet_forward.1} parent=5 // pred_check
        _
      $region58: #{bottomnet_forward.1} parent=5 // pred_check_branch
        %319 = sbr.rel (%p316) target = $region60
      $region59: #{bottomnet_forward.1} parent=5 // pred_region
        %s320 = ssub.s32 %s19, 1
        %p321 = scmp.lt.s32.totalorder %s24, 1
        %s322 = scalar_select %p321, %s24, 1
        %s323 = smul.addr %s322, 2
        %s324 = smul.addr %s323, 4
        %s325 = scalar_lea.vmem %s0, %s324
        %p326 = pneg %p45
        %p327 = pneg %p42
        %p328 = pneg %p66
        %p329 = pneg %p63
        %p330 = pneg %p87
        %p331 = pneg %p84
        %p332 = pneg %p108
        %p333 = pneg %p105
        %p334 = pneg %p129
        %p335 = pneg %p126
        %p336 = pneg %p150
        %p337 = pneg %p147
        %p338 = pneg %p171
        %p339 = pneg %p168
        %p340 = pneg %p192
        %p341 = pneg %p189
        %p342 = pneg %p213
        %p343 = pneg %p210
        %p344 = pneg %p234
        %p345 = pneg %p231
        %p346 = pneg %p260
        %p347 = pneg %p257
        %s348 = sand.u32 %s247, 1
        %s349 = scalar_lea.sflag [#allocation5], %s348
        %s350 = sand.u32 %s247, 1
        %s351 = scalar_lea.vmem [#allocation4], %s350
        %p352 = scmp.lt.s32.totalorder %s24, 1
        %s353 = scalar_select %p352, %s24, 1
        %s354 = smul.addr %s353, 2
        %s355 = smul.addr %s354, 4
        %s356 = scalar_lea.vmem %s0, %s355
        %357 = vst [vmem:[#allocation2] sm:$0xf] 0.0
        %358 = vst [vmem:[#allocation2 + $0xc] sm:$0xf] 0.0
        %v359 = vld [vmem:[%s356] sm:$0xff]
        %360 = vst [vmem:[#allocation2 + $0x4] sm:$0xff] %v359
        %v361 = vld [vmem:[%s2] sm:$0xff]
        %363 = vset.pattern.permute.xlu0 0
        %364 = vperm.xlu0 %363, %v361
        %v365 = vpop.permute.xlu0 %364
        %v367 = vld [vmem:[#allocation2] sm:$0xff]
        %v368 = vld [vmem:[#allocation2 + $0x8] sm:$0xf]
        %v369 = vld [vmem:[%s9] ss:$4 sm:$0x3]
        %v371 = vlaneseq
        %v372 = vshrl.u32 %v371, 7
        %v373 = vsub.s32 0, %v372
        %v374 = vrot.slane %v369, %v373
        %v375 = vlaneseq
        %v376 = vshrl.u32 %v375, 7
        %v377 = vsub.s32 1, %v376
        %v378 = vrot.slane %v369, %v377
        %v379 = vcombine.low %v374, %v378
        %380 = vrot.lane.b32.xlu0 %v379, 111
        %v381 = vpop.permute.xlu0 %380
        %v382 = vrot.slane %v381, 4
        %vm383 = vcmask 908288
        %v384 = vsel %vm383, %v382, %v381
        %v387 = vmul.f32 %v367, %v384
        %v388 = vmul.f32 %v368, %v382
        %v389 = vld [vmem:[%s1] sm:$0xff]
        %v392 = vcombine.high %v387, %v387
        %393 = vrot.lane.b32.xlu0 %v387, 17
        %v394 = vpop.permute.xlu0 %393
        %395 = vrot.lane.b32.xlu0 %v392, 17
        %v396 = vpop.permute.xlu0 %395
        %397 = vrot.lane.b32.xlu0 %v388, 17
        %v398 = vpop.permute.xlu0 %397
        %vm399 = vcmask 138240
        %v400 = vsel %vm399, %v394, %v396
        %v401 = vsel %vm399, %v396, %v398
        %vm402 = vcmask 31744
        %v404 = vsel %vm402, %v389, 0
        %vm406 = vcmask 1043456
        %v407 = vsel %vm406, %v400, 0
        %v409 = vsel %vm406, %v401, 0
        %411 = vmatprep.subr.mxu0 %v409
        %412 = vmatpush1.msra.mxu0 %v407
        %413 = vmatprep.subr.mxu0 0.0
        %414 = vmatpush1.msra.mxu0 0.0
        %415 = vmatprep.subr.mxu0 0.0
        %416 = vmatpush1.msra.mxu0 0.0
        %417 = vmatprep.subr.mxu0 0.0
        %418 = vmatpush1.msra.mxu0 0.0
        %419 = vmatprep.subr.mxu0 0.0
        %420 = vmatpush1.msra.mxu0 0.0
        %421 = vmatprep.subr.mxu0 0.0
        %422 = vmatpush1.msra.mxu0 0.0
        %423 = vmatprep.subr.mxu0 0.0
        %424 = vmatpush1.msra.mxu0 0.0
        %425 = vmatprep.subr.mxu0 0.0
        %426 = vmatpush1.msra.mxu0 0.0
        %427 = vmatprep.subr.mxu0 0.0
        %428 = vmatpush1.msra.mxu0 0.0
        %429 = vmatprep.subr.mxu0 0.0
        %430 = vmatpush1.msra.mxu0 0.0
        %431 = vmatprep.subr.mxu0 0.0
        %432 = vmatpush1.msra.mxu0 0.0
        %433 = vmatprep.subr.mxu0 0.0
        %434 = vmatpush1.msra.mxu0 0.0
        %435 = vmatprep.subr.mxu0 0.0
        %436 = vmatpush1.msra.mxu0 0.0
        %437 = vmatprep.subr.mxu0 0.0
        %438 = vmatpush1.msra.mxu0 0.0
        %439 = vmatprep.subr.mxu0 0.0
        %440 = vmatpush1.msra.mxu0 0.0
        %441 = vmatprep.subr.mxu0 0.0
        %442 = vmatpush1.msra.mxu0 0.0
        %443 = vmatprep.subr.mxu0 0.0
        %444 = vmatpush1.msra.mxu0 0.0
        %445 = vmatprep.subr.mxu0 0.0
        %446 = vmatpush1.msra.mxu0 0.0
        %447 = vmatprep.subr.mxu0 0.0
        %448 = vmatpush1.msra.mxu0 0.0
        %449 = vmatprep.subr.mxu0 0.0
        %450 = vmatpush1.msra.mxu0 0.0
        %451 = vmatprep.subr.mxu0 0.0
        %452 = vmatpush1.msra.mxu0 0.0
        %453 = vmatprep.subr.mxu0 0.0
        %454 = vmatpush1.msra.mxu0 0.0
        %455 = vmatprep.subr.mxu0 0.0
        %456 = vmatpush1.msra.mxu0 0.0
        %457 = vmatprep.subr.mxu0 0.0
        %458 = vmatpush1.msra.mxu0 0.0
        %459 = vmatprep.subr.mxu0 0.0
        %460 = vmatpush1.msra.mxu0 0.0
        %461 = vmatprep.subr.mxu0 0.0
        %462 = vmatpush1.msra.mxu0 0.0
        %463 = vmatprep.subr.mxu0 0.0
        %464 = vmatpush1.msra.mxu0 0.0
        %465 = vmatprep.subr.mxu0 0.0
        %466 = vmatpush1.msra.mxu0 0.0
        %467 = vmatprep.subr.mxu0 0.0
        %468 = vmatpush1.msra.mxu0 0.0
        %469 = vmatprep.subr.mxu0 0.0
        %470 = vmatpush1.msra.mxu0 0.0
        %471 = vmatprep.subr.mxu0 0.0
        %472 = vmatpush1.msra.mxu0 0.0
        %473 = vmatprep.subr.mxu0 0.0
        %474 = vmatpush1.msra.mxu0 0.0
        %475 = vmatprep.mubr.f32.mxu0 0.0
        %476 = vmatmul.mubr.f32.gmra.mrb[0].mxu0 %v404
        %v477 = vpop.f32.mrb[0].mxu0
        %v478 = vadd.f32 0.0, %v477
        %v479 = vpop.f32.mrb[0].mxu0
        %v480 = vadd.f32 0.0, %v479
        %481 = vdwg.mxu0
        %v482 = vadd.f32 %v365, %v478
        %v483 = vadd.f32 %v365, %v480
        %v484 = vld [vmem:[#allocation2] sm:$0xff]
        %v485 = vld [vmem:[#allocation2 + $0x8] sm:$0xf]
        %s486 = scalar_lea.vmem %s1, 8
        %v487 = vld [vmem:[%s486] sm:$0xff]
        %v490 = vcombine.high %v484, %v484
        %491 = vrot.lane.b32.xlu0 %v484, 16
        %v492 = vpop.permute.xlu0 %491
        %493 = vrot.lane.b32.xlu0 %v490, 16
        %v494 = vpop.permute.xlu0 %493
        %495 = vrot.lane.b32.xlu0 %v485, 16
        %v496 = vpop.permute.xlu0 %495
        %vm497 = vcmask 130048
        %v498 = vsel %vm497, %v492, %v494
        %v499 = vsel %vm497, %v494, %v496
        %v501 = vsel %vm402, %v487, 0
        %v503 = vsel %vm406, %v498, 0
        %v505 = vsel %vm406, %v499, 0
        %507 = vmatprep.subr.mxu0 %v505
        %508 = vmatpush1.msra.mxu0 %v503
        %509 = vmatprep.subr.mxu0 0.0
        %510 = vmatpush1.msra.mxu0 0.0
        %511 = vmatprep.subr.mxu0 0.0
        %512 = vmatpush1.msra.mxu0 0.0
        %513 = vmatprep.subr.mxu0 0.0
        %514 = vmatpush1.msra.mxu0 0.0
        %515 = vmatprep.subr.mxu0 0.0
        %516 = vmatpush1.msra.mxu0 0.0
        %517 = vmatprep.subr.mxu0 0.0
        %518 = vmatpush1.msra.mxu0 0.0
        %519 = vmatprep.subr.mxu0 0.0
        %520 = vmatpush1.msra.mxu0 0.0
        %521 = vmatprep.subr.mxu0 0.0
        %522 = vmatpush1.msra.mxu0 0.0
        %523 = vmatprep.subr.mxu0 0.0
        %524 = vmatpush1.msra.mxu0 0.0
        %525 = vmatprep.subr.mxu0 0.0
        %526 = vmatpush1.msra.mxu0 0.0
        %527 = vmatprep.subr.mxu0 0.0
        %528 = vmatpush1.msra.mxu0 0.0
        %529 = vmatprep.subr.mxu0 0.0
        %530 = vmatpush1.msra.mxu0 0.0
        %531 = vmatprep.subr.mxu0 0.0
        %532 = vmatpush1.msra.mxu0 0.0
        %533 = vmatprep.subr.mxu0 0.0
        %534 = vmatpush1.msra.mxu0 0.0
        %535 = vmatprep.subr.mxu0 0.0
        %536 = vmatpush1.msra.mxu0 0.0
        %537 = vmatprep.subr.mxu0 0.0
        %538 = vmatpush1.msra.mxu0 0.0
        %539 = vmatprep.subr.mxu0 0.0
        %540 = vmatpush1.msra.mxu0 0.0
        %541 = vmatprep.subr.mxu0 0.0
        %542 = vmatpush1.msra.mxu0 0.0
        %543 = vmatprep.subr.mxu0 0.0
        %544 = vmatpush1.msra.mxu0 0.0
        %545 = vmatprep.subr.mxu0 0.0
        %546 = vmatpush1.msra.mxu0 0.0
        %547 = vmatprep.subr.mxu0 0.0
        %548 = vmatpush1.msra.mxu0 0.0
        %549 = vmatprep.subr.mxu0 0.0
        %550 = vmatpush1.msra.mxu0 0.0
        %551 = vmatprep.subr.mxu0 0.0
        %552 = vmatpush1.msra.mxu0 0.0
        %553 = vmatprep.subr.mxu0 0.0
        %554 = vmatpush1.msra.mxu0 0.0
        %555 = vmatprep.subr.mxu0 0.0
        %556 = vmatpush1.msra.mxu0 0.0
        %557 = vmatprep.subr.mxu0 0.0
        %558 = vmatpush1.msra.mxu0 0.0
        %559 = vmatprep.subr.mxu0 0.0
        %560 = vmatpush1.msra.mxu0 0.0
        %561 = vmatprep.subr.mxu0 0.0
        %562 = vmatpush1.msra.mxu0 0.0
        %563 = vmatprep.subr.mxu0 0.0
        %564 = vmatpush1.msra.mxu0 0.0
        %565 = vmatprep.subr.mxu0 0.0
        %566 = vmatpush1.msra.mxu0 0.0
        %567 = vmatprep.subr.mxu0 0.0
        %568 = vmatpush1.msra.mxu0 0.0
        %569 = vmatprep.subr.mxu0 0.0
        %570 = vmatpush1.msra.mxu0 0.0
        %571 = vmatprep.mubr.f32.mxu0 0.0
        %572 = vmatmul.mubr.f32.gmra.mrb[0].mxu0 %v501
        %v573 = vpop.f32.mrb[0].mxu0
        %v574 = vadd.f32 0.0, %v573
        %v575 = vpop.f32.mrb[0].mxu0
        %v576 = vadd.f32 0.0, %v575
        %577 = vdwg.mxu0
        %v578 = vadd.f32 %v482, %v574
        %v579 = vadd.f32 %v483, %v576
        %v580 = vld [vmem:[#allocation2] sm:$0xff]
        %v581 = vld [vmem:[#allocation2 + $0x8] sm:$0xf]
        %s582 = scalar_lea.vmem %s9, 2
        %v583 = vld [vmem:[%s582] ss:$4 sm:$0x3]
        %v585 = vlaneseq
        %v586 = vshrl.u32 %v585, 7
        %v587 = vsub.s32 0, %v586
        %v588 = vrot.slane %v583, %v587
        %v589 = vlaneseq
        %v590 = vshrl.u32 %v589, 7
        %v591 = vsub.s32 1, %v590
        %v592 = vrot.slane %v583, %v591
        %v593 = vcombine.low %v588, %v592
        %594 = vrot.lane.b32.xlu0 %v593, 113
        %v595 = vpop.permute.xlu0 %594
        %v596 = vrot.slane %v595, 4
        %vm597 = vcmask 924672
        %v598 = vsel %vm597, %v596, %v595
        %v601 = vmul.f32 %v580, %v598
        %v602 = vmul.f32 %v581, %v596
        %s603 = scalar_lea.vmem %s1, 16
        %v604 = vld [vmem:[%s603] sm:$0xff]
        %v607 = vcombine.high %v601, %v601
        %608 = vrot.lane.b32.xlu0 %v601, 15
        %v609 = vpop.permute.xlu0 %608
        %610 = vrot.lane.b32.xlu0 %v607, 15
        %v611 = vpop.permute.xlu0 %610
        %612 = vrot.lane.b32.xlu0 %v602, 15
        %v613 = vpop.permute.xlu0 %612
        %vm614 = vcmask 121856
        %v615 = vsel %vm614, %v609, %v611
        %v616 = vsel %vm614, %v611, %v613
        %v618 = vsel %vm402, %v604, 0
        %v620 = vsel %vm406, %v615, 0
        %v622 = vsel %vm406, %v616, 0
        %624 = vmatprep.subr.mxu0 %v622
        %625 = vmatpush1.msra.mxu0 %v620
        %626 = vmatprep.subr.mxu0 0.0
        %627 = vmatpush1.msra.mxu0 0.0
        %628 = vmatprep.subr.mxu0 0.0
        %629 = vmatpush1.msra.mxu0 0.0
        %630 = vmatprep.subr.mxu0 0.0
        %631 = vmatpush1.msra.mxu0 0.0
        %632 = vmatprep.subr.mxu0 0.0
        %633 = vmatpush1.msra.mxu0 0.0
        %634 = vmatprep.subr.mxu0 0.0
        %635 = vmatpush1.msra.mxu0 0.0
        %636 = vmatprep.subr.mxu0 0.0
        %637 = vmatpush1.msra.mxu0 0.0
        %638 = vmatprep.subr.mxu0 0.0
        %639 = vmatpush1.msra.mxu0 0.0
        %640 = vmatprep.subr.mxu0 0.0
        %641 = vmatpush1.msra.mxu0 0.0
        %642 = vmatprep.subr.mxu0 0.0
        %643 = vmatpush1.msra.mxu0 0.0
        %644 = vmatprep.subr.mxu0 0.0
        %645 = vmatpush1.msra.mxu0 0.0
        %646 = vmatprep.subr.mxu0 0.0
        %647 = vmatpush1.msra.mxu0 0.0
        %648 = vmatprep.subr.mxu0 0.0
        %649 = vmatpush1.msra.mxu0 0.0
        %650 = vmatprep.subr.mxu0 0.0
        %651 = vmatpush1.msra.mxu0 0.0
        %652 = vmatprep.subr.mxu0 0.0
        %653 = vmatpush1.msra.mxu0 0.0
        %654 = vmatprep.subr.mxu0 0.0
        %655 = vmatpush1.msra.mxu0 0.0
        %656 = vmatprep.subr.mxu0 0.0
        %657 = vmatpush1.msra.mxu0 0.0
        %658 = vmatprep.subr.mxu0 0.0
        %659 = vmatpush1.msra.mxu0 0.0
        %660 = vmatprep.subr.mxu0 0.0
        %661 = vmatpush1.msra.mxu0 0.0
        %662 = vmatprep.subr.mxu0 0.0
        %663 = vmatpush1.msra.mxu0 0.0
        %664 = vmatprep.subr.mxu0 0.0
        %665 = vmatpush1.msra.mxu0 0.0
        %666 = vmatprep.subr.mxu0 0.0
        %667 = vmatpush1.msra.mxu0 0.0
        %668 = vmatprep.subr.mxu0 0.0
        %669 = vmatpush1.msra.mxu0 0.0
        %670 = vmatprep.subr.mxu0 0.0
        %671 = vmatpush1.msra.mxu0 0.0
        %672 = vmatprep.subr.mxu0 0.0
        %673 = vmatpush1.msra.mxu0 0.0
        %674 = vmatprep.subr.mxu0 0.0
        %675 = vmatpush1.msra.mxu0 0.0
        %676 = vmatprep.subr.mxu0 0.0
        %677 = vmatpush1.msra.mxu0 0.0
        %678 = vmatprep.subr.mxu0 0.0
        %679 = vmatpush1.msra.mxu0 0.0
        %680 = vmatprep.subr.mxu0 0.0
        %681 = vmatpush1.msra.mxu0 0.0
        %682 = vmatprep.subr.mxu0 0.0
        %683 = vmatpush1.msra.mxu0 0.0
        %684 = vmatprep.subr.mxu0 0.0
        %685 = vmatpush1.msra.mxu0 0.0
        %686 = vmatprep.subr.mxu0 0.0
        %687 = vmatpush1.msra.mxu0 0.0
        %688 = vmatprep.mubr.f32.mxu0 0.0
        %689 = vmatmul.mubr.f32.gmra.mrb[0].mxu0 %v618
        %v690 = vpop.f32.mrb[0].mxu0
        %v691 = vadd.f32 0.0, %v690
        %v692 = vpop.f32.mrb[0].mxu0
        %v693 = vadd.f32 0.0, %v692
        %694 = vdwg.mxu0
        %v695 = vadd.f32 %v578, %v691
        %v696 = vadd.f32 %v579, %v693
        %v697 = vld [vmem:[#allocation2] sm:$0xff]
        %v698 = vld [vmem:[#allocation2 + $0x8] sm:$0xf]
        %699 = vrot.lane.b32.xlu0 %v379, 127
        %v700 = vpop.permute.xlu0 %699
        %v701 = vrot.slane %v700, 4
        %vm702 = vcmask 1039360
        %v703 = vsel %vm702, %v701, %v700
        %v706 = vmul.f32 %v697, %v703
        %v707 = vmul.f32 %v698, %v701
        %s708 = scalar_lea.vmem %s1, 24
        %v709 = vld [vmem:[%s708] sm:$0xff]
        %v712 = vcombine.high %v706, %v706
        %713 = vrot.lane.b32.xlu0 %v706, 1
        %v714 = vpop.permute.xlu0 %713
        %715 = vrot.lane.b32.xlu0 %v712, 1
        %v716 = vpop.permute.xlu0 %715
        %717 = vrot.lane.b32.xlu0 %v707, 1
        %v718 = vpop.permute.xlu0 %717
        %vm719 = vcmask 7168
        %v720 = vsel %vm719, %v714, %v716
        %v721 = vsel %vm719, %v716, %v718
        %v723 = vsel %vm402, %v709, 0
        %v725 = vsel %vm406, %v720, 0
        %v727 = vsel %vm406, %v721, 0
        %729 = vmatprep.subr.mxu0 %v727
        %730 = vmatpush1.msra.mxu0 %v725
        %731 = vmatprep.subr.mxu0 0.0
        %732 = vmatpush1.msra.mxu0 0.0
        %733 = vmatprep.subr.mxu0 0.0
        %734 = vmatpush1.msra.mxu0 0.0
        %735 = vmatprep.subr.mxu0 0.0
        %736 = vmatpush1.msra.mxu0 0.0
        %737 = vmatprep.subr.mxu0 0.0
        %738 = vmatpush1.msra.mxu0 0.0
        %739 = vmatprep.subr.mxu0 0.0
        %740 = vmatpush1.msra.mxu0 0.0
        %741 = vmatprep.subr.mxu0 0.0
        %742 = vmatpush1.msra.mxu0 0.0
        %743 = vmatprep.subr.mxu0 0.0
        %744 = vmatpush1.msra.mxu0 0.0
        %745 = vmatprep.subr.mxu0 0.0
        %746 = vmatpush1.msra.mxu0 0.0
        %747 = vmatprep.subr.mxu0 0.0
        %748 = vmatpush1.msra.mxu0 0.0
        %749 = vmatprep.subr.mxu0 0.0
        %750 = vmatpush1.msra.mxu0 0.0
        %751 = vmatprep.subr.mxu0 0.0
        %752 = vmatpush1.msra.mxu0 0.0
        %753 = vmatprep.subr.mxu0 0.0
        %754 = vmatpush1.msra.mxu0 0.0
        %755 = vmatprep.subr.mxu0 0.0
        %756 = vmatpush1.msra.mxu0 0.0
        %757 = vmatprep.subr.mxu0 0.0
        %758 = vmatpush1.msra.mxu0 0.0
        %759 = vmatprep.subr.mxu0 0.0
        %760 = vmatpush1.msra.mxu0 0.0
        %761 = vmatprep.subr.mxu0 0.0
        %762 = vmatpush1.msra.mxu0 0.0
        %763 = vmatprep.subr.mxu0 0.0
        %764 = vmatpush1.msra.mxu0 0.0
        %765 = vmatprep.subr.mxu0 0.0
        %766 = vmatpush1.msra.mxu0 0.0
        %767 = vmatprep.subr.mxu0 0.0
        %768 = vmatpush1.msra.mxu0 0.0
        %769 = vmatprep.subr.mxu0 0.0
        %770 = vmatpush1.msra.mxu0 0.0
        %771 = vmatprep.subr.mxu0 0.0
        %772 = vmatpush1.msra.mxu0 0.0
        %773 = vmatprep.subr.mxu0 0.0
        %774 = vmatpush1.msra.mxu0 0.0
        %775 = vmatprep.subr.mxu0 0.0
        %776 = vmatpush1.msra.mxu0 0.0
        %777 = vmatprep.subr.mxu0 0.0
        %778 = vmatpush1.msra.mxu0 0.0
        %779 = vmatprep.subr.mxu0 0.0
        %780 = vmatpush1.msra.mxu0 0.0
        %781 = vmatprep.subr.mxu0 0.0
        %782 = vmatpush1.msra.mxu0 0.0
        %783 = vmatprep.subr.mxu0 0.0
        %784 = vmatpush1.msra.mxu0 0.0
        %785 = vmatprep.subr.mxu0 0.0
        %786 = vmatpush1.msra.mxu0 0.0
        %787 = vmatprep.subr.mxu0 0.0
        %788 = vmatpush1.msra.mxu0 0.0
        %789 = vmatprep.subr.mxu0 0.0
        %790 = vmatpush1.msra.mxu0 0.0
        %791 = vmatprep.subr.mxu0 0.0
        %792 = vmatpush1.msra.mxu0 0.0
        %793 = vmatprep.mubr.f32.mxu0 0.0
        %794 = vmatmul.mubr.f32.gmra.mrb[0].mxu0 %v723
        %v795 = vpop.f32.mrb[0].mxu0
        %v796 = vadd.f32 0.0, %v795
        %v797 = vpop.f32.mrb[0].mxu0
        %v798 = vadd.f32 0.0, %v797
        %799 = vdwg.mxu0
        %v800 = vadd.f32 %v695, %v796
        %v801 = vadd.f32 %v696, %v798
        %v802 = vld [vmem:[#allocation2 + $0x4] sm:$0xff]
        %s803 = scalar_lea.vmem %s1, 32
        %v804 = vld [vmem:[%s803] sm:$0xff]
        %v806 = vcombine.high %v802, %v802
        %v808 = vsel %vm402, %v804, 0
        %v810 = vsel %vm406, %v802, 0
        %v812 = vsel %vm406, %v806, 0
        %814 = vmatprep.subr.mxu0 %v812
        %815 = vmatpush1.msra.mxu0 %v810
        %816 = vmatprep.subr.mxu0 0.0
        %817 = vmatpush1.msra.mxu0 0.0
        %818 = vmatprep.subr.mxu0 0.0
        %819 = vmatpush1.msra.mxu0 0.0
        %820 = vmatprep.subr.mxu0 0.0
        %821 = vmatpush1.msra.mxu0 0.0
        %822 = vmatprep.subr.mxu0 0.0
        %823 = vmatpush1.msra.mxu0 0.0
        %824 = vmatprep.subr.mxu0 0.0
        %825 = vmatpush1.msra.mxu0 0.0
        %826 = vmatprep.subr.mxu0 0.0
        %827 = vmatpush1.msra.mxu0 0.0
        %828 = vmatprep.subr.mxu0 0.0
        %829 = vmatpush1.msra.mxu0 0.0
        %830 = vmatprep.subr.mxu0 0.0
        %831 = vmatpush1.msra.mxu0 0.0
        %832 = vmatprep.subr.mxu0 0.0
        %833 = vmatpush1.msra.mxu0 0.0
        %834 = vmatprep.subr.mxu0 0.0
        %835 = vmatpush1.msra.mxu0 0.0
        %836 = vmatprep.subr.mxu0 0.0
        %837 = vmatpush1.msra.mxu0 0.0
        %838 = vmatprep.subr.mxu0 0.0
        %839 = vmatpush1.msra.mxu0 0.0
        %840 = vmatprep.subr.mxu0 0.0
        %841 = vmatpush1.msra.mxu0 0.0
        %842 = vmatprep.subr.mxu0 0.0
        %843 = vmatpush1.msra.mxu0 0.0
        %844 = vmatprep.subr.mxu0 0.0
        %845 = vmatpush1.msra.mxu0 0.0
        %846 = vmatprep.subr.mxu0 0.0
        %847 = vmatpush1.msra.mxu0 0.0
        %848 = vmatprep.subr.mxu0 0.0
        %849 = vmatpush1.msra.mxu0 0.0
        %850 = vmatprep.subr.mxu0 0.0
        %851 = vmatpush1.msra.mxu0 0.0
        %852 = vmatprep.subr.mxu0 0.0
        %853 = vmatpush1.msra.mxu0 0.0
        %854 = vmatprep.subr.mxu0 0.0
        %855 = vmatpush1.msra.mxu0 0.0
        %856 = vmatprep.subr.mxu0 0.0
        %857 = vmatpush1.msra.mxu0 0.0
        %858 = vmatprep.subr.mxu0 0.0
        %859 = vmatpush1.msra.mxu0 0.0
        %860 = vmatprep.subr.mxu0 0.0
        %861 = vmatpush1.msra.mxu0 0.0
        %862 = vmatprep.subr.mxu0 0.0
        %863 = vmatpush1.msra.mxu0 0.0
        %864 = vmatprep.subr.mxu0 0.0
        %865 = vmatpush1.msra.mxu0 0.0
        %866 = vmatprep.subr.mxu0 0.0
        %867 = vmatpush1.msra.mxu0 0.0
        %868 = vmatprep.subr.mxu0 0.0
        %869 = vmatpush1.msra.mxu0 0.0
        %870 = vmatprep.subr.mxu0 0.0
        %871 = vmatpush1.msra.mxu0 0.0
        %872 = vmatprep.subr.mxu0 0.0
        %873 = vmatpush1.msra.mxu0 0.0
        %874 = vmatprep.subr.mxu0 0.0
        %875 = vmatpush1.msra.mxu0 0.0
        %876 = vmatprep.subr.mxu0 0.0
        %877 = vmatpush1.msra.mxu0 0.0
        %878 = vmatprep.mubr.f32.mxu0 0.0
        %879 = vmatmul.mubr.f32.gmra.mrb[0].mxu0 %v808
        %v880 = vpop.f32.mrb[0].mxu0
        %v881 = vadd.f32 0.0, %v880
        %v882 = vpop.f32.mrb[0].mxu0
        %v883 = vadd.f32 0.0, %v882
        %884 = vdwg.mxu0
        %v885 = vadd.f32 %v800, %v881
        %v886 = vadd.f32 %v801, %v883
        %v887 = vld [vmem:[#allocation2 + $0x4] sm:$0xff]
        %v888 = vld [vmem:[#allocation2 + $0xc] sm:$0xf]
        %889 = vrot.lane.b32.xlu0 %v593, 1
        %v890 = vpop.permute.xlu0 %889
        %v891 = vrot.slane %v890, 4
        %v892 = vsel %vm719, %v891, %v890
        %v895 = vmul.f32 %v887, %v892
        %v896 = vmul.f32 %v888, %v891
        %s897 = scalar_lea.vmem %s1, 40
        %v898 = vld [vmem:[%s897] sm:$0xff]
        %v901 = vcombine.high %v895, %v895
        %902 = vrot.lane.b32.xlu0 %v895, 127
        %v903 = vpop.permute.xlu0 %902
        %904 = vrot.lane.b32.xlu0 %v901, 127
        %v905 = vpop.permute.xlu0 %904
        %906 = vrot.lane.b32.xlu0 %v896, 127
        %v907 = vpop.permute.xlu0 %906
        %v908 = vsel %vm702, %v903, %v905
        %v909 = vsel %vm702, %v905, %v907
        %v911 = vsel %vm402, %v898, 0
        %v913 = vsel %vm406, %v908, 0
        %v915 = vsel %vm406, %v909, 0
        %917 = vmatprep.subr.mxu0 %v915
        %918 = vmatpush1.msra.mxu0 %v913
        %919 = vmatprep.subr.mxu0 0.0
        %920 = vmatpush1.msra.mxu0 0.0
        %921 = vmatprep.subr.mxu0 0.0
        %922 = vmatpush1.msra.mxu0 0.0
        %923 = vmatprep.subr.mxu0 0.0
        %924 = vmatpush1.msra.mxu0 0.0
        %925 = vmatprep.subr.mxu0 0.0
        %926 = vmatpush1.msra.mxu0 0.0
        %927 = vmatprep.subr.mxu0 0.0
        %928 = vmatpush1.msra.mxu0 0.0
        %929 = vmatprep.subr.mxu0 0.0
        %930 = vmatpush1.msra.mxu0 0.0
        %931 = vmatprep.subr.mxu0 0.0
        %932 = vmatpush1.msra.mxu0 0.0
        %933 = vmatprep.subr.mxu0 0.0
        %934 = vmatpush1.msra.mxu0 0.0
        %935 = vmatprep.subr.mxu0 0.0
        %936 = vmatpush1.msra.mxu0 0.0
        %937 = vmatprep.subr.mxu0 0.0
        %938 = vmatpush1.msra.mxu0 0.0
        %939 = vmatprep.subr.mxu0 0.0
        %940 = vmatpush1.msra.mxu0 0.0
        %941 = vmatprep.subr.mxu0 0.0
        %942 = vmatpush1.msra.mxu0 0.0
        %943 = vmatprep.subr.mxu0 0.0
        %944 = vmatpush1.msra.mxu0 0.0
        %945 = vmatprep.subr.mxu0 0.0
        %946 = vmatpush1.msra.mxu0 0.0
        %947 = vmatprep.subr.mxu0 0.0
        %948 = vmatpush1.msra.mxu0 0.0
        %949 = vmatprep.subr.mxu0 0.0
        %950 = vmatpush1.msra.mxu0 0.0
        %951 = vmatprep.subr.mxu0 0.0
        %952 = vmatpush1.msra.mxu0 0.0
        %953 = vmatprep.subr.mxu0 0.0
        %954 = vmatpush1.msra.mxu0 0.0
        %955 = vmatprep.subr.mxu0 0.0
        %956 = vmatpush1.msra.mxu0 0.0
        %957 = vmatprep.subr.mxu0 0.0
        %958 = vmatpush1.msra.mxu0 0.0
        %959 = vmatprep.subr.mxu0 0.0
        %960 = vmatpush1.msra.mxu0 0.0
        %961 = vmatprep.subr.mxu0 0.0
        %962 = vmatpush1.msra.mxu0 0.0
        %963 = vmatprep.subr.mxu0 0.0
        %964 = vmatpush1.msra.mxu0 0.0
        %965 = vmatprep.subr.mxu0 0.0
        %966 = vmatpush1.msra.mxu0 0.0
        %967 = vmatprep.subr.mxu0 0.0
        %968 = vmatpush1.msra.mxu0 0.0
        %969 = vmatprep.subr.mxu0 0.0
        %970 = vmatpush1.msra.mxu0 0.0
        %971 = vmatprep.subr.mxu0 0.0
        %972 = vmatpush1.msra.mxu0 0.0
        %973 = vmatprep.subr.mxu0 0.0
        %974 = vmatpush1.msra.mxu0 0.0
        %975 = vmatprep.subr.mxu0 0.0
        %976 = vmatpush1.msra.mxu0 0.0
        %977 = vmatprep.subr.mxu0 0.0
        %978 = vmatpush1.msra.mxu0 0.0
        %979 = vmatprep.subr.mxu0 0.0
        %980 = vmatpush1.msra.mxu0 0.0
        %981 = vmatprep.mubr.f32.mxu0 0.0
        %982 = vmatmul.mubr.f32.gmra.mrb[0].mxu0 %v911
        %v983 = vpop.f32.mrb[0].mxu0
        %v984 = vadd.f32 0.0, %v983
        %v985 = vpop.f32.mrb[0].mxu0
        %v986 = vadd.f32 0.0, %v985
        %987 = vdwg.mxu0
        %v988 = vadd.f32 %v885, %v984
        %v989 = vadd.f32 %v886, %v986
        %v990 = vld [vmem:[#allocation2 + $0x4] sm:$0xff]
        %v991 = vld [vmem:[#allocation2 + $0xc] sm:$0xf]
        %992 = vrot.lane.b32.xlu0 %v379, 15
        %v993 = vpop.permute.xlu0 %992
        %v994 = vrot.slane %v993, 4
        %v995 = vsel %vm614, %v994, %v993
        %v998 = vmul.f32 %v990, %v995
        %v999 = vmul.f32 %v991, %v994
        %s1000 = scalar_lea.vmem %s1, 48
        %v1001 = vld [vmem:[%s1000] sm:$0xff]
        %v1004 = vcombine.high %v998, %v998
        %1005 = vrot.lane.b32.xlu0 %v998, 113
        %v1006 = vpop.permute.xlu0 %1005
        %1007 = vrot.lane.b32.xlu0 %v1004, 113
        %v1008 = vpop.permute.xlu0 %1007
        %1009 = vrot.lane.b32.xlu0 %v999, 113
        %v1010 = vpop.permute.xlu0 %1009
        %v1011 = vsel %vm597, %v1006, %v1008
        %v1012 = vsel %vm597, %v1008, %v1010
        %v1014 = vsel %vm402, %v1001, 0
        %v1016 = vsel %vm406, %v1011, 0
        %v1018 = vsel %vm406, %v1012, 0
        %1020 = vmatprep.subr.mxu0 %v1018
        %1021 = vmatpush1.msra.mxu0 %v1016
        %1022 = vmatprep.subr.mxu0 0.0
        %1023 = vmatpush1.msra.mxu0 0.0
        %1024 = vmatprep.subr.mxu0 0.0
        %1025 = vmatpush1.msra.mxu0 0.0
        %1026 = vmatprep.subr.mxu0 0.0
        %1027 = vmatpush1.msra.mxu0 0.0
        %1028 = vmatprep.subr.mxu0 0.0
        %1029 = vmatpush1.msra.mxu0 0.0
        %1030 = vmatprep.subr.mxu0 0.0
        %1031 = vmatpush1.msra.mxu0 0.0
        %1032 = vmatprep.subr.mxu0 0.0
        %1033 = vmatpush1.msra.mxu0 0.0
        %1034 = vmatprep.subr.mxu0 0.0
        %1035 = vmatpush1.msra.mxu0 0.0
        %1036 = vmatprep.subr.mxu0 0.0
        %1037 = vmatpush1.msra.mxu0 0.0
        %1038 = vmatprep.subr.mxu0 0.0
        %1039 = vmatpush1.msra.mxu0 0.0
        %1040 = vmatprep.subr.mxu0 0.0
        %1041 = vmatpush1.msra.mxu0 0.0
        %1042 = vmatprep.subr.mxu0 0.0
        %1043 = vmatpush1.msra.mxu0 0.0
        %1044 = vmatprep.subr.mxu0 0.0
        %1045 = vmatpush1.msra.mxu0 0.0
        %1046 = vmatprep.subr.mxu0 0.0
        %1047 = vmatpush1.msra.mxu0 0.0
        %1048 = vmatprep.subr.mxu0 0.0
        %1049 = vmatpush1.msra.mxu0 0.0
        %1050 = vmatprep.subr.mxu0 0.0
        %1051 = vmatpush1.msra.mxu0 0.0
        %1052 = vmatprep.subr.mxu0 0.0
        %1053 = vmatpush1.msra.mxu0 0.0
        %1054 = vmatprep.subr.mxu0 0.0
        %1055 = vmatpush1.msra.mxu0 0.0
        %1056 = vmatprep.subr.mxu0 0.0
        %1057 = vmatpush1.msra.mxu0 0.0
        %1058 = vmatprep.subr.mxu0 0.0
        %1059 = vmatpush1.msra.mxu0 0.0
        %1060 = vmatprep.subr.mxu0 0.0
        %1061 = vmatpush1.msra.mxu0 0.0
        %1062 = vmatprep.subr.mxu0 0.0
        %1063 = vmatpush1.msra.mxu0 0.0
        %1064 = vmatprep.subr.mxu0 0.0
        %1065 = vmatpush1.msra.mxu0 0.0
        %1066 = vmatprep.subr.mxu0 0.0
        %1067 = vmatpush1.msra.mxu0 0.0
        %1068 = vmatprep.subr.mxu0 0.0
        %1069 = vmatpush1.msra.mxu0 0.0
        %1070 = vmatprep.subr.mxu0 0.0
        %1071 = vmatpush1.msra.mxu0 0.0
        %1072 = vmatprep.subr.mxu0 0.0
        %1073 = vmatpush1.msra.mxu0 0.0
        %1074 = vmatprep.subr.mxu0 0.0
        %1075 = vmatpush1.msra.mxu0 0.0
        %1076 = vmatprep.subr.mxu0 0.0
        %1077 = vmatpush1.msra.mxu0 0.0
        %1078 = vmatprep.subr.mxu0 0.0
        %1079 = vmatpush1.msra.mxu0 0.0
        %1080 = vmatprep.subr.mxu0 0.0
        %1081 = vmatpush1.msra.mxu0 0.0
        %1082 = vmatprep.subr.mxu0 0.0
        %1083 = vmatpush1.msra.mxu0 0.0
        %1084 = vmatprep.mubr.f32.mxu0 0.0
        %1085 = vmatmul.mubr.f32.gmra.mrb[0].mxu0 %v1014
        %v1086 = vpop.f32.mrb[0].mxu0
        %v1087 = vadd.f32 0.0, %v1086
        %v1088 = vpop.f32.mrb[0].mxu0
        %v1089 = vadd.f32 0.0, %v1088
        %1090 = vdwg.mxu0
        %v1091 = vadd.f32 %v988, %v1087
        %v1092 = vadd.f32 %v989, %v1089
        %v1093 = vld [vmem:[#allocation2 + $0x4] sm:$0xff]
        %v1094 = vld [vmem:[#allocation2 + $0xc] sm:$0xf]
        %s1095 = scalar_lea.vmem %s1, 56
        %v1096 = vld [vmem:[%s1095] sm:$0xff]
        %v1099 = vcombine.high %v1093, %v1093
        %1100 = vrot.lane.b32.xlu0 %v1093, 112
        %v1101 = vpop.permute.xlu0 %1100
        %1102 = vrot.lane.b32.xlu0 %v1099, 112
        %v1103 = vpop.permute.xlu0 %1102
        %1104 = vrot.lane.b32.xlu0 %v1094, 112
        %v1105 = vpop.permute.xlu0 %1104
        %vm1106 = vcmask 916480
        %v1107 = vsel %vm1106, %v1101, %v1103
        %v1108 = vsel %vm1106, %v1103, %v1105
        %v1110 = vsel %vm402, %v1096, 0
        %v1112 = vsel %vm406, %v1107, 0
        %v1114 = vsel %vm406, %v1108, 0
        %1116 = vmatprep.subr.mxu0 %v1114
        %1117 = vmatpush1.msra.mxu0 %v1112
        %1118 = vmatprep.subr.mxu0 0.0
        %1119 = vmatpush1.msra.mxu0 0.0
        %1120 = vmatprep.subr.mxu0 0.0
        %1121 = vmatpush1.msra.mxu0 0.0
        %1122 = vmatprep.subr.mxu0 0.0
        %1123 = vmatpush1.msra.mxu0 0.0
        %1124 = vmatprep.subr.mxu0 0.0
        %1125 = vmatpush1.msra.mxu0 0.0
        %1126 = vmatprep.subr.mxu0 0.0
        %1127 = vmatpush1.msra.mxu0 0.0
        %1128 = vmatprep.subr.mxu0 0.0
        %1129 = vmatpush1.msra.mxu0 0.0
        %1130 = vmatprep.subr.mxu0 0.0
        %1131 = vmatpush1.msra.mxu0 0.0
        %1132 = vmatprep.subr.mxu0 0.0
        %1133 = vmatpush1.msra.mxu0 0.0
        %1134 = vmatprep.subr.mxu0 0.0
        %1135 = vmatpush1.msra.mxu0 0.0
        %1136 = vmatprep.subr.mxu0 0.0
        %1137 = vmatpush1.msra.mxu0 0.0
        %1138 = vmatprep.subr.mxu0 0.0
        %1139 = vmatpush1.msra.mxu0 0.0
        %1140 = vmatprep.subr.mxu0 0.0
        %1141 = vmatpush1.msra.mxu0 0.0
        %1142 = vmatprep.subr.mxu0 0.0
        %1143 = vmatpush1.msra.mxu0 0.0
        %1144 = vmatprep.subr.mxu0 0.0
        %1145 = vmatpush1.msra.mxu0 0.0
        %1146 = vmatprep.subr.mxu0 0.0
        %1147 = vmatpush1.msra.mxu0 0.0
        %1148 = vmatprep.subr.mxu0 0.0
        %1149 = vmatpush1.msra.mxu0 0.0
        %1150 = vmatprep.subr.mxu0 0.0
        %1151 = vmatpush1.msra.mxu0 0.0
        %1152 = vmatprep.subr.mxu0 0.0
        %1153 = vmatpush1.msra.mxu0 0.0
        %1154 = vmatprep.subr.mxu0 0.0
        %1155 = vmatpush1.msra.mxu0 0.0
        %1156 = vmatprep.subr.mxu0 0.0
        %1157 = vmatpush1.msra.mxu0 0.0
        %1158 = vmatprep.subr.mxu0 0.0
        %1159 = vmatpush1.msra.mxu0 0.0
        %1160 = vmatprep.subr.mxu0 0.0
        %1161 = vmatpush1.msra.mxu0 0.0
        %1162 = vmatprep.subr.mxu0 0.0
        %1163 = vmatpush1.msra.mxu0 0.0
        %1164 = vmatprep.subr.mxu0 0.0
        %1165 = vmatpush1.msra.mxu0 0.0
        %1166 = vmatprep.subr.mxu0 0.0
        %1167 = vmatpush1.msra.mxu0 0.0
        %1168 = vmatprep.subr.mxu0 0.0
        %1169 = vmatpush1.msra.mxu0 0.0
        %1170 = vmatprep.subr.mxu0 0.0
        %1171 = vmatpush1.msra.mxu0 0.0
        %1172 = vmatprep.subr.mxu0 0.0
        %1173 = vmatpush1.msra.mxu0 0.0
        %1174 = vmatprep.subr.mxu0 0.0
        %1175 = vmatpush1.msra.mxu0 0.0
        %1176 = vmatprep.subr.mxu0 0.0
        %1177 = vmatpush1.msra.mxu0 0.0
        %1178 = vmatprep.subr.mxu0 0.0
        %1179 = vmatpush1.msra.mxu0 0.0
        %1180 = vmatprep.mubr.f32.mxu0 0.0
        %1181 = vmatmul.mubr.f32.gmra.mrb[0].mxu0 %v1110
        %v1182 = vpop.f32.mrb[0].mxu0
        %v1183 = vadd.f32 0.0, %v1182
        %v1184 = vpop.f32.mrb[0].mxu0
        %v1185 = vadd.f32 0.0, %v1184
        %1186 = vdwg.mxu0
        %v1187 = vadd.f32 %v1091, %v1183
        %v1188 = vadd.f32 %v1092, %v1185
        %v1189 = vld [vmem:[#allocation2 + $0x4] sm:$0xff]
        %v1190 = vld [vmem:[#allocation2 + $0xc] sm:$0xf]
        %1191 = vrot.lane.b32.xlu0 %v593, 17
        %v1192 = vpop.permute.xlu0 %1191
        %v1193 = vrot.slane %v1192, 4
        %v1194 = vsel %vm399, %v1193, %v1192
        %v1197 = vmul.f32 %v1189, %v1194
        %v1198 = vmul.f32 %v1190, %v1193
        %s1199 = scalar_lea.vmem %s1, 64
        %v1200 = vld [vmem:[%s1199] sm:$0xff]
        %v1203 = vcombine.high %v1197, %v1197
        %1204 = vrot.lane.b32.xlu0 %v1197, 111
        %v1205 = vpop.permute.xlu0 %1204
        %1206 = vrot.lane.b32.xlu0 %v1203, 111
        %v1207 = vpop.permute.xlu0 %1206
        %1208 = vrot.lane.b32.xlu0 %v1198, 111
        %v1209 = vpop.permute.xlu0 %1208
        %v1210 = vsel %vm383, %v1205, %v1207
        %v1211 = vsel %vm383, %v1207, %v1209
        %v1213 = vsel %vm402, %v1200, 0
        %v1215 = vsel %vm406, %v1210, 0
        %v1217 = vsel %vm406, %v1211, 0
        %1219 = vmatprep.subr.mxu0 %v1217
        %1220 = vmatpush1.msra.mxu0 %v1215
        %1221 = vmatprep.subr.mxu0 0.0
        %1222 = vmatpush1.msra.mxu0 0.0
        %1223 = vmatprep.subr.mxu0 0.0
        %1224 = vmatpush1.msra.mxu0 0.0
        %1225 = vmatprep.subr.mxu0 0.0
        %1226 = vmatpush1.msra.mxu0 0.0
        %1227 = vmatprep.subr.mxu0 0.0
        %1228 = vmatpush1.msra.mxu0 0.0
        %1229 = vmatprep.subr.mxu0 0.0
        %1230 = vmatpush1.msra.mxu0 0.0
        %1231 = vmatprep.subr.mxu0 0.0
        %1232 = vmatpush1.msra.mxu0 0.0
        %1233 = vmatprep.subr.mxu0 0.0
        %1234 = vmatpush1.msra.mxu0 0.0
        %1235 = vmatprep.subr.mxu0 0.0
        %1236 = vmatpush1.msra.mxu0 0.0
        %1237 = vmatprep.subr.mxu0 0.0
        %1238 = vmatpush1.msra.mxu0 0.0
        %1239 = vmatprep.subr.mxu0 0.0
        %1240 = vmatpush1.msra.mxu0 0.0
        %1241 = vmatprep.subr.mxu0 0.0
        %1242 = vmatpush1.msra.mxu0 0.0
        %1243 = vmatprep.subr.mxu0 0.0
        %1244 = vmatpush1.msra.mxu0 0.0
        %1245 = vmatprep.subr.mxu0 0.0
        %1246 = vmatpush1.msra.mxu0 0.0
        %1247 = vmatprep.subr.mxu0 0.0
        %1248 = vmatpush1.msra.mxu0 0.0
        %1249 = vmatprep.subr.mxu0 0.0
        %1250 = vmatpush1.msra.mxu0 0.0
        %1251 = vmatprep.subr.mxu0 0.0
        %1252 = vmatpush1.msra.mxu0 0.0
        %1253 = vmatprep.subr.mxu0 0.0
        %1254 = vmatpush1.msra.mxu0 0.0
        %1255 = vmatprep.subr.mxu0 0.0
        %1256 = vmatpush1.msra.mxu0 0.0
        %1257 = vmatprep.subr.mxu0 0.0
        %1258 = vmatpush1.msra.mxu0 0.0
        %1259 = vmatprep.subr.mxu0 0.0
        %1260 = vmatpush1.msra.mxu0 0.0
        %1261 = vmatprep.subr.mxu0 0.0
        %1262 = vmatpush1.msra.mxu0 0.0
        %1263 = vmatprep.subr.mxu0 0.0
        %1264 = vmatpush1.msra.mxu0 0.0
        %1265 = vmatprep.subr.mxu0 0.0
        %1266 = vmatpush1.msra.mxu0 0.0
        %1267 = vmatprep.subr.mxu0 0.0
        %1268 = vmatpush1.msra.mxu0 0.0
        %1269 = vmatprep.subr.mxu0 0.0
        %1270 = vmatpush1.msra.mxu0 0.0
        %1271 = vmatprep.subr.mxu0 0.0
        %1272 = vmatpush1.msra.mxu0 0.0
        %1273 = vmatprep.subr.mxu0 0.0
        %1274 = vmatpush1.msra.mxu0 0.0
        %1275 = vmatprep.subr.mxu0 0.0
        %1276 = vmatpush1.msra.mxu0 0.0
        %1277 = vmatprep.subr.mxu0 0.0
        %1278 = vmatpush1.msra.mxu0 0.0
        %1279 = vmatprep.subr.mxu0 0.0
        %1280 = vmatpush1.msra.mxu0 0.0
        %1281 = vmatprep.subr.mxu0 0.0
        %1282 = vmatpush1.msra.mxu0 0.0
        %1283 = vmatprep.mubr.f32.mxu0 0.0
        %1284 = vmatmul.mubr.f32.gmra.mrb[0].mxu0 %v1213
        %v1285 = vpop.f32.mrb[0].mxu0
        %v1286 = vadd.f32 0.0, %v1285
        %v1287 = vpop.f32.mrb[0].mxu0
        %v1288 = vadd.f32 0.0, %v1287
        %1289 = vdwg.mxu0
        %v1290 = vadd.f32 %v1187, %v1286
        %v1291 = vadd.f32 %v1188, %v1288
        %v1292 = vmax.f32 %v1290, 0.0
        %v1293 = vmax.f32 %v1291, 0.0
        %1294 = vst [vmem:[#allocation3] sm:$0xff] 0.0
        %1295 = vst [vmem:[#allocation3 + $0x18] sm:$0xff] 0.0
        %1296 = vst [vmem:[#allocation3 + $0x8] sm:$0xff] %v1292
        %1297 = vst [vmem:[#allocation3 + $0x10] sm:$0xff] %v1293
        %v1298 = vld [vmem:[%s4] sm:$0xff]
        %1300 = vset.pattern.permute.xlu0 0
        %1301 = vperm.xlu0 %1300, %v1298
        %v1302 = vpop.permute.xlu0 %1301
        %v1304 = vld [vmem:[#allocation3] sm:$0xff]
        %v1305 = vld [vmem:[#allocation3 + $0x8] sm:$0xff]
        %v1306 = vld [vmem:[#allocation3 + $0x10] sm:$0xff]
        %v1307 = vld [vmem:[%s9] ss:$4 sm:$0x3]
        %v1309 = vlaneseq
        %v1310 = vshrl.u32 %v1309, 7
        %v1311 = vsub.s32 0, %v1310
        %v1312 = vrot.slane %v1307, %v1311
        %v1313 = vlaneseq
        %v1314 = vshrl.u32 %v1313, 7
        %v1315 = vsub.s32 1, %v1314
        %v1316 = vrot.slane %v1307, %v1315
        %1317 = vrot.lane.b32.xlu0 %v1312, 111
        %v1318 = vpop.permute.xlu0 %1317
        %1319 = vrot.lane.b32.xlu0 %v1316, 111
        %v1320 = vpop.permute.xlu0 %1319
        %v1321 = vsel %vm383, %v1318, %v1320
        %v1325 = vmul.f32 %v1304, %v1318
        %v1326 = vmul.f32 %v1305, %v1321
        %v1327 = vmul.f32 %v1306, %v1320
        %v1328 = vld [vmem:[%s3] sm:$0xff]
        %1332 = vrot.lane.b32.xlu0 %v1325, 17
        %v1333 = vpop.permute.xlu0 %1332
        %1334 = vrot.lane.b32.xlu0 %v1326, 17
        %v1335 = vpop.permute.xlu0 %1334
        %1336 = vrot.lane.b32.xlu0 %v1327, 17
        %v1337 = vpop.permute.xlu0 %1336
        %v1338 = vsel %vm399, %v1333, %v1335
        %v1339 = vsel %vm399, %v1335, %v1337
        %vm1342 = vcmask 64512
        %v1344 = vsel %vm1342, %v1328, 0
        %1346 = vmatprep.subr.mxu0 %v1339
        %1347 = vmatpush1.msra.mxu0 %v1338
        %1348 = vmatprep.subr.mxu0 0.0
        %1349 = vmatpush1.msra.mxu0 0.0
        %1350 = vmatprep.subr.mxu0 0.0
        %1351 = vmatpush1.msra.mxu0 0.0
        %1352 = vmatprep.subr.mxu0 0.0
        %1353 = vmatpush1.msra.mxu0 0.0
        %1354 = vmatprep.subr.mxu0 0.0
        %1355 = vmatpush1.msra.mxu0 0.0
        %1356 = vmatprep.subr.mxu0 0.0
        %1357 = vmatpush1.msra.mxu0 0.0
        %1358 = vmatprep.subr.mxu0 0.0
        %1359 = vmatpush1.msra.mxu0 0.0
        %1360 = vmatprep.subr.mxu0 0.0
        %1361 = vmatpush1.msra.mxu0 0.0
        %1362 = vmatprep.subr.mxu0 0.0
        %1363 = vmatpush1.msra.mxu0 0.0
        %1364 = vmatprep.subr.mxu0 0.0
        %1365 = vmatpush1.msra.mxu0 0.0
        %1366 = vmatprep.subr.mxu0 0.0
        %1367 = vmatpush1.msra.mxu0 0.0
        %1368 = vmatprep.subr.mxu0 0.0
        %1369 = vmatpush1.msra.mxu0 0.0
        %1370 = vmatprep.subr.mxu0 0.0
        %1371 = vmatpush1.msra.mxu0 0.0
        %1372 = vmatprep.subr.mxu0 0.0
        %1373 = vmatpush1.msra.mxu0 0.0
        %1374 = vmatprep.subr.mxu0 0.0
        %1375 = vmatpush1.msra.mxu0 0.0
        %1376 = vmatprep.subr.mxu0 0.0
        %1377 = vmatpush1.msra.mxu0 0.0
        %1378 = vmatprep.subr.mxu0 0.0
        %1379 = vmatpush1.msra.mxu0 0.0
        %1380 = vmatprep.subr.mxu0 0.0
        %1381 = vmatpush1.msra.mxu0 0.0
        %1382 = vmatprep.subr.mxu0 0.0
        %1383 = vmatpush1.msra.mxu0 0.0
        %1384 = vmatprep.subr.mxu0 0.0
        %1385 = vmatpush1.msra.mxu0 0.0
        %1386 = vmatprep.subr.mxu0 0.0
        %1387 = vmatpush1.msra.mxu0 0.0
        %1388 = vmatprep.subr.mxu0 0.0
        %1389 = vmatpush1.msra.mxu0 0.0
        %1390 = vmatprep.subr.mxu0 0.0
        %1391 = vmatpush1.msra.mxu0 0.0
        %1392 = vmatprep.subr.mxu0 0.0
        %1393 = vmatpush1.msra.mxu0 0.0
        %1394 = vmatprep.subr.mxu0 0.0
        %1395 = vmatpush1.msra.mxu0 0.0
        %1396 = vmatprep.subr.mxu0 0.0
        %1397 = vmatpush1.msra.mxu0 0.0
        %1398 = vmatprep.subr.mxu0 0.0
        %1399 = vmatpush1.msra.mxu0 0.0
        %1400 = vmatprep.subr.mxu0 0.0
        %1401 = vmatpush1.msra.mxu0 0.0
        %1402 = vmatprep.subr.mxu0 0.0
        %1403 = vmatpush1.msra.mxu0 0.0
        %1404 = vmatprep.subr.mxu0 0.0
        %1405 = vmatpush1.msra.mxu0 0.0
        %1406 = vmatprep.subr.mxu0 0.0
        %1407 = vmatpush1.msra.mxu0 0.0
        %1408 = vmatprep.subr.mxu0 0.0
        %1409 = vmatpush1.msra.mxu0 0.0
        %1410 = vmatprep.mubr.f32.mxu0 0.0
        %1411 = vmatmul.mubr.f32.gmra.mrb[0].mxu0 %v1344
        %v1412 = vpop.f32.mrb[0].mxu0
        %v1413 = vadd.f32 0.0, %v1412
        %v1414 = vpop.f32.mrb[0].mxu0
        %v1415 = vadd.f32 0.0, %v1414
        %1416 = vdwg.mxu0
        %v1417 = vadd.f32 %v1302, %v1413
        %v1418 = vadd.f32 %v1302, %v1415
        %s1419 = scalar_lea.vmem %s3, 8
        %v1420 = vld [vmem:[%s1419] sm:$0xff]
        %1424 = vrot.lane.b32.xlu0 %v1304, 16
        %v1425 = vpop.permute.xlu0 %1424
        %1426 = vrot.lane.b32.xlu0 %v1305, 16
        %v1427 = vpop.permute.xlu0 %1426
        %1428 = vrot.lane.b32.xlu0 %v1306, 16
        %v1429 = vpop.permute.xlu0 %1428
        %v1430 = vsel %vm497, %v1425, %v1427
        %v1431 = vsel %vm497, %v1427, %v1429
        %v1435 = vsel %vm1342, %v1420, 0
        %1437 = vmatprep.subr.mxu0 %v1431
        %1438 = vmatpush1.msra.mxu0 %v1430
        %1439 = vmatprep.subr.mxu0 0.0
        %1440 = vmatpush1.msra.mxu0 0.0
        %1441 = vmatprep.subr.mxu0 0.0
        %1442 = vmatpush1.msra.mxu0 0.0
        %1443 = vmatprep.subr.mxu0 0.0
        %1444 = vmatpush1.msra.mxu0 0.0
        %1445 = vmatprep.subr.mxu0 0.0
        %1446 = vmatpush1.msra.mxu0 0.0
        %1447 = vmatprep.subr.mxu0 0.0
        %1448 = vmatpush1.msra.mxu0 0.0
        %1449 = vmatprep.subr.mxu0 0.0
        %1450 = vmatpush1.msra.mxu0 0.0
        %1451 = vmatprep.subr.mxu0 0.0
        %1452 = vmatpush1.msra.mxu0 0.0
        %1453 = vmatprep.subr.mxu0 0.0
        %1454 = vmatpush1.msra.mxu0 0.0
        %1455 = vmatprep.subr.mxu0 0.0
        %1456 = vmatpush1.msra.mxu0 0.0
        %1457 = vmatprep.subr.mxu0 0.0
        %1458 = vmatpush1.msra.mxu0 0.0
        %1459 = vmatprep.subr.mxu0 0.0
        %1460 = vmatpush1.msra.mxu0 0.0
        %1461 = vmatprep.subr.mxu0 0.0
        %1462 = vmatpush1.msra.mxu0 0.0
        %1463 = vmatprep.subr.mxu0 0.0
        %1464 = vmatpush1.msra.mxu0 0.0
        %1465 = vmatprep.subr.mxu0 0.0
        %1466 = vmatpush1.msra.mxu0 0.0
        %1467 = vmatprep.subr.mxu0 0.0
        %1468 = vmatpush1.msra.mxu0 0.0
        %1469 = vmatprep.subr.mxu0 0.0
        %1470 = vmatpush1.msra.mxu0 0.0
        %1471 = vmatprep.subr.mxu0 0.0
        %1472 = vmatpush1.msra.mxu0 0.0
        %1473 = vmatprep.subr.mxu0 0.0
        %1474 = vmatpush1.msra.mxu0 0.0
        %1475 = vmatprep.subr.mxu0 0.0
        %1476 = vmatpush1.msra.mxu0 0.0
        %1477 = vmatprep.subr.mxu0 0.0
        %1478 = vmatpush1.msra.mxu0 0.0
        %1479 = vmatprep.subr.mxu0 0.0
        %1480 = vmatpush1.msra.mxu0 0.0
        %1481 = vmatprep.subr.mxu0 0.0
        %1482 = vmatpush1.msra.mxu0 0.0
        %1483 = vmatprep.subr.mxu0 0.0
        %1484 = vmatpush1.msra.mxu0 0.0
        %1485 = vmatprep.subr.mxu0 0.0
        %1486 = vmatpush1.msra.mxu0 0.0
        %1487 = vmatprep.subr.mxu0 0.0
        %1488 = vmatpush1.msra.mxu0 0.0
        %1489 = vmatprep.subr.mxu0 0.0
        %1490 = vmatpush1.msra.mxu0 0.0
        %1491 = vmatprep.subr.mxu0 0.0
        %1492 = vmatpush1.msra.mxu0 0.0
        %1493 = vmatprep.subr.mxu0 0.0
        %1494 = vmatpush1.msra.mxu0 0.0
        %1495 = vmatprep.subr.mxu0 0.0
        %1496 = vmatpush1.msra.mxu0 0.0
        %1497 = vmatprep.subr.mxu0 0.0
        %1498 = vmatpush1.msra.mxu0 0.0
        %1499 = vmatprep.subr.mxu0 0.0
        %1500 = vmatpush1.msra.mxu0 0.0
        %1501 = vmatprep.mubr.f32.mxu0 0.0
        %1502 = vmatmul.mubr.f32.gmra.mrb[0].mxu0 %v1435
        %v1503 = vpop.f32.mrb[0].mxu0
        %v1504 = vadd.f32 0.0, %v1503
        %v1505 = vpop.f32.mrb[0].mxu0
        %v1506 = vadd.f32 0.0, %v1505
        %1507 = vdwg.mxu0
        %v1508 = vadd.f32 %v1417, %v1504
        %v1509 = vadd.f32 %v1418, %v1506
        %v1510 = vld [vmem:[%s582] ss:$4 sm:$0x3]
        %v1512 = vlaneseq
        %v1513 = vshrl.u32 %v1512, 7
        %v1514 = vsub.s32 0, %v1513
        %v1515 = vrot.slane %v1510, %v1514
        %v1516 = vlaneseq
        %v1517 = vshrl.u32 %v1516, 7
        %v1518 = vsub.s32 1, %v1517
        %v1519 = vrot.slane %v1510, %v1518
        %1520 = vrot.lane.b32.xlu0 %v1515, 113
        %v1521 = vpop.permute.xlu0 %1520
        %1522 = vrot.lane.b32.xlu0 %v1519, 113
        %v1523 = vpop.permute.xlu0 %1522
        %v1524 = vsel %vm597, %v1521, %v1523
        %v1528 = vmul.f32 %v1304, %v1521
        %v1529 = vmul.f32 %v1305, %v1524
        %v1530 = vmul.f32 %v1306, %v1523
        %s1531 = scalar_lea.vmem %s3, 16
        %v1532 = vld [vmem:[%s1531] sm:$0xff]
        %1536 = vrot.lane.b32.xlu0 %v1528, 15
        %v1537 = vpop.permute.xlu0 %1536
        %1538 = vrot.lane.b32.xlu0 %v1529, 15
        %v1539 = vpop.permute.xlu0 %1538
        %1540 = vrot.lane.b32.xlu0 %v1530, 15
        %v1541 = vpop.permute.xlu0 %1540
        %v1542 = vsel %vm614, %v1537, %v1539
        %v1543 = vsel %vm614, %v1539, %v1541
        %v1547 = vsel %vm1342, %v1532, 0
        %1549 = vmatprep.subr.mxu0 %v1543
        %1550 = vmatpush1.msra.mxu0 %v1542
        %1551 = vmatprep.subr.mxu0 0.0
        %1552 = vmatpush1.msra.mxu0 0.0
        %1553 = vmatprep.subr.mxu0 0.0
        %1554 = vmatpush1.msra.mxu0 0.0
        %1555 = vmatprep.subr.mxu0 0.0
        %1556 = vmatpush1.msra.mxu0 0.0
        %1557 = vmatprep.subr.mxu0 0.0
        %1558 = vmatpush1.msra.mxu0 0.0
        %1559 = vmatprep.subr.mxu0 0.0
        %1560 = vmatpush1.msra.mxu0 0.0
        %1561 = vmatprep.subr.mxu0 0.0
        %1562 = vmatpush1.msra.mxu0 0.0
        %1563 = vmatprep.subr.mxu0 0.0
        %1564 = vmatpush1.msra.mxu0 0.0
        %1565 = vmatprep.subr.mxu0 0.0
        %1566 = vmatpush1.msra.mxu0 0.0
        %1567 = vmatprep.subr.mxu0 0.0
        %1568 = vmatpush1.msra.mxu0 0.0
        %1569 = vmatprep.subr.mxu0 0.0
        %1570 = vmatpush1.msra.mxu0 0.0
        %1571 = vmatprep.subr.mxu0 0.0
        %1572 = vmatpush1.msra.mxu0 0.0
        %1573 = vmatprep.subr.mxu0 0.0
        %1574 = vmatpush1.msra.mxu0 0.0
        %1575 = vmatprep.subr.mxu0 0.0
        %1576 = vmatpush1.msra.mxu0 0.0
        %1577 = vmatprep.subr.mxu0 0.0
        %1578 = vmatpush1.msra.mxu0 0.0
        %1579 = vmatprep.subr.mxu0 0.0
        %1580 = vmatpush1.msra.mxu0 0.0
        %1581 = vmatprep.subr.mxu0 0.0
        %1582 = vmatpush1.msra.mxu0 0.0
        %1583 = vmatprep.subr.mxu0 0.0
        %1584 = vmatpush1.msra.mxu0 0.0
        %1585 = vmatprep.subr.mxu0 0.0
        %1586 = vmatpush1.msra.mxu0 0.0
        %1587 = vmatprep.subr.mxu0 0.0
        %1588 = vmatpush1.msra.mxu0 0.0
        %1589 = vmatprep.subr.mxu0 0.0
        %1590 = vmatpush1.msra.mxu0 0.0
        %1591 = vmatprep.subr.mxu0 0.0
        %1592 = vmatpush1.msra.mxu0 0.0
        %1593 = vmatprep.subr.mxu0 0.0
        %1594 = vmatpush1.msra.mxu0 0.0
        %1595 = vmatprep.subr.mxu0 0.0
        %1596 = vmatpush1.msra.mxu0 0.0
        %1597 = vmatprep.subr.mxu0 0.0
        %1598 = vmatpush1.msra.mxu0 0.0
        %1599 = vmatprep.subr.mxu0 0.0
        %1600 = vmatpush1.msra.mxu0 0.0
        %1601 = vmatprep.subr.mxu0 0.0
        %1602 = vmatpush1.msra.mxu0 0.0
        %1603 = vmatprep.subr.mxu0 0.0
        %1604 = vmatpush1.msra.mxu0 0.0
        %1605 = vmatprep.subr.mxu0 0.0
        %1606 = vmatpush1.msra.mxu0 0.0
        %1607 = vmatprep.subr.mxu0 0.0
        %1608 = vmatpush1.msra.mxu0 0.0
        %1609 = vmatprep.subr.mxu0 0.0
        %1610 = vmatpush1.msra.mxu0 0.0
        %1611 = vmatprep.subr.mxu0 0.0
        %1612 = vmatpush1.msra.mxu0 0.0
        %1613 = vmatprep.mubr.f32.mxu0 0.0
        %1614 = vmatmul.mubr.f32.gmra.mrb[0].mxu0 %v1547
        %v1615 = vpop.f32.mrb[0].mxu0
        %v1616 = vadd.f32 0.0, %v1615
        %v1617 = vpop.f32.mrb[0].mxu0
        %v1618 = vadd.f32 0.0, %v1617
        %1619 = vdwg.mxu0
        %v1620 = vadd.f32 %v1508, %v1616
        %v1621 = vadd.f32 %v1509, %v1618
        %1622 = vrot.lane.b32.xlu0 %v1312, 127
        %v1623 = vpop.permute.xlu0 %1622
        %1624 = vrot.lane.b32.xlu0 %v1316, 127
        %v1625 = vpop.permute.xlu0 %1624
        %v1626 = vsel %vm702, %v1623, %v1625
        %v1630 = vmul.f32 %v1304, %v1623
        %v1631 = vmul.f32 %v1305, %v1626
        %v1632 = vmul.f32 %v1306, %v1625
        %s1633 = scalar_lea.vmem %s3, 24
        %v1634 = vld [vmem:[%s1633] sm:$0xff]
        %1638 = vrot.lane.b32.xlu0 %v1630, 1
        %v1639 = vpop.permute.xlu0 %1638
        %1640 = vrot.lane.b32.xlu0 %v1631, 1
        %v1641 = vpop.permute.xlu0 %1640
        %1642 = vrot.lane.b32.xlu0 %v1632, 1
        %v1643 = vpop.permute.xlu0 %1642
        %v1644 = vsel %vm719, %v1639, %v1641
        %v1645 = vsel %vm719, %v1641, %v1643
        %v1649 = vsel %vm1342, %v1634, 0
        %1651 = vmatprep.subr.mxu0 %v1645
        %1652 = vmatpush1.msra.mxu0 %v1644
        %1653 = vmatprep.subr.mxu0 0.0
        %1654 = vmatpush1.msra.mxu0 0.0
        %1655 = vmatprep.subr.mxu0 0.0
        %1656 = vmatpush1.msra.mxu0 0.0
        %1657 = vmatprep.subr.mxu0 0.0
        %1658 = vmatpush1.msra.mxu0 0.0
        %1659 = vmatprep.subr.mxu0 0.0
        %1660 = vmatpush1.msra.mxu0 0.0
        %1661 = vmatprep.subr.mxu0 0.0
        %1662 = vmatpush1.msra.mxu0 0.0
        %1663 = vmatprep.subr.mxu0 0.0
        %1664 = vmatpush1.msra.mxu0 0.0
        %1665 = vmatprep.subr.mxu0 0.0
        %1666 = vmatpush1.msra.mxu0 0.0
        %1667 = vmatprep.subr.mxu0 0.0
        %1668 = vmatpush1.msra.mxu0 0.0
        %1669 = vmatprep.subr.mxu0 0.0
        %1670 = vmatpush1.msra.mxu0 0.0
        %1671 = vmatprep.subr.mxu0 0.0
        %1672 = vmatpush1.msra.mxu0 0.0
        %1673 = vmatprep.subr.mxu0 0.0
        %1674 = vmatpush1.msra.mxu0 0.0
        %1675 = vmatprep.subr.mxu0 0.0
        %1676 = vmatpush1.msra.mxu0 0.0
        %1677 = vmatprep.subr.mxu0 0.0
        %1678 = vmatpush1.msra.mxu0 0.0
        %1679 = vmatprep.subr.mxu0 0.0
        %1680 = vmatpush1.msra.mxu0 0.0
        %1681 = vmatprep.subr.mxu0 0.0
        %1682 = vmatpush1.msra.mxu0 0.0
        %1683 = vmatprep.subr.mxu0 0.0
        %1684 = vmatpush1.msra.mxu0 0.0
        %1685 = vmatprep.subr.mxu0 0.0
        %1686 = vmatpush1.msra.mxu0 0.0
        %1687 = vmatprep.subr.mxu0 0.0
        %1688 = vmatpush1.msra.mxu0 0.0
        %1689 = vmatprep.subr.mxu0 0.0
        %1690 = vmatpush1.msra.mxu0 0.0
        %1691 = vmatprep.subr.mxu0 0.0
        %1692 = vmatpush1.msra.mxu0 0.0
        %1693 = vmatprep.subr.mxu0 0.0
        %1694 = vmatpush1.msra.mxu0 0.0
        %1695 = vmatprep.subr.mxu0 0.0
        %1696 = vmatpush1.msra.mxu0 0.0
        %1697 = vmatprep.subr.mxu0 0.0
        %1698 = vmatpush1.msra.mxu0 0.0
        %1699 = vmatprep.subr.mxu0 0.0
        %1700 = vmatpush1.msra.mxu0 0.0
        %1701 = vmatprep.subr.mxu0 0.0
        %1702 = vmatpush1.msra.mxu0 0.0
        %1703 = vmatprep.subr.mxu0 0.0
        %1704 = vmatpush1.msra.mxu0 0.0
        %1705 = vmatprep.subr.mxu0 0.0
        %1706 = vmatpush1.msra.mxu0 0.0
        %1707 = vmatprep.subr.mxu0 0.0
        %1708 = vmatpush1.msra.mxu0 0.0
        %1709 = vmatprep.subr.mxu0 0.0
        %1710 = vmatpush1.msra.mxu0 0.0
        %1711 = vmatprep.subr.mxu0 0.0
        %1712 = vmatpush1.msra.mxu0 0.0
        %1713 = vmatprep.subr.mxu0 0.0
        %1714 = vmatpush1.msra.mxu0 0.0
        %1715 = vmatprep.mubr.f32.mxu0 0.0
        %1716 = vmatmul.mubr.f32.gmra.mrb[0].mxu0 %v1649
        %v1717 = vpop.f32.mrb[0].mxu0
        %v1718 = vadd.f32 0.0, %v1717
        %v1719 = vpop.f32.mrb[0].mxu0
        %v1720 = vadd.f32 0.0, %v1719
        %1721 = vdwg.mxu0
        %v1722 = vadd.f32 %v1620, %v1718
        %v1723 = vadd.f32 %v1621, %v1720
        %s1724 = scalar_lea.vmem %s3, 32
        %v1725 = vld [vmem:[%s1724] sm:$0xff]
        %v1727 = vsel %vm1342, %v1725, 0
        %1729 = vmatprep.subr.mxu0 %v1306
        %1730 = vmatpush1.msra.mxu0 %v1305
        %1731 = vmatprep.subr.mxu0 0.0
        %1732 = vmatpush1.msra.mxu0 0.0
        %1733 = vmatprep.subr.mxu0 0.0
        %1734 = vmatpush1.msra.mxu0 0.0
        %1735 = vmatprep.subr.mxu0 0.0
        %1736 = vmatpush1.msra.mxu0 0.0
        %1737 = vmatprep.subr.mxu0 0.0
        %1738 = vmatpush1.msra.mxu0 0.0
        %1739 = vmatprep.subr.mxu0 0.0
        %1740 = vmatpush1.msra.mxu0 0.0
        %1741 = vmatprep.subr.mxu0 0.0
        %1742 = vmatpush1.msra.mxu0 0.0
        %1743 = vmatprep.subr.mxu0 0.0
        %1744 = vmatpush1.msra.mxu0 0.0
        %1745 = vmatprep.subr.mxu0 0.0
        %1746 = vmatpush1.msra.mxu0 0.0
        %1747 = vmatprep.subr.mxu0 0.0
        %1748 = vmatpush1.msra.mxu0 0.0
        %1749 = vmatprep.subr.mxu0 0.0
        %1750 = vmatpush1.msra.mxu0 0.0
        %1751 = vmatprep.subr.mxu0 0.0
        %1752 = vmatpush1.msra.mxu0 0.0
        %1753 = vmatprep.subr.mxu0 0.0
        %1754 = vmatpush1.msra.mxu0 0.0
        %1755 = vmatprep.subr.mxu0 0.0
        %1756 = vmatpush1.msra.mxu0 0.0
        %1757 = vmatprep.subr.mxu0 0.0
        %1758 = vmatpush1.msra.mxu0 0.0
        %1759 = vmatprep.subr.mxu0 0.0
        %1760 = vmatpush1.msra.mxu0 0.0
        %1761 = vmatprep.subr.mxu0 0.0
        %1762 = vmatpush1.msra.mxu0 0.0
        %1763 = vmatprep.subr.mxu0 0.0
        %1764 = vmatpush1.msra.mxu0 0.0
        %1765 = vmatprep.subr.mxu0 0.0
        %1766 = vmatpush1.msra.mxu0 0.0
        %1767 = vmatprep.subr.mxu0 0.0
        %1768 = vmatpush1.msra.mxu0 0.0
        %1769 = vmatprep.subr.mxu0 0.0
        %1770 = vmatpush1.msra.mxu0 0.0
        %1771 = vmatprep.subr.mxu0 0.0
        %1772 = vmatpush1.msra.mxu0 0.0
        %1773 = vmatprep.subr.mxu0 0.0
        %1774 = vmatpush1.msra.mxu0 0.0
        %1775 = vmatprep.subr.mxu0 0.0
        %1776 = vmatpush1.msra.mxu0 0.0
        %1777 = vmatprep.subr.mxu0 0.0
        %1778 = vmatpush1.msra.mxu0 0.0
        %1779 = vmatprep.subr.mxu0 0.0
        %1780 = vmatpush1.msra.mxu0 0.0
        %1781 = vmatprep.subr.mxu0 0.0
        %1782 = vmatpush1.msra.mxu0 0.0
        %1783 = vmatprep.subr.mxu0 0.0
        %1784 = vmatpush1.msra.mxu0 0.0
        %1785 = vmatprep.subr.mxu0 0.0
        %1786 = vmatpush1.msra.mxu0 0.0
        %1787 = vmatprep.subr.mxu0 0.0
        %1788 = vmatpush1.msra.mxu0 0.0
        %1789 = vmatprep.subr.mxu0 0.0
        %1790 = vmatpush1.msra.mxu0 0.0
        %1791 = vmatprep.subr.mxu0 0.0
        %1792 = vmatpush1.msra.mxu0 0.0
        %1793 = vmatprep.mubr.f32.mxu0 0.0
        %1794 = vmatmul.mubr.f32.gmra.mrb[0].mxu0 %v1727
        %v1795 = vpop.f32.mrb[0].mxu0
        %v1796 = vadd.f32 0.0, %v1795
        %v1797 = vpop.f32.mrb[0].mxu0
        %v1798 = vadd.f32 0.0, %v1797
        %1799 = vdwg.mxu0
        %v1800 = vadd.f32 %v1722, %v1796
        %v1801 = vadd.f32 %v1723, %v1798
        %v1802 = vld [vmem:[#allocation3 + $0x8] sm:$0xff]
        %v1803 = vld [vmem:[#allocation3 + $0x10] sm:$0xff]
        %v1804 = vld [vmem:[#allocation3 + $0x18] sm:$0xff]
        %1805 = vrot.lane.b32.xlu0 %v1515, 1
        %v1806 = vpop.permute.xlu0 %1805
        %1807 = vrot.lane.b32.xlu0 %v1519, 1
        %v1808 = vpop.permute.xlu0 %1807
        %v1809 = vsel %vm719, %v1806, %v1808
        %v1813 = vmul.f32 %v1802, %v1806
        %v1814 = vmul.f32 %v1803, %v1809
        %v1815 = vmul.f32 %v1804, %v1808
        %s1816 = scalar_lea.vmem %s3, 40
        %v1817 = vld [vmem:[%s1816] sm:$0xff]
        %1821 = vrot.lane.b32.xlu0 %v1813, 127
        %v1822 = vpop.permute.xlu0 %1821
        %1823 = vrot.lane.b32.xlu0 %v1814, 127
        %v1824 = vpop.permute.xlu0 %1823
        %1825 = vrot.lane.b32.xlu0 %v1815, 127
        %v1826 = vpop.permute.xlu0 %1825
        %v1827 = vsel %vm702, %v1822, %v1824
        %v1828 = vsel %vm702, %v1824, %v1826
        %v1832 = vsel %vm1342, %v1817, 0
        %1834 = vmatprep.subr.mxu0 %v1828
        %1835 = vmatpush1.msra.mxu0 %v1827
        %1836 = vmatprep.subr.mxu0 0.0
        %1837 = vmatpush1.msra.mxu0 0.0
        %1838 = vmatprep.subr.mxu0 0.0
        %1839 = vmatpush1.msra.mxu0 0.0
        %1840 = vmatprep.subr.mxu0 0.0
        %1841 = vmatpush1.msra.mxu0 0.0
        %1842 = vmatprep.subr.mxu0 0.0
        %1843 = vmatpush1.msra.mxu0 0.0
        %1844 = vmatprep.subr.mxu0 0.0
        %1845 = vmatpush1.msra.mxu0 0.0
        %1846 = vmatprep.subr.mxu0 0.0
        %1847 = vmatpush1.msra.mxu0 0.0
        %1848 = vmatprep.subr.mxu0 0.0
        %1849 = vmatpush1.msra.mxu0 0.0
        %1850 = vmatprep.subr.mxu0 0.0
        %1851 = vmatpush1.msra.mxu0 0.0
        %1852 = vmatprep.subr.mxu0 0.0
        %1853 = vmatpush1.msra.mxu0 0.0
        %1854 = vmatprep.subr.mxu0 0.0
        %1855 = vmatpush1.msra.mxu0 0.0
        %1856 = vmatprep.subr.mxu0 0.0
        %1857 = vmatpush1.msra.mxu0 0.0
        %1858 = vmatprep.subr.mxu0 0.0
        %1859 = vmatpush1.msra.mxu0 0.0
        %1860 = vmatprep.subr.mxu0 0.0
        %1861 = vmatpush1.msra.mxu0 0.0
        %1862 = vmatprep.subr.mxu0 0.0
        %1863 = vmatpush1.msra.mxu0 0.0
        %1864 = vmatprep.subr.mxu0 0.0
        %1865 = vmatpush1.msra.mxu0 0.0
        %1866 = vmatprep.subr.mxu0 0.0
        %1867 = vmatpush1.msra.mxu0 0.0
        %1868 = vmatprep.subr.mxu0 0.0
        %1869 = vmatpush1.msra.mxu0 0.0
        %1870 = vmatprep.subr.mxu0 0.0
        %1871 = vmatpush1.msra.mxu0 0.0
        %1872 = vmatprep.subr.mxu0 0.0
        %1873 = vmatpush1.msra.mxu0 0.0
        %1874 = vmatprep.subr.mxu0 0.0
        %1875 = vmatpush1.msra.mxu0 0.0
        %1876 = vmatprep.subr.mxu0 0.0
        %1877 = vmatpush1.msra.mxu0 0.0
        %1878 = vmatprep.subr.mxu0 0.0
        %1879 = vmatpush1.msra.mxu0 0.0
        %1880 = vmatprep.subr.mxu0 0.0
        %1881 = vmatpush1.msra.mxu0 0.0
        %1882 = vmatprep.subr.mxu0 0.0
        %1883 = vmatpush1.msra.mxu0 0.0
        %1884 = vmatprep.subr.mxu0 0.0
        %1885 = vmatpush1.msra.mxu0 0.0
        %1886 = vmatprep.subr.mxu0 0.0
        %1887 = vmatpush1.msra.mxu0 0.0
        %1888 = vmatprep.subr.mxu0 0.0
        %1889 = vmatpush1.msra.mxu0 0.0
        %1890 = vmatprep.subr.mxu0 0.0
        %1891 = vmatpush1.msra.mxu0 0.0
        %1892 = vmatprep.subr.mxu0 0.0
        %1893 = vmatpush1.msra.mxu0 0.0
        %1894 = vmatprep.subr.mxu0 0.0
        %1895 = vmatpush1.msra.mxu0 0.0
        %1896 = vmatprep.subr.mxu0 0.0
        %1897 = vmatpush1.msra.mxu0 0.0
        %1898 = vmatprep.mubr.f32.mxu0 0.0
        %1899 = vmatmul.mubr.f32.gmra.mrb[0].mxu0 %v1832
        %v1900 = vpop.f32.mrb[0].mxu0
        %v1901 = vadd.f32 0.0, %v1900
        %v1902 = vpop.f32.mrb[0].mxu0
        %v1903 = vadd.f32 0.0, %v1902
        %1904 = vdwg.mxu0
        %v1905 = vadd.f32 %v1800, %v1901
        %v1906 = vadd.f32 %v1801, %v1903
        %1907 = vrot.lane.b32.xlu0 %v1312, 15
        %v1908 = vpop.permute.xlu0 %1907
        %1909 = vrot.lane.b32.xlu0 %v1316, 15
        %v1910 = vpop.permute.xlu0 %1909
        %v1911 = vsel %vm614, %v1908, %v1910
        %v1915 = vmul.f32 %v1802, %v1908
        %v1916 = vmul.f32 %v1803, %v1911
        %v1917 = vmul.f32 %v1804, %v1910
        %s1918 = scalar_lea.vmem %s3, 48
        %v1919 = vld [vmem:[%s1918] sm:$0xff]
        %1923 = vrot.lane.b32.xlu0 %v1915, 113
        %v1924 = vpop.permute.xlu0 %1923
        %1925 = vrot.lane.b32.xlu0 %v1916, 113
        %v1926 = vpop.permute.xlu0 %1925
        %1927 = vrot.lane.b32.xlu0 %v1917, 113
        %v1928 = vpop.permute.xlu0 %1927
        %v1929 = vsel %vm597, %v1924, %v1926
        %v1930 = vsel %vm597, %v1926, %v1928
        %v1934 = vsel %vm1342, %v1919, 0
        %1936 = vmatprep.subr.mxu0 %v1930
        %1937 = vmatpush1.msra.mxu0 %v1929
        %1938 = vmatprep.subr.mxu0 0.0
        %1939 = vmatpush1.msra.mxu0 0.0
        %1940 = vmatprep.subr.mxu0 0.0
        %1941 = vmatpush1.msra.mxu0 0.0
        %1942 = vmatprep.subr.mxu0 0.0
        %1943 = vmatpush1.msra.mxu0 0.0
        %1944 = vmatprep.subr.mxu0 0.0
        %1945 = vmatpush1.msra.mxu0 0.0
        %1946 = vmatprep.subr.mxu0 0.0
        %1947 = vmatpush1.msra.mxu0 0.0
        %1948 = vmatprep.subr.mxu0 0.0
        %1949 = vmatpush1.msra.mxu0 0.0
        %1950 = vmatprep.subr.mxu0 0.0
        %1951 = vmatpush1.msra.mxu0 0.0
        %1952 = vmatprep.subr.mxu0 0.0
        %1953 = vmatpush1.msra.mxu0 0.0
        %1954 = vmatprep.subr.mxu0 0.0
        %1955 = vmatpush1.msra.mxu0 0.0
        %1956 = vmatprep.subr.mxu0 0.0
        %1957 = vmatpush1.msra.mxu0 0.0
        %1958 = vmatprep.subr.mxu0 0.0
        %1959 = vmatpush1.msra.mxu0 0.0
        %1960 = vmatprep.subr.mxu0 0.0
        %1961 = vmatpush1.msra.mxu0 0.0
        %1962 = vmatprep.subr.mxu0 0.0
        %1963 = vmatpush1.msra.mxu0 0.0
        %1964 = vmatprep.subr.mxu0 0.0
        %1965 = vmatpush1.msra.mxu0 0.0
        %1966 = vmatprep.subr.mxu0 0.0
        %1967 = vmatpush1.msra.mxu0 0.0
        %1968 = vmatprep.subr.mxu0 0.0
        %1969 = vmatpush1.msra.mxu0 0.0
        %1970 = vmatprep.subr.mxu0 0.0
        %1971 = vmatpush1.msra.mxu0 0.0
        %1972 = vmatprep.subr.mxu0 0.0
        %1973 = vmatpush1.msra.mxu0 0.0
        %1974 = vmatprep.subr.mxu0 0.0
        %1975 = vmatpush1.msra.mxu0 0.0
        %1976 = vmatprep.subr.mxu0 0.0
        %1977 = vmatpush1.msra.mxu0 0.0
        %1978 = vmatprep.subr.mxu0 0.0
        %1979 = vmatpush1.msra.mxu0 0.0
        %1980 = vmatprep.subr.mxu0 0.0
        %1981 = vmatpush1.msra.mxu0 0.0
        %1982 = vmatprep.subr.mxu0 0.0
        %1983 = vmatpush1.msra.mxu0 0.0
        %1984 = vmatprep.subr.mxu0 0.0
        %1985 = vmatpush1.msra.mxu0 0.0
        %1986 = vmatprep.subr.mxu0 0.0
        %1987 = vmatpush1.msra.mxu0 0.0
        %1988 = vmatprep.subr.mxu0 0.0
        %1989 = vmatpush1.msra.mxu0 0.0
        %1990 = vmatprep.subr.mxu0 0.0
        %1991 = vmatpush1.msra.mxu0 0.0
        %1992 = vmatprep.subr.mxu0 0.0
        %1993 = vmatpush1.msra.mxu0 0.0
        %1994 = vmatprep.subr.mxu0 0.0
        %1995 = vmatpush1.msra.mxu0 0.0
        %1996 = vmatprep.subr.mxu0 0.0
        %1997 = vmatpush1.msra.mxu0 0.0
        %1998 = vmatprep.subr.mxu0 0.0
        %1999 = vmatpush1.msra.mxu0 0.0
        %2000 = vmatprep.mubr.f32.mxu0 0.0
        %2001 = vmatmul.mubr.f32.gmra.mrb[0].mxu0 %v1934
        %v2002 = vpop.f32.mrb[0].mxu0
        %v2003 = vadd.f32 0.0, %v2002
        %v2004 = vpop.f32.mrb[0].mxu0
        %v2005 = vadd.f32 0.0, %v2004
        %2006 = vdwg.mxu0
        %v2007 = vadd.f32 %v1905, %v2003
        %v2008 = vadd.f32 %v1906, %v2005
        %s2009 = scalar_lea.vmem %s3, 56
        %v2010 = vld [vmem:[%s2009] sm:$0xff]
        %2014 = vrot.lane.b32.xlu0 %v1802, 112
        %v2015 = vpop.permute.xlu0 %2014
        %2016 = vrot.lane.b32.xlu0 %v1803, 112
        %v2017 = vpop.permute.xlu0 %2016
        %2018 = vrot.lane.b32.xlu0 %v1804, 112
        %v2019 = vpop.permute.xlu0 %2018
        %v2020 = vsel %vm1106, %v2015, %v2017
        %v2021 = vsel %vm1106, %v2017, %v2019
        %v2025 = vsel %vm1342, %v2010, 0
        %2027 = vmatprep.subr.mxu0 %v2021
        %2028 = vmatpush1.msra.mxu0 %v2020
        %2029 = vmatprep.subr.mxu0 0.0
        %2030 = vmatpush1.msra.mxu0 0.0
        %2031 = vmatprep.subr.mxu0 0.0
        %2032 = vmatpush1.msra.mxu0 0.0
        %2033 = vmatprep.subr.mxu0 0.0
        %2034 = vmatpush1.msra.mxu0 0.0
        %2035 = vmatprep.subr.mxu0 0.0
        %2036 = vmatpush1.msra.mxu0 0.0
        %2037 = vmatprep.subr.mxu0 0.0
        %2038 = vmatpush1.msra.mxu0 0.0
        %2039 = vmatprep.subr.mxu0 0.0
        %2040 = vmatpush1.msra.mxu0 0.0
        %2041 = vmatprep.subr.mxu0 0.0
        %2042 = vmatpush1.msra.mxu0 0.0
        %2043 = vmatprep.subr.mxu0 0.0
        %2044 = vmatpush1.msra.mxu0 0.0
        %2045 = vmatprep.subr.mxu0 0.0
        %2046 = vmatpush1.msra.mxu0 0.0
        %2047 = vmatprep.subr.mxu0 0.0
        %2048 = vmatpush1.msra.mxu0 0.0
        %2049 = vmatprep.subr.mxu0 0.0
        %2050 = vmatpush1.msra.mxu0 0.0
        %2051 = vmatprep.subr.mxu0 0.0
        %2052 = vmatpush1.msra.mxu0 0.0
        %2053 = vmatprep.subr.mxu0 0.0
        %2054 = vmatpush1.msra.mxu0 0.0
        %2055 = vmatprep.subr.mxu0 0.0
        %2056 = vmatpush1.msra.mxu0 0.0
        %2057 = vmatprep.subr.mxu0 0.0
        %2058 = vmatpush1.msra.mxu0 0.0
        %2059 = vmatprep.subr.mxu0 0.0
        %2060 = vmatpush1.msra.mxu0 0.0
        %2061 = vmatprep.subr.mxu0 0.0
        %2062 = vmatpush1.msra.mxu0 0.0
        %2063 = vmatprep.subr.mxu0 0.0
        %2064 = vmatpush1.msra.mxu0 0.0
        %2065 = vmatprep.subr.mxu0 0.0
        %2066 = vmatpush1.msra.mxu0 0.0
        %2067 = vmatprep.subr.mxu0 0.0
        %2068 = vmatpush1.msra.mxu0 0.0
        %2069 = vmatprep.subr.mxu0 0.0
        %2070 = vmatpush1.msra.mxu0 0.0
        %2071 = vmatprep.subr.mxu0 0.0
        %2072 = vmatpush1.msra.mxu0 0.0
        %2073 = vmatprep.subr.mxu0 0.0
        %2074 = vmatpush1.msra.mxu0 0.0
        %2075 = vmatprep.subr.mxu0 0.0
        %2076 = vmatpush1.msra.mxu0 0.0
        %2077 = vmatprep.subr.mxu0 0.0
        %2078 = vmatpush1.msra.mxu0 0.0
        %2079 = vmatprep.subr.mxu0 0.0
        %2080 = vmatpush1.msra.mxu0 0.0
        %2081 = vmatprep.subr.mxu0 0.0
        %2082 = vmatpush1.msra.mxu0 0.0
        %2083 = vmatprep.subr.mxu0 0.0
        %2084 = vmatpush1.msra.mxu0 0.0
        %2085 = vmatprep.subr.mxu0 0.0
        %2086 = vmatpush1.msra.mxu0 0.0
        %2087 = vmatprep.subr.mxu0 0.0
        %2088 = vmatpush1.msra.mxu0 0.0
        %2089 = vmatprep.subr.mxu0 0.0
        %2090 = vmatpush1.msra.mxu0 0.0
        %2091 = vmatprep.mubr.f32.mxu0 0.0
        %2092 = vmatmul.mubr.f32.gmra.mrb[0].mxu0 %v2025
        %v2093 = vpop.f32.mrb[0].mxu0
        %v2094 = vadd.f32 0.0, %v2093
        %v2095 = vpop.f32.mrb[0].mxu0
        %v2096 = vadd.f32 0.0, %v2095
        %2097 = vdwg.mxu0
        %v2098 = vadd.f32 %v2007, %v2094
        %v2099 = vadd.f32 %v2008, %v2096
        %2100 = vrot.lane.b32.xlu0 %v1515, 17
        %v2101 = vpop.permute.xlu0 %2100
        %2102 = vrot.lane.b32.xlu0 %v1519, 17
        %v2103 = vpop.permute.xlu0 %2102
        %v2104 = vsel %vm399, %v2101, %v2103
        %v2108 = vmul.f32 %v1802, %v2101
        %v2109 = vmul.f32 %v1803, %v2104
        %v2110 = vmul.f32 %v1804, %v2103
        %s2111 = scalar_lea.vmem %s3, 64
        %v2112 = vld [vmem:[%s2111] sm:$0xff]
        %2116 = vrot.lane.b32.xlu0 %v2108, 111
        %v2117 = vpop.permute.xlu0 %2116
        %2118 = vrot.lane.b32.xlu0 %v2109, 111
        %v2119 = vpop.permute.xlu0 %2118
        %2120 = vrot.lane.b32.xlu0 %v2110, 111
        %v2121 = vpop.permute.xlu0 %2120
        %v2122 = vsel %vm383, %v2117, %v2119
        %v2123 = vsel %vm383, %v2119, %v2121
        %v2127 = vsel %vm1342, %v2112, 0
        %2129 = vmatprep.subr.mxu0 %v2123
        %2130 = vmatpush1.msra.mxu0 %v2122
        %2131 = vmatprep.subr.mxu0 0.0
        %2132 = vmatpush1.msra.mxu0 0.0
        %2133 = vmatprep.subr.mxu0 0.0
        %2134 = vmatpush1.msra.mxu0 0.0
        %2135 = vmatprep.subr.mxu0 0.0
        %2136 = vmatpush1.msra.mxu0 0.0
        %2137 = vmatprep.subr.mxu0 0.0
        %2138 = vmatpush1.msra.mxu0 0.0
        %2139 = vmatprep.subr.mxu0 0.0
        %2140 = vmatpush1.msra.mxu0 0.0
        %2141 = vmatprep.subr.mxu0 0.0
        %2142 = vmatpush1.msra.mxu0 0.0
        %2143 = vmatprep.subr.mxu0 0.0
        %2144 = vmatpush1.msra.mxu0 0.0
        %2145 = vmatprep.subr.mxu0 0.0
        %2146 = vmatpush1.msra.mxu0 0.0
        %2147 = vmatprep.subr.mxu0 0.0
        %2148 = vmatpush1.msra.mxu0 0.0
        %2149 = vmatprep.subr.mxu0 0.0
        %2150 = vmatpush1.msra.mxu0 0.0
        %2151 = vmatprep.subr.mxu0 0.0
        %2152 = vmatpush1.msra.mxu0 0.0
        %2153 = vmatprep.subr.mxu0 0.0
        %2154 = vmatpush1.msra.mxu0 0.0
        %2155 = vmatprep.subr.mxu0 0.0
        %2156 = vmatpush1.msra.mxu0 0.0
        %2157 = vmatprep.subr.mxu0 0.0
        %2158 = vmatpush1.msra.mxu0 0.0
        %2159 = vmatprep.subr.mxu0 0.0
        %2160 = vmatpush1.msra.mxu0 0.0
        %2161 = vmatprep.subr.mxu0 0.0
        %2162 = vmatpush1.msra.mxu0 0.0
        %2163 = vmatprep.subr.mxu0 0.0
        %2164 = vmatpush1.msra.mxu0 0.0
        %2165 = vmatprep.subr.mxu0 0.0
        %2166 = vmatpush1.msra.mxu0 0.0
        %2167 = vmatprep.subr.mxu0 0.0
        %2168 = vmatpush1.msra.mxu0 0.0
        %2169 = vmatprep.subr.mxu0 0.0
        %2170 = vmatpush1.msra.mxu0 0.0
        %2171 = vmatprep.subr.mxu0 0.0
        %2172 = vmatpush1.msra.mxu0 0.0
        %2173 = vmatprep.subr.mxu0 0.0
        %2174 = vmatpush1.msra.mxu0 0.0
        %2175 = vmatprep.subr.mxu0 0.0
        %2176 = vmatpush1.msra.mxu0 0.0
        %2177 = vmatprep.subr.mxu0 0.0
        %2178 = vmatpush1.msra.mxu0 0.0
        %2179 = vmatprep.subr.mxu0 0.0
        %2180 = vmatpush1.msra.mxu0 0.0
        %2181 = vmatprep.subr.mxu0 0.0
        %2182 = vmatpush1.msra.mxu0 0.0
        %2183 = vmatprep.subr.mxu0 0.0
        %2184 = vmatpush1.msra.mxu0 0.0
        %2185 = vmatprep.subr.mxu0 0.0
        %2186 = vmatpush1.msra.mxu0 0.0
        %2187 = vmatprep.subr.mxu0 0.0
        %2188 = vmatpush1.msra.mxu0 0.0
        %2189 = vmatprep.subr.mxu0 0.0
        %2190 = vmatpush1.msra.mxu0 0.0
        %2191 = vmatprep.subr.mxu0 0.0
        %2192 = vmatpush1.msra.mxu0 0.0
        %2193 = vmatprep.mubr.f32.mxu0 0.0
        %2194 = vmatmul.mubr.f32.gmra.mrb[0].mxu0 %v2127
        %v2195 = vpop.f32.mrb[0].mxu0
        %v2196 = vadd.f32 0.0, %v2195
        %v2197 = vpop.f32.mrb[0].mxu0
        %v2198 = vadd.f32 0.0, %v2197
        %2199 = vdwg.mxu0
        %v2200 = vadd.f32 %v2098, %v2196
        %v2201 = vadd.f32 %v2099, %v2198
        %v2202 = vmax.f32 %v2200, 0.0
        %v2203 = vmax.f32 %v2201, 0.0
        %v2204 = vld [vmem:[%s6] sm:$0x1]
        %v2205 = vld [vmem:[%s5] sm:$0xff]
        %v2206 = vld [vmem:[%s5 + $0x8] sm:$0xff]
        %v2207 = vld [vmem:[%s5 + $0x10] sm:$0xff]
        %v2208 = vld [vmem:[%s5 + $0x18] sm:$0xff]
        %v2209 = vld [vmem:[%s5 + $0x20] sm:$0xff]
        %v2210 = vld [vmem:[%s5 + $0x28] sm:$0xff]
        %v2211 = vld [vmem:[%s5 + $0x30] sm:$0xff]
        %v2212 = vld [vmem:[%s5 + $0x38] sm:$0xff]
        %v2213 = vld [vmem:[%s5 + $0x40] sm:$0xff]
        %v2214 = vld [vmem:[%s5 + $0x48] sm:$0xff]
        %v2215 = vld [vmem:[%s5 + $0x50] sm:$0xff]
        %v2216 = vld [vmem:[%s5 + $0x58] sm:$0xff]
        %v2217 = vld [vmem:[%s5 + $0x60] sm:$0xff]
        %v2218 = vld [vmem:[%s5 + $0x68] sm:$0xff]
        %v2219 = vld [vmem:[%s5 + $0x70] sm:$0xff]
        %v2220 = vld [vmem:[%s5 + $0x78] sm:$0xff]
        %v2221 = vld [vmem:[%s5 + $0x80] sm:$0xff]
        %v2222 = vld [vmem:[%s5 + $0x88] sm:$0xff]
        %v2223 = vld [vmem:[%s5 + $0x90] sm:$0xff]
        %v2224 = vld [vmem:[%s5 + $0x98] sm:$0xff]
        %v2225 = vld [vmem:[%s5 + $0xa0] sm:$0xff]
        %v2226 = vld [vmem:[%s5 + $0xa8] sm:$0xff]
        %v2227 = vld [vmem:[%s5 + $0xb0] sm:$0xff]
        %v2228 = vld [vmem:[%s5 + $0xb8] sm:$0xff]
        %v2229 = vld [vmem:[%s5 + $0xc0] sm:$0xff]
        %v2230 = vld [vmem:[%s5 + $0xc8] sm:$0xff]
        %v2231 = vld [vmem:[%s5 + $0xd0] sm:$0xff]
        %v2232 = vld [vmem:[%s5 + $0xd8] sm:$0xff]
        %v2233 = vld [vmem:[%s5 + $0xe0] sm:$0xff]
        %v2234 = vld [vmem:[%s5 + $0xe8] sm:$0xff]
        %v2235 = vld [vmem:[%s5 + $0xf0] sm:$0xff]
        %v2236 = vld [vmem:[%s5 + $0xf8] sm:$0xff]
        %2237 = vmatprep.subr.mxu0 0.0
        %2238 = vmatpush1.msra.mxu0 %v2205
        %2239 = vmatprep.subr.mxu0 0.0
        %2240 = vmatpush1.msra.mxu0 %v2206
        %2241 = vmatprep.subr.mxu0 0.0
        %2242 = vmatpush1.msra.mxu0 %v2207
        %2243 = vmatprep.subr.mxu0 0.0
        %2244 = vmatpush1.msra.mxu0 %v2208
        %2245 = vmatprep.subr.mxu0 0.0
        %2246 = vmatpush1.msra.mxu0 %v2209
        %2247 = vmatprep.subr.mxu0 0.0
        %2248 = vmatpush1.msra.mxu0 %v2210
        %2249 = vmatprep.subr.mxu0 0.0
        %2250 = vmatpush1.msra.mxu0 %v2211
        %2251 = vmatprep.subr.mxu0 0.0
        %2252 = vmatpush1.msra.mxu0 %v2212
        %2253 = vmatprep.subr.mxu0 0.0
        %2254 = vmatpush1.msra.mxu0 %v2213
        %2255 = vmatprep.subr.mxu0 0.0
        %2256 = vmatpush1.msra.mxu0 %v2214
        %2257 = vmatprep.subr.mxu0 0.0
        %2258 = vmatpush1.msra.mxu0 %v2215
        %2259 = vmatprep.subr.mxu0 0.0
        %2260 = vmatpush1.msra.mxu0 %v2216
        %2261 = vmatprep.subr.mxu0 0.0
        %2262 = vmatpush1.msra.mxu0 %v2217
        %2263 = vmatprep.subr.mxu0 0.0
        %2264 = vmatpush1.msra.mxu0 %v2218
        %2265 = vmatprep.subr.mxu0 0.0
        %2266 = vmatpush1.msra.mxu0 %v2219
        %2267 = vmatprep.subr.mxu0 0.0
        %2268 = vmatpush1.msra.mxu0 %v2220
        %2269 = vmatprep.subr.mxu0 0.0
        %2270 = vmatpush1.msra.mxu0 %v2221
        %2271 = vmatprep.subr.mxu0 0.0
        %2272 = vmatpush1.msra.mxu0 %v2222
        %2273 = vmatprep.subr.mxu0 0.0
        %2274 = vmatpush1.msra.mxu0 %v2223
        %2275 = vmatprep.subr.mxu0 0.0
        %2276 = vmatpush1.msra.mxu0 %v2224
        %2277 = vmatprep.subr.mxu0 0.0
        %2278 = vmatpush1.msra.mxu0 %v2225
        %2279 = vmatprep.subr.mxu0 0.0
        %2280 = vmatpush1.msra.mxu0 %v2226
        %2281 = vmatprep.subr.mxu0 0.0
        %2282 = vmatpush1.msra.mxu0 %v2227
        %2283 = vmatprep.subr.mxu0 0.0
        %2284 = vmatpush1.msra.mxu0 %v2228
        %2285 = vmatprep.subr.mxu0 0.0
        %2286 = vmatpush1.msra.mxu0 %v2229
        %2287 = vmatprep.subr.mxu0 0.0
        %2288 = vmatpush1.msra.mxu0 %v2230
        %2289 = vmatprep.subr.mxu0 0.0
        %2290 = vmatpush1.msra.mxu0 %v2231
        %2291 = vmatprep.subr.mxu0 0.0
        %2292 = vmatpush1.msra.mxu0 %v2232
        %2293 = vmatprep.subr.mxu0 0.0
        %2294 = vmatpush1.msra.mxu0 %v2233
        %2295 = vmatprep.subr.mxu0 0.0
        %2296 = vmatpush1.msra.mxu0 %v2234
        %2297 = vmatprep.subr.mxu0 0.0
        %2298 = vmatpush1.msra.mxu0 %v2235
        %2299 = vmatprep.subr.mxu0 0.0
        %2300 = vmatpush1.msra.mxu0 %v2236
        %2301 = vmatprep.mubr.f32.mxu0 %v2203
        %2302 = vmatmul.mubr.f32.gmra.mrb[0].mxu0 %v2202
        %v2303 = vpop.f32.mrb[0].mxu0
        %v2304 = vadd.f32 0.0, %v2303
        %v2305 = vpop.f32.mrb[0].mxu0
        %2306 = vdwg.mxu0
        %v2307 = vadd.f32 %v2204, %v2304
        %s2308 = scalar_lea.vmem %s5, 256
        %v2309 = vld [vmem:[%s2308] sm:$0xff]
        %v2310 = vld [vmem:[%s2308 + $0x8] sm:$0xff]
        %v2311 = vld [vmem:[%s2308 + $0x10] sm:$0xff]
        %v2312 = vld [vmem:[%s2308 + $0x18] sm:$0xff]
        %v2313 = vld [vmem:[%s2308 + $0x20] sm:$0xff]
        %v2314 = vld [vmem:[%s2308 + $0x28] sm:$0xff]
        %v2315 = vld [vmem:[%s2308 + $0x30] sm:$0xff]
        %v2316 = vld [vmem:[%s2308 + $0x38] sm:$0xff]
        %v2317 = vld [vmem:[%s2308 + $0x40] sm:$0xff]
        %v2318 = vld [vmem:[%s2308 + $0x48] sm:$0xff]
        %v2319 = vld [vmem:[%s2308 + $0x50] sm:$0xff]
        %v2320 = vld [vmem:[%s2308 + $0x58] sm:$0xff]
        %v2321 = vld [vmem:[%s2308 + $0x60] sm:$0xff]
        %v2322 = vld [vmem:[%s2308 + $0x68] sm:$0xff]
        %v2323 = vld [vmem:[%s2308 + $0x70] sm:$0xff]
        %v2324 = vld [vmem:[%s2308 + $0x78] sm:$0xff]
        %v2325 = vld [vmem:[%s2308 + $0x80] sm:$0xff]
        %v2326 = vld [vmem:[%s2308 + $0x88] sm:$0xff]
        %v2327 = vld [vmem:[%s2308 + $0x90] sm:$0xff]
        %v2328 = vld [vmem:[%s2308 + $0x98] sm:$0xff]
        %v2329 = vld [vmem:[%s2308 + $0xa0] sm:$0xff]
        %v2330 = vld [vmem:[%s2308 + $0xa8] sm:$0xff]
        %v2331 = vld [vmem:[%s2308 + $0xb0] sm:$0xff]
        %v2332 = vld [vmem:[%s2308 + $0xb8] sm:$0xff]
        %v2333 = vld [vmem:[%s2308 + $0xc0] sm:$0xff]
        %v2334 = vld [vmem:[%s2308 + $0xc8] sm:$0xff]
        %v2335 = vld [vmem:[%s2308 + $0xd0] sm:$0xff]
        %v2336 = vld [vmem:[%s2308 + $0xd8] sm:$0xff]
        %v2337 = vld [vmem:[%s2308 + $0xe0] sm:$0xff]
        %v2338 = vld [vmem:[%s2308 + $0xe8] sm:$0xff]
        %v2339 = vld [vmem:[%s2308 + $0xf0] sm:$0xff]
        %v2340 = vld [vmem:[%s2308 + $0xf8] sm:$0xff]
        %v2343 = vrot.slane %v2202, 1
        %v2344 = vrot.slane %v2203, 1
        %2347 = vmatprep.subr.mxu0 0.0
        %2348 = vmatpush1.msra.mxu0 %v2309
        %2349 = vmatprep.subr.mxu0 0.0
        %2350 = vmatpush1.msra.mxu0 %v2310
        %2351 = vmatprep.subr.mxu0 0.0
        %2352 = vmatpush1.msra.mxu0 %v2311
        %2353 = vmatprep.subr.mxu0 0.0
        %2354 = vmatpush1.msra.mxu0 %v2312
        %2355 = vmatprep.subr.mxu0 0.0
        %2356 = vmatpush1.msra.mxu0 %v2313
        %2357 = vmatprep.subr.mxu0 0.0
        %2358 = vmatpush1.msra.mxu0 %v2314
        %2359 = vmatprep.subr.mxu0 0.0
        %2360 = vmatpush1.msra.mxu0 %v2315
        %2361 = vmatprep.subr.mxu0 0.0
        %2362 = vmatpush1.msra.mxu0 %v2316
        %2363 = vmatprep.subr.mxu0 0.0
        %2364 = vmatpush1.msra.mxu0 %v2317
        %2365 = vmatprep.subr.mxu0 0.0
        %2366 = vmatpush1.msra.mxu0 %v2318
        %2367 = vmatprep.subr.mxu0 0.0
        %2368 = vmatpush1.msra.mxu0 %v2319
        %2369 = vmatprep.subr.mxu0 0.0
        %2370 = vmatpush1.msra.mxu0 %v2320
        %2371 = vmatprep.subr.mxu0 0.0
        %2372 = vmatpush1.msra.mxu0 %v2321
        %2373 = vmatprep.subr.mxu0 0.0
        %2374 = vmatpush1.msra.mxu0 %v2322
        %2375 = vmatprep.subr.mxu0 0.0
        %2376 = vmatpush1.msra.mxu0 %v2323
        %2377 = vmatprep.subr.mxu0 0.0
        %2378 = vmatpush1.msra.mxu0 %v2324
        %2379 = vmatprep.subr.mxu0 0.0
        %2380 = vmatpush1.msra.mxu0 %v2325
        %2381 = vmatprep.subr.mxu0 0.0
        %2382 = vmatpush1.msra.mxu0 %v2326
        %2383 = vmatprep.subr.mxu0 0.0
        %2384 = vmatpush1.msra.mxu0 %v2327
        %2385 = vmatprep.subr.mxu0 0.0
        %2386 = vmatpush1.msra.mxu0 %v2328
        %2387 = vmatprep.subr.mxu0 0.0
        %2388 = vmatpush1.msra.mxu0 %v2329
        %2389 = vmatprep.subr.mxu0 0.0
        %2390 = vmatpush1.msra.mxu0 %v2330
        %2391 = vmatprep.subr.mxu0 0.0
        %2392 = vmatpush1.msra.mxu0 %v2331
        %2393 = vmatprep.subr.mxu0 0.0
        %2394 = vmatpush1.msra.mxu0 %v2332
        %2395 = vmatprep.subr.mxu0 0.0
        %2396 = vmatpush1.msra.mxu0 %v2333
        %2397 = vmatprep.subr.mxu0 0.0
        %2398 = vmatpush1.msra.mxu0 %v2334
        %2399 = vmatprep.subr.mxu0 0.0
        %2400 = vmatpush1.msra.mxu0 %v2335
        %2401 = vmatprep.subr.mxu0 0.0
        %2402 = vmatpush1.msra.mxu0 %v2336
        %2403 = vmatprep.subr.mxu0 0.0
        %2404 = vmatpush1.msra.mxu0 %v2337
        %2405 = vmatprep.subr.mxu0 0.0
        %2406 = vmatpush1.msra.mxu0 %v2338
        %2407 = vmatprep.subr.mxu0 0.0
        %2408 = vmatpush1.msra.mxu0 %v2339
        %2409 = vmatprep.subr.mxu0 0.0
        %2410 = vmatpush1.msra.mxu0 %v2340
        %2411 = vmatprep.mubr.f32.mxu0 %v2344
        %2412 = vmatmul.mubr.f32.gmra.mrb[0].mxu0 %v2343
        %v2413 = vpop.f32.mrb[0].mxu0
        %v2414 = vadd.f32 0.0, %v2413
        %v2415 = vpop.f32.mrb[0].mxu0
        %2416 = vdwg.mxu0
        %v2417 = vadd.f32 %v2307, %v2414
        %s2418 = scalar_lea.vmem %s5, 512
        %v2419 = vld [vmem:[%s2418] sm:$0xff]
        %v2420 = vld [vmem:[%s2418 + $0x8] sm:$0xff]
        %v2421 = vld [vmem:[%s2418 + $0x10] sm:$0xff]
        %v2422 = vld [vmem:[%s2418 + $0x18] sm:$0xff]
        %v2423 = vld [vmem:[%s2418 + $0x20] sm:$0xff]
        %v2424 = vld [vmem:[%s2418 + $0x28] sm:$0xff]
        %v2425 = vld [vmem:[%s2418 + $0x30] sm:$0xff]
        %v2426 = vld [vmem:[%s2418 + $0x38] sm:$0xff]
        %v2427 = vld [vmem:[%s2418 + $0x40] sm:$0xff]
        %v2428 = vld [vmem:[%s2418 + $0x48] sm:$0xff]
        %v2429 = vld [vmem:[%s2418 + $0x50] sm:$0xff]
        %v2430 = vld [vmem:[%s2418 + $0x58] sm:$0xff]
        %v2431 = vld [vmem:[%s2418 + $0x60] sm:$0xff]
        %v2432 = vld [vmem:[%s2418 + $0x68] sm:$0xff]
        %v2433 = vld [vmem:[%s2418 + $0x70] sm:$0xff]
        %v2434 = vld [vmem:[%s2418 + $0x78] sm:$0xff]
        %v2435 = vld [vmem:[%s2418 + $0x80] sm:$0xff]
        %v2436 = vld [vmem:[%s2418 + $0x88] sm:$0xff]
        %v2437 = vld [vmem:[%s2418 + $0x90] sm:$0xff]
        %v2438 = vld [vmem:[%s2418 + $0x98] sm:$0xff]
        %v2439 = vld [vmem:[%s2418 + $0xa0] sm:$0xff]
        %v2440 = vld [vmem:[%s2418 + $0xa8] sm:$0xff]
        %v2441 = vld [vmem:[%s2418 + $0xb0] sm:$0xff]
        %v2442 = vld [vmem:[%s2418 + $0xb8] sm:$0xff]
        %v2443 = vld [vmem:[%s2418 + $0xc0] sm:$0xff]
        %v2444 = vld [vmem:[%s2418 + $0xc8] sm:$0xff]
        %v2445 = vld [vmem:[%s2418 + $0xd0] sm:$0xff]
        %v2446 = vld [vmem:[%s2418 + $0xd8] sm:$0xff]
        %v2447 = vld [vmem:[%s2418 + $0xe0] sm:$0xff]
        %v2448 = vld [vmem:[%s2418 + $0xe8] sm:$0xff]
        %v2449 = vld [vmem:[%s2418 + $0xf0] sm:$0xff]
        %v2450 = vld [vmem:[%s2418 + $0xf8] sm:$0xff]
        %v2451 = vrot.slane %v2202, 2
        %v2452 = vrot.slane %v2203, 2
        %2455 = vmatprep.subr.mxu0 0.0
        %2456 = vmatpush1.msra.mxu0 %v2419
        %2457 = vmatprep.subr.mxu0 0.0
        %2458 = vmatpush1.msra.mxu0 %v2420
        %2459 = vmatprep.subr.mxu0 0.0
        %2460 = vmatpush1.msra.mxu0 %v2421
        %2461 = vmatprep.subr.mxu0 0.0
        %2462 = vmatpush1.msra.mxu0 %v2422
        %2463 = vmatprep.subr.mxu0 0.0
        %2464 = vmatpush1.msra.mxu0 %v2423
        %2465 = vmatprep.subr.mxu0 0.0
        %2466 = vmatpush1.msra.mxu0 %v2424
        %2467 = vmatprep.subr.mxu0 0.0
        %2468 = vmatpush1.msra.mxu0 %v2425
        %2469 = vmatprep.subr.mxu0 0.0
        %2470 = vmatpush1.msra.mxu0 %v2426
        %2471 = vmatprep.subr.mxu0 0.0
        %2472 = vmatpush1.msra.mxu0 %v2427
        %2473 = vmatprep.subr.mxu0 0.0
        %2474 = vmatpush1.msra.mxu0 %v2428
        %2475 = vmatprep.subr.mxu0 0.0
        %2476 = vmatpush1.msra.mxu0 %v2429
        %2477 = vmatprep.subr.mxu0 0.0
        %2478 = vmatpush1.msra.mxu0 %v2430
        %2479 = vmatprep.subr.mxu0 0.0
        %2480 = vmatpush1.msra.mxu0 %v2431
        %2481 = vmatprep.subr.mxu0 0.0
        %2482 = vmatpush1.msra.mxu0 %v2432
        %2483 = vmatprep.subr.mxu0 0.0
        %2484 = vmatpush1.msra.mxu0 %v2433
        %2485 = vmatprep.subr.mxu0 0.0
        %2486 = vmatpush1.msra.mxu0 %v2434
        %2487 = vmatprep.subr.mxu0 0.0
        %2488 = vmatpush1.msra.mxu0 %v2435
        %2489 = vmatprep.subr.mxu0 0.0
        %2490 = vmatpush1.msra.mxu0 %v2436
        %2491 = vmatprep.subr.mxu0 0.0
        %2492 = vmatpush1.msra.mxu0 %v2437
        %2493 = vmatprep.subr.mxu0 0.0
        %2494 = vmatpush1.msra.mxu0 %v2438
        %2495 = vmatprep.subr.mxu0 0.0
        %2496 = vmatpush1.msra.mxu0 %v2439
        %2497 = vmatprep.subr.mxu0 0.0
        %2498 = vmatpush1.msra.mxu0 %v2440
        %2499 = vmatprep.subr.mxu0 0.0
        %2500 = vmatpush1.msra.mxu0 %v2441
        %2501 = vmatprep.subr.mxu0 0.0
        %2502 = vmatpush1.msra.mxu0 %v2442
        %2503 = vmatprep.subr.mxu0 0.0
        %2504 = vmatpush1.msra.mxu0 %v2443
        %2505 = vmatprep.subr.mxu0 0.0
        %2506 = vmatpush1.msra.mxu0 %v2444
        %2507 = vmatprep.subr.mxu0 0.0
        %2508 = vmatpush1.msra.mxu0 %v2445
        %2509 = vmatprep.subr.mxu0 0.0
        %2510 = vmatpush1.msra.mxu0 %v2446
        %2511 = vmatprep.subr.mxu0 0.0
        %2512 = vmatpush1.msra.mxu0 %v2447
        %2513 = vmatprep.subr.mxu0 0.0
        %2514 = vmatpush1.msra.mxu0 %v2448
        %2515 = vmatprep.subr.mxu0 0.0
        %2516 = vmatpush1.msra.mxu0 %v2449
        %2517 = vmatprep.subr.mxu0 0.0
        %2518 = vmatpush1.msra.mxu0 %v2450
        %2519 = vmatprep.mubr.f32.mxu0 %v2452
        %2520 = vmatmul.mubr.f32.gmra.mrb[0].mxu0 %v2451
        %v2521 = vpop.f32.mrb[0].mxu0
        %v2522 = vadd.f32 0.0, %v2521
        %v2523 = vpop.f32.mrb[0].mxu0
        %2524 = vdwg.mxu0
        %v2525 = vadd.f32 %v2417, %v2522
        %s2526 = scalar_lea.vmem %s5, 768
        %v2527 = vld [vmem:[%s2526] sm:$0xff]
        %v2528 = vld [vmem:[%s2526 + $0x8] sm:$0xff]
        %v2529 = vld [vmem:[%s2526 + $0x10] sm:$0xff]
        %v2530 = vld [vmem:[%s2526 + $0x18] sm:$0xff]
        %v2531 = vld [vmem:[%s2526 + $0x20] sm:$0xff]
        %v2532 = vld [vmem:[%s2526 + $0x28] sm:$0xff]
        %v2533 = vld [vmem:[%s2526 + $0x30] sm:$0xff]
        %v2534 = vld [vmem:[%s2526 + $0x38] sm:$0xff]
        %v2535 = vld [vmem:[%s2526 + $0x40] sm:$0xff]
        %v2536 = vld [vmem:[%s2526 + $0x48] sm:$0xff]
        %v2537 = vld [vmem:[%s2526 + $0x50] sm:$0xff]
        %v2538 = vld [vmem:[%s2526 + $0x58] sm:$0xff]
        %v2539 = vld [vmem:[%s2526 + $0x60] sm:$0xff]
        %v2540 = vld [vmem:[%s2526 + $0x68] sm:$0xff]
        %v2541 = vld [vmem:[%s2526 + $0x70] sm:$0xff]
        %v2542 = vld [vmem:[%s2526 + $0x78] sm:$0xff]
        %v2543 = vld [vmem:[%s2526 + $0x80] sm:$0xff]
        %v2544 = vld [vmem:[%s2526 + $0x88] sm:$0xff]
        %v2545 = vld [vmem:[%s2526 + $0x90] sm:$0xff]
        %v2546 = vld [vmem:[%s2526 + $0x98] sm:$0xff]
        %v2547 = vld [vmem:[%s2526 + $0xa0] sm:$0xff]
        %v2548 = vld [vmem:[%s2526 + $0xa8] sm:$0xff]
        %v2549 = vld [vmem:[%s2526 + $0xb0] sm:$0xff]
        %v2550 = vld [vmem:[%s2526 + $0xb8] sm:$0xff]
        %v2551 = vld [vmem:[%s2526 + $0xc0] sm:$0xff]
        %v2552 = vld [vmem:[%s2526 + $0xc8] sm:$0xff]
        %v2553 = vld [vmem:[%s2526 + $0xd0] sm:$0xff]
        %v2554 = vld [vmem:[%s2526 + $0xd8] sm:$0xff]
        %v2555 = vld [vmem:[%s2526 + $0xe0] sm:$0xff]
        %v2556 = vld [vmem:[%s2526 + $0xe8] sm:$0xff]
        %v2557 = vld [vmem:[%s2526 + $0xf0] sm:$0xff]
        %v2558 = vld [vmem:[%s2526 + $0xf8] sm:$0xff]
        %v2559 = vrot.slane %v2202, 3
        %v2560 = vrot.slane %v2203, 3
        %2563 = vmatprep.subr.mxu0 0.0
        %2564 = vmatpush1.msra.mxu0 %v2527
        %2565 = vmatprep.subr.mxu0 0.0
        %2566 = vmatpush1.msra.mxu0 %v2528
        %2567 = vmatprep.subr.mxu0 0.0
        %2568 = vmatpush1.msra.mxu0 %v2529
        %2569 = vmatprep.subr.mxu0 0.0
        %2570 = vmatpush1.msra.mxu0 %v2530
        %2571 = vmatprep.subr.mxu0 0.0
        %2572 = vmatpush1.msra.mxu0 %v2531
        %2573 = vmatprep.subr.mxu0 0.0
        %2574 = vmatpush1.msra.mxu0 %v2532
        %2575 = vmatprep.subr.mxu0 0.0
        %2576 = vmatpush1.msra.mxu0 %v2533
        %2577 = vmatprep.subr.mxu0 0.0
        %2578 = vmatpush1.msra.mxu0 %v2534
        %2579 = vmatprep.subr.mxu0 0.0
        %2580 = vmatpush1.msra.mxu0 %v2535
        %2581 = vmatprep.subr.mxu0 0.0
        %2582 = vmatpush1.msra.mxu0 %v2536
        %2583 = vmatprep.subr.mxu0 0.0
        %2584 = vmatpush1.msra.mxu0 %v2537
        %2585 = vmatprep.subr.mxu0 0.0
        %2586 = vmatpush1.msra.mxu0 %v2538
        %2587 = vmatprep.subr.mxu0 0.0
        %2588 = vmatpush1.msra.mxu0 %v2539
        %2589 = vmatprep.subr.mxu0 0.0
        %2590 = vmatpush1.msra.mxu0 %v2540
        %2591 = vmatprep.subr.mxu0 0.0
        %2592 = vmatpush1.msra.mxu0 %v2541
        %2593 = vmatprep.subr.mxu0 0.0
        %2594 = vmatpush1.msra.mxu0 %v2542
        %2595 = vmatprep.subr.mxu0 0.0
        %2596 = vmatpush1.msra.mxu0 %v2543
        %2597 = vmatprep.subr.mxu0 0.0
        %2598 = vmatpush1.msra.mxu0 %v2544
        %2599 = vmatprep.subr.mxu0 0.0
        %2600 = vmatpush1.msra.mxu0 %v2545
        %2601 = vmatprep.subr.mxu0 0.0
        %2602 = vmatpush1.msra.mxu0 %v2546
        %2603 = vmatprep.subr.mxu0 0.0
        %2604 = vmatpush1.msra.mxu0 %v2547
        %2605 = vmatprep.subr.mxu0 0.0
        %2606 = vmatpush1.msra.mxu0 %v2548
        %2607 = vmatprep.subr.mxu0 0.0
        %2608 = vmatpush1.msra.mxu0 %v2549
        %2609 = vmatprep.subr.mxu0 0.0
        %2610 = vmatpush1.msra.mxu0 %v2550
        %2611 = vmatprep.subr.mxu0 0.0
        %2612 = vmatpush1.msra.mxu0 %v2551
        %2613 = vmatprep.subr.mxu0 0.0
        %2614 = vmatpush1.msra.mxu0 %v2552
        %2615 = vmatprep.subr.mxu0 0.0
        %2616 = vmatpush1.msra.mxu0 %v2553
        %2617 = vmatprep.subr.mxu0 0.0
        %2618 = vmatpush1.msra.mxu0 %v2554
        %2619 = vmatprep.subr.mxu0 0.0
        %2620 = vmatpush1.msra.mxu0 %v2555
        %2621 = vmatprep.subr.mxu0 0.0
        %2622 = vmatpush1.msra.mxu0 %v2556
        %2623 = vmatprep.subr.mxu0 0.0
        %2624 = vmatpush1.msra.mxu0 %v2557
        %2625 = vmatprep.subr.mxu0 0.0
        %2626 = vmatpush1.msra.mxu0 %v2558
        %2627 = vmatprep.mubr.f32.mxu0 %v2560
        %2628 = vmatmul.mubr.f32.gmra.mrb[0].mxu0 %v2559
        %v2629 = vpop.f32.mrb[0].mxu0
        %v2630 = vadd.f32 0.0, %v2629
        %v2631 = vpop.f32.mrb[0].mxu0
        %2632 = vdwg.mxu0
        %v2633 = vadd.f32 %v2525, %v2630
        %s2634 = scalar_lea.vmem %s5, 1024
        %v2635 = vld [vmem:[%s2634] sm:$0xff]
        %v2636 = vld [vmem:[%s2634 + $0x8] sm:$0xff]
        %v2637 = vld [vmem:[%s2634 + $0x10] sm:$0xff]
        %v2638 = vld [vmem:[%s2634 + $0x18] sm:$0xff]
        %v2639 = vld [vmem:[%s2634 + $0x20] sm:$0xff]
        %v2640 = vld [vmem:[%s2634 + $0x28] sm:$0xff]
        %v2641 = vld [vmem:[%s2634 + $0x30] sm:$0xff]
        %v2642 = vld [vmem:[%s2634 + $0x38] sm:$0xff]
        %v2643 = vld [vmem:[%s2634 + $0x40] sm:$0xff]
        %v2644 = vld [vmem:[%s2634 + $0x48] sm:$0xff]
        %v2645 = vld [vmem:[%s2634 + $0x50] sm:$0xff]
        %v2646 = vld [vmem:[%s2634 + $0x58] sm:$0xff]
        %v2647 = vld [vmem:[%s2634 + $0x60] sm:$0xff]
        %v2648 = vld [vmem:[%s2634 + $0x68] sm:$0xff]
        %v2649 = vld [vmem:[%s2634 + $0x70] sm:$0xff]
        %v2650 = vld [vmem:[%s2634 + $0x78] sm:$0xff]
        %v2651 = vld [vmem:[%s2634 + $0x80] sm:$0xff]
        %v2652 = vld [vmem:[%s2634 + $0x88] sm:$0xff]
        %v2653 = vld [vmem:[%s2634 + $0x90] sm:$0xff]
        %v2654 = vld [vmem:[%s2634 + $0x98] sm:$0xff]
        %v2655 = vld [vmem:[%s2634 + $0xa0] sm:$0xff]
        %v2656 = vld [vmem:[%s2634 + $0xa8] sm:$0xff]
        %v2657 = vld [vmem:[%s2634 + $0xb0] sm:$0xff]
        %v2658 = vld [vmem:[%s2634 + $0xb8] sm:$0xff]
        %v2659 = vld [vmem:[%s2634 + $0xc0] sm:$0xff]
        %v2660 = vld [vmem:[%s2634 + $0xc8] sm:$0xff]
        %v2661 = vld [vmem:[%s2634 + $0xd0] sm:$0xff]
        %v2662 = vld [vmem:[%s2634 + $0xd8] sm:$0xff]
        %v2663 = vld [vmem:[%s2634 + $0xe0] sm:$0xff]
        %v2664 = vld [vmem:[%s2634 + $0xe8] sm:$0xff]
        %v2665 = vld [vmem:[%s2634 + $0xf0] sm:$0xff]
        %v2666 = vld [vmem:[%s2634 + $0xf8] sm:$0xff]
        %v2667 = vrot.slane %v2202, 4
        %v2668 = vrot.slane %v2203, 4
        %2671 = vmatprep.subr.mxu0 0.0
        %2672 = vmatpush1.msra.mxu0 %v2635
        %2673 = vmatprep.subr.mxu0 0.0
        %2674 = vmatpush1.msra.mxu0 %v2636
        %2675 = vmatprep.subr.mxu0 0.0
        %2676 = vmatpush1.msra.mxu0 %v2637
        %2677 = vmatprep.subr.mxu0 0.0
        %2678 = vmatpush1.msra.mxu0 %v2638
        %2679 = vmatprep.subr.mxu0 0.0
        %2680 = vmatpush1.msra.mxu0 %v2639
        %2681 = vmatprep.subr.mxu0 0.0
        %2682 = vmatpush1.msra.mxu0 %v2640
        %2683 = vmatprep.subr.mxu0 0.0
        %2684 = vmatpush1.msra.mxu0 %v2641
        %2685 = vmatprep.subr.mxu0 0.0
        %2686 = vmatpush1.msra.mxu0 %v2642
        %2687 = vmatprep.subr.mxu0 0.0
        %2688 = vmatpush1.msra.mxu0 %v2643
        %2689 = vmatprep.subr.mxu0 0.0
        %2690 = vmatpush1.msra.mxu0 %v2644
        %2691 = vmatprep.subr.mxu0 0.0
        %2692 = vmatpush1.msra.mxu0 %v2645
        %2693 = vmatprep.subr.mxu0 0.0
        %2694 = vmatpush1.msra.mxu0 %v2646
        %2695 = vmatprep.subr.mxu0 0.0
        %2696 = vmatpush1.msra.mxu0 %v2647
        %2697 = vmatprep.subr.mxu0 0.0
        %2698 = vmatpush1.msra.mxu0 %v2648
        %2699 = vmatprep.subr.mxu0 0.0
        %2700 = vmatpush1.msra.mxu0 %v2649
        %2701 = vmatprep.subr.mxu0 0.0
        %2702 = vmatpush1.msra.mxu0 %v2650
        %2703 = vmatprep.subr.mxu0 0.0
        %2704 = vmatpush1.msra.mxu0 %v2651
        %2705 = vmatprep.subr.mxu0 0.0
        %2706 = vmatpush1.msra.mxu0 %v2652
        %2707 = vmatprep.subr.mxu0 0.0
        %2708 = vmatpush1.msra.mxu0 %v2653
        %2709 = vmatprep.subr.mxu0 0.0
        %2710 = vmatpush1.msra.mxu0 %v2654
        %2711 = vmatprep.subr.mxu0 0.0
        %2712 = vmatpush1.msra.mxu0 %v2655
        %2713 = vmatprep.subr.mxu0 0.0
        %2714 = vmatpush1.msra.mxu0 %v2656
        %2715 = vmatprep.subr.mxu0 0.0
        %2716 = vmatpush1.msra.mxu0 %v2657
        %2717 = vmatprep.subr.mxu0 0.0
        %2718 = vmatpush1.msra.mxu0 %v2658
        %2719 = vmatprep.subr.mxu0 0.0
        %2720 = vmatpush1.msra.mxu0 %v2659
        %2721 = vmatprep.subr.mxu0 0.0
        %2722 = vmatpush1.msra.mxu0 %v2660
        %2723 = vmatprep.subr.mxu0 0.0
        %2724 = vmatpush1.msra.mxu0 %v2661
        %2725 = vmatprep.subr.mxu0 0.0
        %2726 = vmatpush1.msra.mxu0 %v2662
        %2727 = vmatprep.subr.mxu0 0.0
        %2728 = vmatpush1.msra.mxu0 %v2663
        %2729 = vmatprep.subr.mxu0 0.0
        %2730 = vmatpush1.msra.mxu0 %v2664
        %2731 = vmatprep.subr.mxu0 0.0
        %2732 = vmatpush1.msra.mxu0 %v2665
        %2733 = vmatprep.subr.mxu0 0.0
        %2734 = vmatpush1.msra.mxu0 %v2666
        %2735 = vmatprep.mubr.f32.mxu0 %v2668
        %2736 = vmatmul.mubr.f32.gmra.mrb[0].mxu0 %v2667
        %v2737 = vpop.f32.mrb[0].mxu0
        %v2738 = vadd.f32 0.0, %v2737
        %v2739 = vpop.f32.mrb[0].mxu0
        %2740 = vdwg.mxu0
        %v2741 = vadd.f32 %v2633, %v2738
        %s2742 = scalar_lea.vmem %s5, 1280
        %v2743 = vld [vmem:[%s2742] sm:$0xff]
        %v2744 = vld [vmem:[%s2742 + $0x8] sm:$0xff]
        %v2745 = vld [vmem:[%s2742 + $0x10] sm:$0xff]
        %v2746 = vld [vmem:[%s2742 + $0x18] sm:$0xff]
        %v2747 = vld [vmem:[%s2742 + $0x20] sm:$0xff]
        %v2748 = vld [vmem:[%s2742 + $0x28] sm:$0xff]
        %v2749 = vld [vmem:[%s2742 + $0x30] sm:$0xff]
        %v2750 = vld [vmem:[%s2742 + $0x38] sm:$0xff]
        %v2751 = vld [vmem:[%s2742 + $0x40] sm:$0xff]
        %v2752 = vld [vmem:[%s2742 + $0x48] sm:$0xff]
        %v2753 = vld [vmem:[%s2742 + $0x50] sm:$0xff]
        %v2754 = vld [vmem:[%s2742 + $0x58] sm:$0xff]
        %v2755 = vld [vmem:[%s2742 + $0x60] sm:$0xff]
        %v2756 = vld [vmem:[%s2742 + $0x68] sm:$0xff]
        %v2757 = vld [vmem:[%s2742 + $0x70] sm:$0xff]
        %v2758 = vld [vmem:[%s2742 + $0x78] sm:$0xff]
        %v2759 = vld [vmem:[%s2742 + $0x80] sm:$0xff]
        %v2760 = vld [vmem:[%s2742 + $0x88] sm:$0xff]
        %v2761 = vld [vmem:[%s2742 + $0x90] sm:$0xff]
        %v2762 = vld [vmem:[%s2742 + $0x98] sm:$0xff]
        %v2763 = vld [vmem:[%s2742 + $0xa0] sm:$0xff]
        %v2764 = vld [vmem:[%s2742 + $0xa8] sm:$0xff]
        %v2765 = vld [vmem:[%s2742 + $0xb0] sm:$0xff]
        %v2766 = vld [vmem:[%s2742 + $0xb8] sm:$0xff]
        %v2767 = vld [vmem:[%s2742 + $0xc0] sm:$0xff]
        %v2768 = vld [vmem:[%s2742 + $0xc8] sm:$0xff]
        %v2769 = vld [vmem:[%s2742 + $0xd0] sm:$0xff]
        %v2770 = vld [vmem:[%s2742 + $0xd8] sm:$0xff]
        %v2771 = vld [vmem:[%s2742 + $0xe0] sm:$0xff]
        %v2772 = vld [vmem:[%s2742 + $0xe8] sm:$0xff]
        %v2773 = vld [vmem:[%s2742 + $0xf0] sm:$0xff]
        %v2774 = vld [vmem:[%s2742 + $0xf8] sm:$0xff]
        %v2775 = vrot.slane %v2202, 5
        %v2776 = vrot.slane %v2203, 5
        %2779 = vmatprep.subr.mxu0 0.0
        %2780 = vmatpush1.msra.mxu0 %v2743
        %2781 = vmatprep.subr.mxu0 0.0
        %2782 = vmatpush1.msra.mxu0 %v2744
        %2783 = vmatprep.subr.mxu0 0.0
        %2784 = vmatpush1.msra.mxu0 %v2745
        %2785 = vmatprep.subr.mxu0 0.0
        %2786 = vmatpush1.msra.mxu0 %v2746
        %2787 = vmatprep.subr.mxu0 0.0
        %2788 = vmatpush1.msra.mxu0 %v2747
        %2789 = vmatprep.subr.mxu0 0.0
        %2790 = vmatpush1.msra.mxu0 %v2748
        %2791 = vmatprep.subr.mxu0 0.0
        %2792 = vmatpush1.msra.mxu0 %v2749
        %2793 = vmatprep.subr.mxu0 0.0
        %2794 = vmatpush1.msra.mxu0 %v2750
        %2795 = vmatprep.subr.mxu0 0.0
        %2796 = vmatpush1.msra.mxu0 %v2751
        %2797 = vmatprep.subr.mxu0 0.0
        %2798 = vmatpush1.msra.mxu0 %v2752
        %2799 = vmatprep.subr.mxu0 0.0
        %2800 = vmatpush1.msra.mxu0 %v2753
        %2801 = vmatprep.subr.mxu0 0.0
        %2802 = vmatpush1.msra.mxu0 %v2754
        %2803 = vmatprep.subr.mxu0 0.0
        %2804 = vmatpush1.msra.mxu0 %v2755
        %2805 = vmatprep.subr.mxu0 0.0
        %2806 = vmatpush1.msra.mxu0 %v2756
        %2807 = vmatprep.subr.mxu0 0.0
        %2808 = vmatpush1.msra.mxu0 %v2757
        %2809 = vmatprep.subr.mxu0 0.0
        %2810 = vmatpush1.msra.mxu0 %v2758
        %2811 = vmatprep.subr.mxu0 0.0
        %2812 = vmatpush1.msra.mxu0 %v2759
        %2813 = vmatprep.subr.mxu0 0.0
        %2814 = vmatpush1.msra.mxu0 %v2760
        %2815 = vmatprep.subr.mxu0 0.0
        %2816 = vmatpush1.msra.mxu0 %v2761
        %2817 = vmatprep.subr.mxu0 0.0
        %2818 = vmatpush1.msra.mxu0 %v2762
        %2819 = vmatprep.subr.mxu0 0.0
        %2820 = vmatpush1.msra.mxu0 %v2763
        %2821 = vmatprep.subr.mxu0 0.0
        %2822 = vmatpush1.msra.mxu0 %v2764
        %2823 = vmatprep.subr.mxu0 0.0
        %2824 = vmatpush1.msra.mxu0 %v2765
        %2825 = vmatprep.subr.mxu0 0.0
        %2826 = vmatpush1.msra.mxu0 %v2766
        %2827 = vmatprep.subr.mxu0 0.0
        %2828 = vmatpush1.msra.mxu0 %v2767
        %2829 = vmatprep.subr.mxu0 0.0
        %2830 = vmatpush1.msra.mxu0 %v2768
        %2831 = vmatprep.subr.mxu0 0.0
        %2832 = vmatpush1.msra.mxu0 %v2769
        %2833 = vmatprep.subr.mxu0 0.0
        %2834 = vmatpush1.msra.mxu0 %v2770
        %2835 = vmatprep.subr.mxu0 0.0
        %2836 = vmatpush1.msra.mxu0 %v2771
        %2837 = vmatprep.subr.mxu0 0.0
        %2838 = vmatpush1.msra.mxu0 %v2772
        %2839 = vmatprep.subr.mxu0 0.0
        %2840 = vmatpush1.msra.mxu0 %v2773
        %2841 = vmatprep.subr.mxu0 0.0
        %2842 = vmatpush1.msra.mxu0 %v2774
        %2843 = vmatprep.mubr.f32.mxu0 %v2776
        %2844 = vmatmul.mubr.f32.gmra.mrb[0].mxu0 %v2775
        %v2845 = vpop.f32.mrb[0].mxu0
        %v2846 = vadd.f32 0.0, %v2845
        %v2847 = vpop.f32.mrb[0].mxu0
        %2848 = vdwg.mxu0
        %v2849 = vadd.f32 %v2741, %v2846
        %s2850 = scalar_lea.vmem %s5, 1536
        %v2851 = vld [vmem:[%s2850] sm:$0xff]
        %v2852 = vld [vmem:[%s2850 + $0x8] sm:$0xff]
        %v2853 = vld [vmem:[%s2850 + $0x10] sm:$0xff]
        %v2854 = vld [vmem:[%s2850 + $0x18] sm:$0xff]
        %v2855 = vld [vmem:[%s2850 + $0x20] sm:$0xff]
        %v2856 = vld [vmem:[%s2850 + $0x28] sm:$0xff]
        %v2857 = vld [vmem:[%s2850 + $0x30] sm:$0xff]
        %v2858 = vld [vmem:[%s2850 + $0x38] sm:$0xff]
        %v2859 = vld [vmem:[%s2850 + $0x40] sm:$0xff]
        %v2860 = vld [vmem:[%s2850 + $0x48] sm:$0xff]
        %v2861 = vld [vmem:[%s2850 + $0x50] sm:$0xff]
        %v2862 = vld [vmem:[%s2850 + $0x58] sm:$0xff]
        %v2863 = vld [vmem:[%s2850 + $0x60] sm:$0xff]
        %v2864 = vld [vmem:[%s2850 + $0x68] sm:$0xff]
        %v2865 = vld [vmem:[%s2850 + $0x70] sm:$0xff]
        %v2866 = vld [vmem:[%s2850 + $0x78] sm:$0xff]
        %v2867 = vld [vmem:[%s2850 + $0x80] sm:$0xff]
        %v2868 = vld [vmem:[%s2850 + $0x88] sm:$0xff]
        %v2869 = vld [vmem:[%s2850 + $0x90] sm:$0xff]
        %v2870 = vld [vmem:[%s2850 + $0x98] sm:$0xff]
        %v2871 = vld [vmem:[%s2850 + $0xa0] sm:$0xff]
        %v2872 = vld [vmem:[%s2850 + $0xa8] sm:$0xff]
        %v2873 = vld [vmem:[%s2850 + $0xb0] sm:$0xff]
        %v2874 = vld [vmem:[%s2850 + $0xb8] sm:$0xff]
        %v2875 = vld [vmem:[%s2850 + $0xc0] sm:$0xff]
        %v2876 = vld [vmem:[%s2850 + $0xc8] sm:$0xff]
        %v2877 = vld [vmem:[%s2850 + $0xd0] sm:$0xff]
        %v2878 = vld [vmem:[%s2850 + $0xd8] sm:$0xff]
        %v2879 = vld [vmem:[%s2850 + $0xe0] sm:$0xff]
        %v2880 = vld [vmem:[%s2850 + $0xe8] sm:$0xff]
        %v2881 = vld [vmem:[%s2850 + $0xf0] sm:$0xff]
        %v2882 = vld [vmem:[%s2850 + $0xf8] sm:$0xff]
        %v2883 = vrot.slane %v2202, 6
        %v2884 = vrot.slane %v2203, 6
        %2887 = vmatprep.subr.mxu0 0.0
        %2888 = vmatpush1.msra.mxu0 %v2851
        %2889 = vmatprep.subr.mxu0 0.0
        %2890 = vmatpush1.msra.mxu0 %v2852
        %2891 = vmatprep.subr.mxu0 0.0
        %2892 = vmatpush1.msra.mxu0 %v2853
        %2893 = vmatprep.subr.mxu0 0.0
        %2894 = vmatpush1.msra.mxu0 %v2854
        %2895 = vmatprep.subr.mxu0 0.0
        %2896 = vmatpush1.msra.mxu0 %v2855
        %2897 = vmatprep.subr.mxu0 0.0
        %2898 = vmatpush1.msra.mxu0 %v2856
        %2899 = vmatprep.subr.mxu0 0.0
        %2900 = vmatpush1.msra.mxu0 %v2857
        %2901 = vmatprep.subr.mxu0 0.0
        %2902 = vmatpush1.msra.mxu0 %v2858
        %2903 = vmatprep.subr.mxu0 0.0
        %2904 = vmatpush1.msra.mxu0 %v2859
        %2905 = vmatprep.subr.mxu0 0.0
        %2906 = vmatpush1.msra.mxu0 %v2860
        %2907 = vmatprep.subr.mxu0 0.0
        %2908 = vmatpush1.msra.mxu0 %v2861
        %2909 = vmatprep.subr.mxu0 0.0
        %2910 = vmatpush1.msra.mxu0 %v2862
        %2911 = vmatprep.subr.mxu0 0.0
        %2912 = vmatpush1.msra.mxu0 %v2863
        %2913 = vmatprep.subr.mxu0 0.0
        %2914 = vmatpush1.msra.mxu0 %v2864
        %2915 = vmatprep.subr.mxu0 0.0
        %2916 = vmatpush1.msra.mxu0 %v2865
        %2917 = vmatprep.subr.mxu0 0.0
        %2918 = vmatpush1.msra.mxu0 %v2866
        %2919 = vmatprep.subr.mxu0 0.0
        %2920 = vmatpush1.msra.mxu0 %v2867
        %2921 = vmatprep.subr.mxu0 0.0
        %2922 = vmatpush1.msra.mxu0 %v2868
        %2923 = vmatprep.subr.mxu0 0.0
        %2924 = vmatpush1.msra.mxu0 %v2869
        %2925 = vmatprep.subr.mxu0 0.0
        %2926 = vmatpush1.msra.mxu0 %v2870
        %2927 = vmatprep.subr.mxu0 0.0
        %2928 = vmatpush1.msra.mxu0 %v2871
        %2929 = vmatprep.subr.mxu0 0.0
        %2930 = vmatpush1.msra.mxu0 %v2872
        %2931 = vmatprep.subr.mxu0 0.0
        %2932 = vmatpush1.msra.mxu0 %v2873
        %2933 = vmatprep.subr.mxu0 0.0
        %2934 = vmatpush1.msra.mxu0 %v2874
        %2935 = vmatprep.subr.mxu0 0.0
        %2936 = vmatpush1.msra.mxu0 %v2875
        %2937 = vmatprep.subr.mxu0 0.0
        %2938 = vmatpush1.msra.mxu0 %v2876
        %2939 = vmatprep.subr.mxu0 0.0
        %2940 = vmatpush1.msra.mxu0 %v2877
        %2941 = vmatprep.subr.mxu0 0.0
        %2942 = vmatpush1.msra.mxu0 %v2878
        %2943 = vmatprep.subr.mxu0 0.0
        %2944 = vmatpush1.msra.mxu0 %v2879
        %2945 = vmatprep.subr.mxu0 0.0
        %2946 = vmatpush1.msra.mxu0 %v2880
        %2947 = vmatprep.subr.mxu0 0.0
        %2948 = vmatpush1.msra.mxu0 %v2881
        %2949 = vmatprep.subr.mxu0 0.0
        %2950 = vmatpush1.msra.mxu0 %v2882
        %2951 = vmatprep.mubr.f32.mxu0 %v2884
        %2952 = vmatmul.mubr.f32.gmra.mrb[0].mxu0 %v2883
        %v2953 = vpop.f32.mrb[0].mxu0
        %v2954 = vadd.f32 0.0, %v2953
        %v2955 = vpop.f32.mrb[0].mxu0
        %2956 = vdwg.mxu0
        %v2957 = vadd.f32 %v2849, %v2954
        %s2958 = scalar_lea.vmem %s5, 1792
        %v2959 = vld [vmem:[%s2958] sm:$0xff]
        %v2960 = vld [vmem:[%s2958 + $0x8] sm:$0xff]
        %v2961 = vld [vmem:[%s2958 + $0x10] sm:$0xff]
        %v2962 = vld [vmem:[%s2958 + $0x18] sm:$0xff]
        %v2963 = vld [vmem:[%s2958 + $0x20] sm:$0xff]
        %v2964 = vld [vmem:[%s2958 + $0x28] sm:$0xff]
        %v2965 = vld [vmem:[%s2958 + $0x30] sm:$0xff]
        %v2966 = vld [vmem:[%s2958 + $0x38] sm:$0xff]
        %v2967 = vld [vmem:[%s2958 + $0x40] sm:$0xff]
        %v2968 = vld [vmem:[%s2958 + $0x48] sm:$0xff]
        %v2969 = vld [vmem:[%s2958 + $0x50] sm:$0xff]
        %v2970 = vld [vmem:[%s2958 + $0x58] sm:$0xff]
        %v2971 = vld [vmem:[%s2958 + $0x60] sm:$0xff]
        %v2972 = vld [vmem:[%s2958 + $0x68] sm:$0xff]
        %v2973 = vld [vmem:[%s2958 + $0x70] sm:$0xff]
        %v2974 = vld [vmem:[%s2958 + $0x78] sm:$0xff]
        %v2975 = vld [vmem:[%s2958 + $0x80] sm:$0xff]
        %v2976 = vld [vmem:[%s2958 + $0x88] sm:$0xff]
        %v2977 = vld [vmem:[%s2958 + $0x90] sm:$0xff]
        %v2978 = vld [vmem:[%s2958 + $0x98] sm:$0xff]
        %v2979 = vld [vmem:[%s2958 + $0xa0] sm:$0xff]
        %v2980 = vld [vmem:[%s2958 + $0xa8] sm:$0xff]
        %v2981 = vld [vmem:[%s2958 + $0xb0] sm:$0xff]
        %v2982 = vld [vmem:[%s2958 + $0xb8] sm:$0xff]
        %v2983 = vld [vmem:[%s2958 + $0xc0] sm:$0xff]
        %v2984 = vld [vmem:[%s2958 + $0xc8] sm:$0xff]
        %v2985 = vld [vmem:[%s2958 + $0xd0] sm:$0xff]
        %v2986 = vld [vmem:[%s2958 + $0xd8] sm:$0xff]
        %v2987 = vld [vmem:[%s2958 + $0xe0] sm:$0xff]
        %v2988 = vld [vmem:[%s2958 + $0xe8] sm:$0xff]
        %v2989 = vld [vmem:[%s2958 + $0xf0] sm:$0xff]
        %v2990 = vld [vmem:[%s2958 + $0xf8] sm:$0xff]
        %v2991 = vrot.slane %v2202, 7
        %v2992 = vrot.slane %v2203, 7
        %2995 = vmatprep.subr.mxu0 0.0
        %2996 = vmatpush1.msra.mxu0 %v2959
        %2997 = vmatprep.subr.mxu0 0.0
        %2998 = vmatpush1.msra.mxu0 %v2960
        %2999 = vmatprep.subr.mxu0 0.0
        %3000 = vmatpush1.msra.mxu0 %v2961
        %3001 = vmatprep.subr.mxu0 0.0
        %3002 = vmatpush1.msra.mxu0 %v2962
        %3003 = vmatprep.subr.mxu0 0.0
        %3004 = vmatpush1.msra.mxu0 %v2963
        %3005 = vmatprep.subr.mxu0 0.0
        %3006 = vmatpush1.msra.mxu0 %v2964
        %3007 = vmatprep.subr.mxu0 0.0
        %3008 = vmatpush1.msra.mxu0 %v2965
        %3009 = vmatprep.subr.mxu0 0.0
        %3010 = vmatpush1.msra.mxu0 %v2966
        %3011 = vmatprep.subr.mxu0 0.0
        %3012 = vmatpush1.msra.mxu0 %v2967
        %3013 = vmatprep.subr.mxu0 0.0
        %3014 = vmatpush1.msra.mxu0 %v2968
        %3015 = vmatprep.subr.mxu0 0.0
        %3016 = vmatpush1.msra.mxu0 %v2969
        %3017 = vmatprep.subr.mxu0 0.0
        %3018 = vmatpush1.msra.mxu0 %v2970
        %3019 = vmatprep.subr.mxu0 0.0
        %3020 = vmatpush1.msra.mxu0 %v2971
        %3021 = vmatprep.subr.mxu0 0.0
        %3022 = vmatpush1.msra.mxu0 %v2972
        %3023 = vmatprep.subr.mxu0 0.0
        %3024 = vmatpush1.msra.mxu0 %v2973
        %3025 = vmatprep.subr.mxu0 0.0
        %3026 = vmatpush1.msra.mxu0 %v2974
        %3027 = vmatprep.subr.mxu0 0.0
        %3028 = vmatpush1.msra.mxu0 %v2975
        %3029 = vmatprep.subr.mxu0 0.0
        %3030 = vmatpush1.msra.mxu0 %v2976
        %3031 = vmatprep.subr.mxu0 0.0
        %3032 = vmatpush1.msra.mxu0 %v2977
        %3033 = vmatprep.subr.mxu0 0.0
        %3034 = vmatpush1.msra.mxu0 %v2978
        %3035 = vmatprep.subr.mxu0 0.0
        %3036 = vmatpush1.msra.mxu0 %v2979
        %3037 = vmatprep.subr.mxu0 0.0
        %3038 = vmatpush1.msra.mxu0 %v2980
        %3039 = vmatprep.subr.mxu0 0.0
        %3040 = vmatpush1.msra.mxu0 %v2981
        %3041 = vmatprep.subr.mxu0 0.0
        %3042 = vmatpush1.msra.mxu0 %v2982
        %3043 = vmatprep.subr.mxu0 0.0
        %3044 = vmatpush1.msra.mxu0 %v2983
        %3045 = vmatprep.subr.mxu0 0.0
        %3046 = vmatpush1.msra.mxu0 %v2984
        %3047 = vmatprep.subr.mxu0 0.0
        %3048 = vmatpush1.msra.mxu0 %v2985
        %3049 = vmatprep.subr.mxu0 0.0
        %3050 = vmatpush1.msra.mxu0 %v2986
        %3051 = vmatprep.subr.mxu0 0.0
        %3052 = vmatpush1.msra.mxu0 %v2987
        %3053 = vmatprep.subr.mxu0 0.0
        %3054 = vmatpush1.msra.mxu0 %v2988
        %3055 = vmatprep.subr.mxu0 0.0
        %3056 = vmatpush1.msra.mxu0 %v2989
        %3057 = vmatprep.subr.mxu0 0.0
        %3058 = vmatpush1.msra.mxu0 %v2990
        %3059 = vmatprep.mubr.f32.mxu0 %v2992
        %3060 = vmatmul.mubr.f32.gmra.mrb[0].mxu0 %v2991
        %v3061 = vpop.f32.mrb[0].mxu0
        %v3062 = vadd.f32 0.0, %v3061
        %v3063 = vpop.f32.mrb[0].mxu0
        %3064 = vdwg.mxu0
        %v3065 = vadd.f32 %v2957, %v3062
        %v3066 = vmax.f32 %v3065, 0.0
        %v3067 = vld [vmem:[%s7] sm:$0xff]
        %v3068 = vld [vmem:[%s7 + $0x8] sm:$0xff]
        %v3069 = vld [vmem:[%s7 + $0x10] sm:$0xff]
        %v3070 = vld [vmem:[%s7 + $0x18] sm:$0xff]
        %v3071 = vld [vmem:[%s8] sm:$0x1]
        %vm3072 = vcmask 261120
        %v3074 = vsel %vm3072, %v3066, 0
        %3076 = vmatprep.subr.mxu0 0.0
        %3077 = vmatpush1.msra.mxu0 %v3067
        %3078 = vmatprep.subr.mxu0 0.0
        %3079 = vmatpush1.msra.mxu0 %v3068
        %3080 = vmatprep.subr.mxu0 0.0
        %3081 = vmatpush1.msra.mxu0 %v3069
        %3082 = vmatprep.subr.mxu0 0.0
        %3083 = vmatpush1.msra.mxu0 %v3070
        %3084 = vmatprep.subr.mxu0 0.0
        %3085 = vmatpush1.msra.mxu0 0.0
        %3086 = vmatprep.subr.mxu0 0.0
        %3087 = vmatpush1.msra.mxu0 0.0
        %3088 = vmatprep.subr.mxu0 0.0
        %3089 = vmatpush1.msra.mxu0 0.0
        %3090 = vmatprep.subr.mxu0 0.0
        %3091 = vmatpush1.msra.mxu0 0.0
        %3092 = vmatprep.subr.mxu0 0.0
        %3093 = vmatpush1.msra.mxu0 0.0
        %3094 = vmatprep.subr.mxu0 0.0
        %3095 = vmatpush1.msra.mxu0 0.0
        %3096 = vmatprep.subr.mxu0 0.0
        %3097 = vmatpush1.msra.mxu0 0.0
        %3098 = vmatprep.subr.mxu0 0.0
        %3099 = vmatpush1.msra.mxu0 0.0
        %3100 = vmatprep.subr.mxu0 0.0
        %3101 = vmatpush1.msra.mxu0 0.0
        %3102 = vmatprep.subr.mxu0 0.0
        %3103 = vmatpush1.msra.mxu0 0.0
        %3104 = vmatprep.subr.mxu0 0.0
        %3105 = vmatpush1.msra.mxu0 0.0
        %3106 = vmatprep.subr.mxu0 0.0
        %3107 = vmatpush1.msra.mxu0 0.0
        %3108 = vmatprep.subr.mxu0 0.0
        %3109 = vmatpush1.msra.mxu0 0.0
        %3110 = vmatprep.subr.mxu0 0.0
        %3111 = vmatpush1.msra.mxu0 0.0
        %3112 = vmatprep.subr.mxu0 0.0
        %3113 = vmatpush1.msra.mxu0 0.0
        %3114 = vmatprep.subr.mxu0 0.0
        %3115 = vmatpush1.msra.mxu0 0.0
        %3116 = vmatprep.subr.mxu0 0.0
        %3117 = vmatpush1.msra.mxu0 0.0
        %3118 = vmatprep.subr.mxu0 0.0
        %3119 = vmatpush1.msra.mxu0 0.0
        %3120 = vmatprep.subr.mxu0 0.0
        %3121 = vmatpush1.msra.mxu0 0.0
        %3122 = vmatprep.subr.mxu0 0.0
        %3123 = vmatpush1.msra.mxu0 0.0
        %3124 = vmatprep.subr.mxu0 0.0
        %3125 = vmatpush1.msra.mxu0 0.0
        %3126 = vmatprep.subr.mxu0 0.0
        %3127 = vmatpush1.msra.mxu0 0.0
        %3128 = vmatprep.subr.mxu0 0.0
        %3129 = vmatpush1.msra.mxu0 0.0
        %3130 = vmatprep.subr.mxu0 0.0
        %3131 = vmatpush1.msra.mxu0 0.0
        %3132 = vmatprep.subr.mxu0 0.0
        %3133 = vmatpush1.msra.mxu0 0.0
        %3134 = vmatprep.subr.mxu0 0.0
        %3135 = vmatpush1.msra.mxu0 0.0
        %3136 = vmatprep.subr.mxu0 0.0
        %3137 = vmatpush1.msra.mxu0 0.0
        %3138 = vmatprep.subr.mxu0 0.0
        %3139 = vmatpush1.msra.mxu0 0.0
        %3140 = vmatprep.mubr.f32.mxu0 0.0
        %3141 = vmatmul.mubr.f32.gmra.mrb[0].mxu0 %v3074
        %v3142 = vpop.f32.mrb[0].mxu0
        %v3143 = vadd.f32 %v3071, %v3142
        %v3144 = vpop.f32.mrb[0].mxu0
        %3145 = vdwg.mxu0
        %vm3146 = vcmask 73728
        %3147 = vst.msk [vmem:[%s351] sm:$0x1] %vm3146, %v3143
        %s3148 = sand.u32 %s247, 1
        %s3149 = scalar_lea.sflag [#allocation5], %s3148
        %s3150 = sand.u32 %s247, 1
        %s3151 = scalar_lea.vmem [#allocation4], %s3150
        // Predicated region
        $region61: #{bottomnet_forward.1} parent=59 // pred_check
          %p3152 = pneg %p257
        $region62: #{bottomnet_forward.1} parent=59 // pred_check_branch
          %3154 = sbr.rel (%p3152) target = $region64
        $region63: #{bottomnet_forward.1} parent=59 // pred_region
          %s3156 = ssub.s32 16, 16
          %3157 = vsyncadd %s3149, %s3156
          %s3158 = smul.addr %s24, 16
          %s3159 = scalar_lea.hbm %s10, %s3158
          %s3161 = sshll.u32 %s3151, 4
          %s3162 = int_to_ptr.vmem [resolvable:$true] %s3161
          %3164 = dma.vmem_to_hbm [thread:$0]  %s3162, 16, %s3159, %s3149
        $region64: #{bottomnet_forward.1} parent=59 // pred_fallthru
          _
      $region60: #{bottomnet_forward.1} parent=5 // pred_fallthru
        _
      %p3165 = scmp.le.s32.totalorder 2, %s19
      // Predicated region
      $region65: #{bottomnet_forward.1} parent=5 // pred_check
        %p3166 = pneg %p3165
      $region66: #{bottomnet_forward.1} parent=5 // pred_check_branch
        %3168 = sbr.rel (%p3166) target = $region68
      $region67: #{bottomnet_forward.1} parent=5 // pred_region
        %s3169 = ssub.s32 %s19, 2
        // Predicated region
        $region69: #{bottomnet_forward.1} parent=67 // pred_check
          %p3170 = pneg %p263
        $region70: #{bottomnet_forward.1} parent=67 // pred_check_branch
          %3172 = sbr.rel (%p3170) target = $region72
        $region71: #{bottomnet_forward.1} parent=67 // pred_region
          %s3173 = sand.u32 %s248, 1
          %s3174 = scalar_lea.sflag [#allocation5], %s3173
          %s3175 = sand.u32 %s248, 1
          %s3176 = scalar_lea.vmem [#allocation4], %s3175
          %3177 = dma.done %s3174, 16
        $region72: #{bottomnet_forward.1} parent=67 // pred_fallthru
          _
      $region68: #{bottomnet_forward.1} parent=5 // pred_fallthru
        _
    $region6: #{bottomnet_forward.1} parent=1 // loop_footer
      %s23 = sadd.s32 1, %s19
    $region7: #{bottomnet_forward.1} parent=1 // loop_footer_branch
      %18 = sbr.rel target = $region3
    $region8: #{bottomnet_forward.1} parent=1 // loop_exit
      _
    %3178 = vsyncpa [#allocation5], 1
    %s3179 = scalar_lea.sflag [#allocation5], 1
    %3180 = vsyncpa %s3179, 1

</llo_original>
